<compile_context>
chip_gen: v7x
topology: tpu7x:2x2x1
jax: 0.10.0
libtpu: 0.0.40
codegen_flags: <defaults>
</compile_context>

<pallas_src>
import functools
import numpy as np
import jax
import jax.numpy as jnp
from jax.experimental import pallas as pl
from jax.experimental.pallas import tpu as pltpu


# ----------------------------- config ---------------------------------------
class Cfg:
    image_size = 16
    patch_size = 8
    num_frames = 4
    tubelet_size = 2
    num_channels = 4          # != 3 -> HF VideoMAE skips the ImageNet un-normalize branch
    hidden_size = 32
    num_hidden_layers = 2
    num_attention_heads = 2
    intermediate_size = 64
    decoder_hidden_size = 16
    decoder_num_hidden_layers = 1
    decoder_num_attention_heads = 2
    decoder_intermediate_size = 32
    layer_norm_eps = 1e-12
    norm_pix_loss = False
    use_mean_pooling = True   # -> no LayerNorm after the encoder in VideoMAEModel
    # TODO(synk): HF default hidden_act='gelu' (erf-based); this synthetic config uses the
    # 'gelu_new' (tanh) activation, which is exactly what the kernel implements.
    hidden_act = "gelu_new"


_LAYER_KEYS = ("wq", "bq", "wk", "bk", "wv", "bv", "wo", "bo",
               "ln1g", "ln1b", "ln2g", "ln2b", "wi", "bi", "wf", "bf")


# ----------------------------- kernel helpers ---------------------------------
def _gelu_tanh(x):
    # 'gelu_new': 0.5 * x * (1 + tanh(sqrt(2/pi) * (x + 0.044715 x^3)))
    return 0.5 * x * (1.0 + jnp.tanh(0.7978845608028654 * (x + 0.044715 * x * x * x)))


def _layernorm(x, g, b, eps):
    mu = jnp.mean(x, axis=-1, keepdims=True)
    var = jnp.mean((x - mu) ** 2, axis=-1, keepdims=True)
    return (x - mu) * jax.lax.rsqrt(var + eps) * g + b


def _layer_body(x, w_refs, num_heads, eps):
    """One pre-LN transformer layer on a (B, S, D) f32 activation.

    QKV / output-projection / MLP matmuls run full width on flattened (B*S, D) bf16
    operands with f32 accumulation (MXU uses all output lanes). Heads are split only for
    the score / softmax / context stage.
    """
    (wq, bq, wk, bk, wv, bv, wo, bo, g1, b1, g2, b2, wi, bi, wf, bf) = w_refs
    B, S, D = x.shape
    hd = D // num_heads
    scale = 1.0 / float(hd) ** 0.5

    # ---- attention block (pre-LN) ----
    h = _layernorm(x, g1[...], b1[...], eps)
    h2d = h.reshape(B * S, D).astype(jnp.bfloat16)
    q = (jnp.dot(h2d, wq[...], preferred_element_type=jnp.float32) + bq[...]).reshape(B, S, D)
    k = (jnp.dot(h2d, wk[...], preferred_element_type=jnp.float32) + bk[...]).reshape(B, S, D)
    v = (jnp.dot(h2d, wv[...], preferred_element_type=jnp.float32) + bv[...]).reshape(B, S, D)

    ctx_heads = []
    # TODO(synk): at production head counts (H=12/16) switch this static unroll to a
    # lax.fori_loop over heads to bound vreg live ranges.
    for hi in range(num_heads):
        qh = q[:, :, hi * hd:(hi + 1) * hd].astype(jnp.bfloat16)
        kh = k[:, :, hi * hd:(hi + 1) * hd].astype(jnp.bfloat16)
        vh = v[:, :, hi * hd:(hi + 1) * hd].astype(jnp.bfloat16)
        s = jnp.einsum("bqe,bke->bqk", qh, kh, preferred_element_type=jnp.float32) * scale
        s = s - jnp.max(s, axis=-1, keepdims=True)
        p = jnp.exp(s)
        # approx reciprocal runs on the EUP slot; introduces a tiny deviation vs full divide
        p = p * pl.reciprocal(jnp.sum(p, axis=-1, keepdims=True), approx=True)
        ctx_heads.append(jnp.einsum("bqk,bke->bqe", p.astype(jnp.bfloat16), vh,
                                    preferred_element_type=jnp.float32))
    ctx = jnp.concatenate(ctx_heads, axis=-1)                     # (B, S, D) f32
    attn = (jnp.dot(ctx.reshape(B * S, D).astype(jnp.bfloat16), wo[...],
                    preferred_element_type=jnp.float32) + bo[...]).reshape(B, S, D)
    x = x + attn                                                  # residual

    # ---- MLP block (pre-LN) ----
    h = _layernorm(x, g2[...], b2[...], eps)
    hm = h.reshape(B * S, D).astype(jnp.bfloat16)
    inter = _gelu_tanh(jnp.dot(hm, wi[...], preferred_element_type=jnp.float32) + bi[...])
    mlp = (jnp.dot(inter.astype(jnp.bfloat16), wf[...], preferred_element_type=jnp.float32)
           + bf[...]).reshape(B, S, D)
    return x + mlp


# ----------------------------- fused stack kernels -----------------------------
def encoder_stack_kernel(pvis_ref, wpe_ref, bpe_ref, pos_ref, *rest, num_heads, eps):
    """grid = (n_layers,). Whole batch is in the block; layer 0 additionally performs the
    patch-embed matmul + pos-enc add; the last layer writes the resident activation out."""
    w_refs = rest[:16]
    out_ref, acc_ref = rest[16], rest[17]
    layer = pl.program_id(0)

    @pl.when(layer == 0)
    def _():
        B, S, PD = pvis_ref.shape
        emb = (jnp.dot(pvis_ref[...].reshape(B * S, PD).astype(jnp.bfloat16), wpe_ref[...],
                       preferred_element_type=jnp.float32) + bpe_ref[...])
        acc_ref[...] = emb.reshape(B, S, acc_ref.shape[-1]) + pos_ref[...]

    acc_ref[...] = _layer_body(acc_ref[...], w_refs, num_heads, eps)

    @pl.when(layer == pl.num_programs(0) - 1)
    def _():
        out_ref[...] = acc_ref[...]


def decoder_stack_kernel(hid_ref, we2d_ref, posv_ref, posm_ref, mtok_ref, *rest,
                         num_heads, eps, n_vis):
    """grid = (n_layers,). Layer 0 builds the decoder input sequence
    [enc_out @ W_e2d + pos_vis ; mask_token + pos_masked]; only the masked-token tail is
    written back to HBM (that is all the head needs)."""
    w_refs = rest[:16]
    out_ref, acc_ref = rest[16], rest[17]
    layer = pl.program_id(0)
    s_full = acc_ref.shape[1]

    @pl.when(layer == 0)
    def _():
        B, NV, D = hid_ref.shape
        dd = acc_ref.shape[-1]
        vis = jnp.dot(hid_ref[...].reshape(B * NV, D).astype(jnp.bfloat16), we2d_ref[...],
                      preferred_element_type=jnp.float32).reshape(B, NV, dd)
        # TODO(synk): pad n_vis/n_mask to multiples of 8 at production sizes so this split
        # lands on sublane-tile boundaries.
        acc_ref[:, 0:n_vis, :] = vis + posv_ref[...]               # e2d Linear has no bias
        acc_ref[:, n_vis:s_full, :] = mtok_ref[...] + posm_ref[...]

    acc_ref[...] = _layer_body(acc_ref[...], w_refs, num_heads, eps)

    @pl.when(layer == pl.num_programs(0) - 1)
    def _():
        out_ref[...] = acc_ref[:, n_vis:s_full, :]


def head_loss_kernel(x_ref, g_ref, b_ref, w_ref, hb_ref, lab_ref, sel_ref,
                     logits_ref, loss_ref, *, eps):
    """Decoder-final LayerNorm + head + masked MSE. Single invocation (whole batch in the
    block), so there is no serial cross-grid accumulation.
    TODO(synk): at large batch, chunk the batch on a 'parallel' grid axis and emit per-chunk
    partial num/den outputs, reducing the final B-element sum in XLA."""
    B, NM, DD = x_ref.shape
    P = w_ref.shape[-1]
    h = _layernorm(x_ref[...], g_ref[...], b_ref[...], eps)
    logits = (jnp.dot(h.reshape(B * NM, DD).astype(jnp.bfloat16), w_ref[...],
                      preferred_element_type=jnp.float32) + hb_ref[...]).reshape(B, NM, P)
    logits_ref[...] = logits

    diff = logits - lab_ref[...]
    sel = sel_ref[...]                                             # (B, NM, 1) row selection
    num = jnp.sum((diff * diff * sel).reshape(B * NM, P), keepdims=True)   # (1, 1)
    den = jnp.sum(sel.reshape(B * NM, 1), keepdims=True) * float(P)        # (1, 1)
    # guard: if the video mask selects zero patches, define loss = 0 instead of NaN
    loss_ref[...] = num / jnp.maximum(den, 1.0)


# ----------------------------- pallas_call wrappers ----------------------------
def _weight_specs(weights):
    """Per-layer weight blocks: squeezed leading layer axis, full trailing dims."""
    specs = []
    for w in weights:
        nd = w.ndim
        specs.append(pl.BlockSpec((pl.Squeezed(),) + w.shape[1:],
                                  lambda l, nd=nd: (l,) + (0,) * (nd - 1)))
    return specs


def run_encoder_stack(patches_vis, w_pe, b_pe, pos_vis, stack, num_heads, eps):
    bsz, n_vis, pd = patches_vis.shape
    d = w_pe.shape[1]
    n_layers = stack["wq"].shape[0]
    weights = [stack[k] for k in _LAYER_KEYS]
    in_specs = [
        pl.BlockSpec((bsz, n_vis, pd), lambda l: (0, 0, 0)),
        pl.BlockSpec(w_pe.shape, lambda l: (0, 0)),
        pl.BlockSpec(b_pe.shape, lambda l: (0, 0)),
        pl.BlockSpec((bsz, n_vis, d), lambda l: (0, 0, 0)),
    ] + _weight_specs(weights)
    return pl.pallas_call(
        functools.partial(encoder_stack_kernel, num_heads=num_heads, eps=eps),
        out_shape=jax.ShapeDtypeStruct((bsz, n_vis, d), jnp.float32),
        grid=(n_layers,),
        in_specs=in_specs,
        out_specs=pl.BlockSpec((bsz, n_vis, d), lambda l: (0, 0, 0)),
        scratch_shapes=[pltpu.VMEM((bsz, n_vis, d), jnp.float32)],
        compiler_params=pltpu.CompilerParams(
            dimension_semantics=("arbitrary",),          # layer axis carries the activation
            vmem_limit_bytes=64 * 1024 * 1024),
    )(patches_vis, w_pe, b_pe, pos_vis, *weights)


def run_decoder_stack(enc_out, w_e2d, pos_vis, pos_msk, mask_token, stack, num_heads, eps):
    bsz, n_vis, d = enc_out.shape
    dd = w_e2d.shape[1]
    n_mask = pos_msk.shape[1]
    n_layers = stack["wq"].shape[0]
    weights = [stack[k] for k in _LAYER_KEYS]
    in_specs = [
        pl.BlockSpec((bsz, n_vis, d), lambda l: (0, 0, 0)),
        pl.BlockSpec(w_e2d.shape, lambda l: (0, 0)),
        pl.BlockSpec((bsz, n_vis, dd), lambda l: (0, 0, 0)),
        pl.BlockSpec((bsz, n_mask, dd), lambda l: (0, 0, 0)),
        pl.BlockSpec(mask_token.shape, lambda l: (0, 0)),
    ] + _weight_specs(weights)
    return pl.pallas_call(
        functools.partial(decoder_stack_kernel, num_heads=num_heads, eps=eps, n_vis=n_vis),
        out_shape=jax.ShapeDtypeStruct((bsz, n_mask, dd), jnp.float32),
        grid=(n_layers,),
        in_specs=in_specs,
        out_specs=pl.BlockSpec((bsz, n_mask, dd), lambda l: (0, 0, 0)),
        scratch_shapes=[pltpu.VMEM((bsz, n_vis + n_mask, dd), jnp.float32)],
        compiler_params=pltpu.CompilerParams(
            dimension_semantics=("arbitrary",),
            vmem_limit_bytes=64 * 1024 * 1024),
    )(enc_out, w_e2d, pos_vis, pos_msk, mask_token, *weights)


def run_head_loss(dec_masked, g, beta, w_head, b_head, labels, sel, eps):
    bsz, n_mask, dd = dec_masked.shape
    p_out = w_head.shape[1]
    return pl.pallas_call(
        functools.partial(head_loss_kernel, eps=eps),
        out_shape=(jax.ShapeDtypeStruct((bsz, n_mask, p_out), jnp.float32),
                   jax.ShapeDtypeStruct((1, 1), jnp.float32)),
        compiler_params=pltpu.CompilerParams(vmem_limit_bytes=64 * 1024 * 1024),
    )(dec_masked, g, beta, w_head, b_head, labels, sel)


# ----------------------------- parameters ------------------------------------
def _init(key, shape, scale=0.02):
    return scale * jax.random.normal(key, shape, dtype=jnp.float32)


def sinusoid_table(n_position, d_hid):
    pos = np.arange(n_position)[:, None].astype(np.float64)
    i = np.arange(d_hid)[None, :]
    angle = pos / np.power(10000.0, 2.0 * (i // 2) / d_hid)
    table = np.zeros((n_position, d_hid), dtype=np.float32)
    table[:, 0::2] = np.sin(angle[:, 0::2])
    table[:, 1::2] = np.cos(angle[:, 1::2])
    return jnp.asarray(table)


def init_stack_params(key, num_layers, d, inter):
    """Per-layer weights stacked on a leading L axis. Matmul weights stored bf16 (halves
    HBM/VMEM bytes); biases / LayerNorm params stay f32."""
    ks = jax.random.split(key, 11)
    zeros = lambda *s: jnp.zeros(s, jnp.float32)
    ones = lambda *s: jnp.ones(s, jnp.float32)
    bf = jnp.bfloat16
    return dict(
        wq=_init(ks[0], (num_layers, d, d)).astype(bf),
        bq=_init(ks[1], (num_layers, 1, d)),
        wk=_init(ks[2], (num_layers, d, d)).astype(bf),
        bk=zeros(num_layers, 1, d),                        # key has no bias in VideoMAE
        wv=_init(ks[3], (num_layers, d, d)).astype(bf),
        bv=_init(ks[4], (num_layers, 1, d)),
        wo=_init(ks[5], (num_layers, d, d)).astype(bf),
        bo=_init(ks[6], (num_layers, 1, d)),
        ln1g=ones(num_layers, 1, d), ln1b=zeros(num_layers, 1, d),
        ln2g=ones(num_layers, 1, d), ln2b=zeros(num_layers, 1, d),
        wi=_init(ks[7], (num_layers, d, inter)).astype(bf),
        bi=_init(ks[8], (num_layers, 1, inter)),
        wf=_init(ks[9], (num_layers, inter, d)).astype(bf),
        bf=_init(ks[10], (num_layers, 1, d)),
    )


def init_params(cfg, key):
    p, tub, c = cfg.patch_size, cfg.tubelet_size, cfg.num_channels
    patch_dim = c * tub * p * p
    grid_sp = cfg.image_size // p
    num_patches = (cfg.num_frames // tub) * grid_sp * grid_sp
    keys = jax.random.split(key, 8)
    bf = jnp.bfloat16
    return dict(
        w_pe=_init(keys[0], (patch_dim, cfg.hidden_size)).astype(bf),
        b_pe=_init(keys[1], (1, cfg.hidden_size)),
        pos_enc=sinusoid_table(num_patches, cfg.hidden_size),
        w_e2d=_init(keys[2], (cfg.hidden_size, cfg.decoder_hidden_size)).astype(bf),  # no bias
        mask_token=_init(keys[3], (1, cfg.decoder_hidden_size)),
        pos_dec=sinusoid_table(num_patches, cfg.decoder_hidden_size),
        dec_norm_g=jnp.ones((1, cfg.decoder_hidden_size), jnp.float32),
        dec_norm_b=jnp.zeros((1, cfg.decoder_hidden_size), jnp.float32),
        w_head=_init(keys[4], (cfg.decoder_hidden_size, patch_dim)).astype(bf),
        b_head=_init(keys[5], (1, patch_dim)),
        enc=init_stack_params(keys[6], cfg.num_hidden_layers, cfg.hidden_size,
                              cfg.intermediate_size),
        dec=init_stack_params(keys[7], cfg.decoder_num_hidden_layers,
                              cfg.decoder_hidden_size, cfg.decoder_intermediate_size),
    )


# ----------------------------- forward (jitted) --------------------------------
def _forward_impl(params, cfg, x, vis_idx, msk_idx, video_mask):
    b, t, c, hh, ww = x.shape
    p, tub = cfg.patch_size, cfg.tubelet_size
    tt, hp, wp = t // tub, hh // p, ww // p
    n = tt * hp * wp
    n_mask = msk_idx.shape[1]
    eps = cfg.layer_norm_eps
    patch_out_dim = tub * p * p * c

    # ---- patchify (Conv3d with kernel==stride == linear on (C,tub,p,p) patches) ----
    xc = jnp.transpose(x, (0, 2, 1, 3, 4))                          # (B,C,T,H,W)
    xc = xc.reshape(b, c, tt, tub, hp, p, wp, p)
    xc = jnp.transpose(xc, (0, 2, 4, 6, 1, 3, 5, 7))                # (B,Tt,Hp,Wp,C,tub,p,p)
    patches = xc.reshape(b, n, c * tub * p * p)
    # only visible patches are embedded (row-wise op commutes with the gather)
    patches_vis = jnp.take_along_axis(patches, vis_idx[:, :, None], axis=1)
    pos_vis_enc = jnp.take(params["pos_enc"], vis_idx, axis=0)      # (B, n_vis, D)

    # ---- encoder (patch embed + pos + all layers, one pallas_call) ----
    enc_out = run_encoder_stack(patches_vis, params["w_pe"], params["b_pe"], pos_vis_enc,
                                params["enc"], cfg.num_attention_heads, eps)
    # use_mean_pooling=True -> no final encoder LayerNorm

    # ---- decoder (e2d projection + token assembly + all layers, one pallas_call) ----
    pos_vis_dec = jnp.take(params["pos_dec"], vis_idx, axis=0)
    pos_msk_dec = jnp.take(params["pos_dec"], msk_idx, axis=0)
    dec_masked = run_decoder_stack(enc_out, params["w_e2d"], pos_vis_dec, pos_msk_dec,
                                   params["mask_token"], params["dec"],
                                   cfg.decoder_num_attention_heads, eps)

    # ---- labels: patchify frames in (tub, p, p, C) order (norm_pix_loss=False) ----
    f = x.reshape(b, tt, tub, c, hp, p, wp, p)
    f = jnp.transpose(f, (0, 1, 4, 6, 2, 5, 7, 3))
    videos_patch = f.reshape(b, n, patch_out_dim)
    labels = jnp.take_along_axis(videos_patch, msk_idx[:, :, None], axis=1)

    # ---- selection weights for the loss ----
    if video_mask is None:
        sel = jnp.ones((b, n_mask, 1), jnp.float32)                 # base HF MSE (all masked)
    else:
        vm = video_mask.astype(jnp.float32).reshape(b, hp, p, wp, p)
        pooled = jnp.max(vm, axis=(2, 4))                           # F.max_pool2d(patch_size)
        patched = jnp.broadcast_to(pooled[:, None], (b, tt, hp, wp)).reshape(b, n)
        sel = (jnp.take_along_axis(patched, msk_idx, axis=1) > 0.5
               ).astype(jnp.float32)[..., None]

    # ---- decoder-final LayerNorm + head + masked MSE (one pallas_call) ----
    logits, loss = run_head_loss(dec_masked, params["dec_norm_g"], params["dec_norm_b"],
                                 params["w_head"], params["b_head"], labels, sel, eps)

    return dict(loss=loss[0, 0], logits=logits, hidden_states=None, attentions=None)


_forward_core = jax.jit(_forward_impl, static_argnums=(1,))


def videomae_pretraining_forward(params, cfg, x, bool_masked_pos, video_mask=None):
    """Host wrapper: derives the (static-shape) visible/masked index tables once, then runs
    the fully-jitted core (glue ops + 3 Pallas kernels)."""
    m = np.asarray(bool_masked_pos).astype(bool)
    per_row = m.sum(axis=1)
    assert (per_row == per_row[0]).all(), "VideoMAE requires equal #masked patches per sample"
    n_mask = int(per_row[0])
    n_vis = m.shape[1] - n_mask
    # stable argsort: visible indices first (original order), masked after -> matches the
    # PyTorch boolean-indexing order used by the reference model.
    order = np.argsort(m, axis=1, kind="stable")
    vis_idx = jnp.asarray(order[:, :n_vis], dtype=jnp.int32)
    msk_idx = jnp.asarray(order[:, n_vis:], dtype=jnp.int32)
    return _forward_core(params, cfg, x, vis_idx, msk_idx, video_mask)


# ----------------------------- main -------------------------------------------
if __name__ == "__main__":
    cfg = Cfg()
    key = jax.random.PRNGKey(0)
    k_param, k_x = jax.random.split(key)
    params = init_params(cfg, k_param)

    B = 2
    x = jax.random.normal(
        k_x, (B, cfg.num_frames, cfg.num_channels, cfg.image_size, cfg.image_size),
        dtype=jnp.float32,
    )
    # 8 tubelet patches per sample; mask exactly 4 per sample
    bool_masked_pos = jnp.array(
        [[False, True, False, True, False, True, False, True],
         [True, False, True, False, True, False, True, False]]
    )
    # video valid only on the left half of every frame
    video_mask = jnp.zeros((B, cfg.image_size, cfg.image_size), jnp.float32)
    video_mask = video_mask.at[:, :, : cfg.patch_size].set(1.0)

    out = videomae_pretraining_forward(params, cfg, x, bool_masked_pos, video_mask)
    jax.block_until_ready(out["loss"])
    jax.block_until_ready(out["logits"])
    print("KERNEL_OK")
</pallas_src>

<mosaic_0001>
module attributes {stable_mosaic.version = 11 : i64} {
  func.func @encoder_stack_kernel(%arg0: i32, %arg1: memref<2x4x512xf32, #tpu.memory_space<vmem>>, %arg2: memref<512x32xbf16, #tpu.memory_space<vmem>>, %arg3: memref<1x32xf32, #tpu.memory_space<vmem>>, %arg4: memref<2x4x32xf32, #tpu.memory_space<vmem>>, %arg5: memref<1x32x32xbf16, #tpu.memory_space<vmem>>, %arg6: memref<1x1x32xf32, #tpu.memory_space<vmem>>, %arg7: memref<1x32x32xbf16, #tpu.memory_space<vmem>>, %arg8: memref<1x1x32xf32, #tpu.memory_space<vmem>>, %arg9: memref<1x32x32xbf16, #tpu.memory_space<vmem>>, %arg10: memref<1x1x32xf32, #tpu.memory_space<vmem>>, %arg11: memref<1x32x32xbf16, #tpu.memory_space<vmem>>, %arg12: memref<1x1x32xf32, #tpu.memory_space<vmem>>, %arg13: memref<1x1x32xf32, #tpu.memory_space<vmem>>, %arg14: memref<1x1x32xf32, #tpu.memory_space<vmem>>, %arg15: memref<1x1x32xf32, #tpu.memory_space<vmem>>, %arg16: memref<1x1x32xf32, #tpu.memory_space<vmem>>, %arg17: memref<1x32x64xbf16, #tpu.memory_space<vmem>>, %arg18: memref<1x1x64xf32, #tpu.memory_space<vmem>>, %arg19: memref<1x64x32xbf16, #tpu.memory_space<vmem>>, %arg20: memref<1x1x32xf32, #tpu.memory_space<vmem>>, %arg21: memref<2x4x32xf32, #tpu.memory_space<vmem>>, %arg22: memref<2x4x32xf32, #tpu.memory_space<vmem>>) attributes {dimension_semantics = [#tpu.dimension_semantics<arbitrary>], iteration_bounds = array<i64: 2>, scalar_prefetch = 0 : i64, scratch_operands = 1 : i64, tpu.core_type = #tpu.core_type<tc>, window_params = [{pipeline_mode = #tpu.pipeline_mode<synchronous>, transform_indices = @transform_0, window_bounds = array<i64: 2, 4, 512>}, {pipeline_mode = #tpu.pipeline_mode<synchronous>, transform_indices = @transform_1, window_bounds = array<i64: 512, 32>}, {pipeline_mode = #tpu.pipeline_mode<synchronous>, transform_indices = @transform_2, window_bounds = array<i64: 1, 32>}, {pipeline_mode = #tpu.pipeline_mode<synchronous>, transform_indices = @transform_3, window_bounds = array<i64: 2, 4, 32>}, {transform_indices = @transform_4, window_bounds = array<i64: 1, 32, 32>}, {transform_indices = @transform_5, window_bounds = array<i64: 1, 1, 32>}, {transform_indices = @transform_6, window_bounds = array<i64: 1, 32, 32>}, {transform_indices = @transform_7, window_bounds = array<i64: 1, 1, 32>}, {transform_indices = @transform_8, window_bounds = array<i64: 1, 32, 32>}, {transform_indices = @transform_9, window_bounds = array<i64: 1, 1, 32>}, {transform_indices = @transform_10, window_bounds = array<i64: 1, 32, 32>}, {transform_indices = @transform_11, window_bounds = array<i64: 1, 1, 32>}, {transform_indices = @transform_12, window_bounds = array<i64: 1, 1, 32>}, {transform_indices = @transform_13, window_bounds = array<i64: 1, 1, 32>}, {transform_indices = @transform_14, window_bounds = array<i64: 1, 1, 32>}, {transform_indices = @transform_15, window_bounds = array<i64: 1, 1, 32>}, {transform_indices = @transform_16, window_bounds = array<i64: 1, 32, 64>}, {transform_indices = @transform_17, window_bounds = array<i64: 1, 1, 64>}, {transform_indices = @transform_18, window_bounds = array<i64: 1, 64, 32>}, {transform_indices = @transform_19, window_bounds = array<i64: 1, 1, 32>}, {pipeline_mode = #tpu.pipeline_mode<synchronous>, transform_indices = @transform_20, window_bounds = array<i64: 2, 4, 32>}]} {
    %c0_i32 = arith.constant 0 : i32
    %0 = arith.cmpi eq, %arg0, %c0_i32 : i32
    %1 = arith.extui %0 : i1 to i32
    %c0_i32_0 = arith.constant 0 : i32
    %2 = arith.cmpi ne, %1, %c0_i32_0 : i32
    scf.if %2 {
      %c0_84 = arith.constant 0 : index
      %c0_85 = arith.constant 0 : index
      %c0_86 = arith.constant 0 : index
      %176 = vector.load %arg1[%c0_84, %c0_85, %c0_86] : memref<2x4x512xf32, #tpu.memory_space<vmem>>, vector<2x4x512xf32>
      %177 = vector.shape_cast %176 : vector<2x4x512xf32> to vector<8x512xf32>
      %178 = arith.truncf %177 : vector<8x512xf32> to vector<8x512xbf16>
      %c0_87 = arith.constant 0 : index
      %c0_88 = arith.constant 0 : index
      %179 = vector.load %arg2[%c0_87, %c0_88] : memref<512x32xbf16, #tpu.memory_space<vmem>>, vector<512x32xbf16>
      %cst_89 = arith.constant dense<0.000000e+00> : vector<8x32xf32>
      %180 = tpu.matmul %178, %179, %cst_89 {dimension_numbers = #tpu.dot_dimension_numbers<[1], [0], [0], [1], [0, 0, 1, 1], [], []>} : vector<8x512xbf16>, vector<512x32xbf16>, vector<8x32xf32> -> vector<8x32xf32>
      %c0_90 = arith.constant 0 : index
      %c0_91 = arith.constant 0 : index
      %181 = vector.load %arg3[%c0_90, %c0_91] : memref<1x32xf32, #tpu.memory_space<vmem>>, vector<1x32xf32>
      %182 = vector.broadcast %181 : vector<1x32xf32> to vector<8x32xf32>
      %183 = arith.addf %180, %182 : vector<8x32xf32>
      %184 = vector.shape_cast %183 : vector<8x32xf32> to vector<2x4x32xf32>
      %c0_92 = arith.constant 0 : index
      %c0_93 = arith.constant 0 : index
      %c0_94 = arith.constant 0 : index
      %185 = vector.load %arg4[%c0_92, %c0_93, %c0_94] : memref<2x4x32xf32, #tpu.memory_space<vmem>>, vector<2x4x32xf32>
      %186 = arith.addf %184, %185 : vector<2x4x32xf32>
      %c0_95 = arith.constant 0 : index
      %c0_96 = arith.constant 0 : index
      %c0_97 = arith.constant 0 : index
      %187 = vector.load %arg22[%c0_95, %c0_96, %c0_97] : memref<2x4x32xf32, #tpu.memory_space<vmem>>, vector<2x4x32xf32>
      tpu.vector_store %arg22[%c0_95, %c0_96, %c0_97], %186 {strides = array<i32>} : memref<2x4x32xf32, #tpu.memory_space<vmem>>, vector<2x4x32xf32>,
    } else {
    }
    %c0 = arith.constant 0 : index
    %c0_1 = arith.constant 0 : index
    %c0_2 = arith.constant 0 : index
    %3 = vector.load %arg22[%c0, %c0_1, %c0_2] : memref<2x4x32xf32, #tpu.memory_space<vmem>>, vector<2x4x32xf32>
    %c0_3 = arith.constant 0 : index
    %c0_4 = arith.constant 0 : index
    %c0_5 = arith.constant 0 : index
    %4 = vector.load %arg13[%c0_3, %c0_4, %c0_5] : memref<1x1x32xf32, #tpu.memory_space<vmem>>, vector<1x1x32xf32>
    %5 = vector.shape_cast %4 : vector<1x1x32xf32> to vector<1x32xf32>
    %c0_6 = arith.constant 0 : index
    %c0_7 = arith.constant 0 : index
    %c0_8 = arith.constant 0 : index
    %6 = vector.load %arg14[%c0_6, %c0_7, %c0_8] : memref<1x1x32xf32, #tpu.memory_space<vmem>>, vector<1x1x32xf32>
    %7 = vector.shape_cast %6 : vector<1x1x32xf32> to vector<1x32xf32>
    %cst = arith.constant dense<0.000000e+00> : vector<2x4xf32>
    %8 = vector.multi_reduction <add>, %3, %cst [2] : vector<2x4x32xf32> to vector<2x4xf32>
    %9 = vector.shape_cast %8 : vector<2x4xf32> to vector<2x4x1xf32>
    %cst_9 = arith.constant 3.200000e+01 : f32
    %10 = vector.broadcast %cst_9 : f32 to vector<2x4x1xf32>
    %11 = arith.divf %9, %10 : vector<2x4x1xf32>
    %12 = vector.broadcast %11 : vector<2x4x1xf32> to vector<2x4x32xf32>
    %13 = arith.subf %3, %12 : vector<2x4x32xf32>
    %14 = arith.mulf %13, %13 : vector<2x4x32xf32>
    %cst_10 = arith.constant dense<0.000000e+00> : vector<2x4xf32>
    %15 = vector.multi_reduction <add>, %14, %cst_10 [2] : vector<2x4x32xf32> to vector<2x4xf32>
    %16 = vector.shape_cast %15 : vector<2x4xf32> to vector<2x4x1xf32>
    %cst_11 = arith.constant 3.200000e+01 : f32
    %17 = vector.broadcast %cst_11 : f32 to vector<2x4x1xf32>
    %18 = arith.divf %16, %17 : vector<2x4x1xf32>
    %19 = vector.broadcast %11 : vector<2x4x1xf32> to vector<2x4x32xf32>
    %20 = arith.subf %3, %19 : vector<2x4x32xf32>
    %cst_12 = arith.constant 9.99999996E-13 : f32
    %21 = vector.broadcast %cst_12 : f32 to vector<2x4x1xf32>
    %22 = arith.addf %18, %21 : vector<2x4x1xf32>
    %23 = math.rsqrt %22 : vector<2x4x1xf32>
    %24 = vector.broadcast %23 : vector<2x4x1xf32> to vector<2x4x32xf32>
    %25 = arith.mulf %20, %24 : vector<2x4x32xf32>
    %26 = vector.shape_cast %5 : vector<1x32xf32> to vector<1x1x32xf32>
    %27 = vector.broadcast %26 : vector<1x1x32xf32> to vector<2x4x32xf32>
    %28 = arith.mulf %25, %27 : vector<2x4x32xf32>
    %29 = vector.shape_cast %7 : vector<1x32xf32> to vector<1x1x32xf32>
    %30 = vector.broadcast %29 : vector<1x1x32xf32> to vector<2x4x32xf32>
    %31 = arith.addf %28, %30 : vector<2x4x32xf32>
    %32 = vector.shape_cast %31 : vector<2x4x32xf32> to vector<8x32xf32>
    %33 = arith.truncf %32 : vector<8x32xf32> to vector<8x32xbf16>
    %c0_13 = arith.constant 0 : index
    %c0_14 = arith.constant 0 : index
    %c0_15 = arith.constant 0 : index
    %34 = vector.load %arg5[%c0_13, %c0_14, %c0_15] : memref<1x32x32xbf16, #tpu.memory_space<vmem>>, vector<1x32x32xbf16>
    %35 = vector.shape_cast %34 : vector<1x32x32xbf16> to vector<32x32xbf16>
    %cst_16 = arith.constant dense<0.000000e+00> : vector<8x32xf32>
    %36 = tpu.matmul %33, %35, %cst_16 {dimension_numbers = #tpu.dot_dimension_numbers<[1], [0], [0], [1], [0, 0, 1, 1], [], []>} : vector<8x32xbf16>, vector<32x32xbf16>, vector<8x32xf32> -> vector<8x32xf32>
    %c0_17 = arith.constant 0 : index
    %c0_18 = arith.constant 0 : index
    %c0_19 = arith.constant 0 : index
    %37 = vector.load %arg6[%c0_17, %c0_18, %c0_19] : memref<1x1x32xf32, #tpu.memory_space<vmem>>, vector<1x1x32xf32>
    %38 = vector.shape_cast %37 : vector<1x1x32xf32> to vector<1x32xf32>
    %39 = vector.broadcast %38 : vector<1x32xf32> to vector<8x32xf32>
    %40 = arith.addf %36, %39 : vector<8x32xf32>
    %41 = vector.shape_cast %40 : vector<8x32xf32> to vector<2x4x32xf32>
    %c0_20 = arith.constant 0 : index
    %c0_21 = arith.constant 0 : index
    %c0_22 = arith.constant 0 : index
    %42 = vector.load %arg7[%c0_20, %c0_21, %c0_22] : memref<1x32x32xbf16, #tpu.memory_space<vmem>>, vector<1x32x32xbf16>
    %43 = vector.shape_cast %42 : vector<1x32x32xbf16> to vector<32x32xbf16>
    %cst_23 = arith.constant dense<0.000000e+00> : vector<8x32xf32>
    %44 = tpu.matmul %33, %43, %cst_23 {dimension_numbers = #tpu.dot_dimension_numbers<[1], [0], [0], [1], [0, 0, 1, 1], [], []>} : vector<8x32xbf16>, vector<32x32xbf16>, vector<8x32xf32> -> vector<8x32xf32>
    %c0_24 = arith.constant 0 : index
    %c0_25 = arith.constant 0 : index
    %c0_26 = arith.constant 0 : index
    %45 = vector.load %arg8[%c0_24, %c0_25, %c0_26] : memref<1x1x32xf32, #tpu.memory_space<vmem>>, vector<1x1x32xf32>
    %46 = vector.shape_cast %45 : vector<1x1x32xf32> to vector<1x32xf32>
    %47 = vector.broadcast %46 : vector<1x32xf32> to vector<8x32xf32>
    %48 = arith.addf %44, %47 : vector<8x32xf32>
    %49 = vector.shape_cast %48 : vector<8x32xf32> to vector<2x4x32xf32>
    %c0_27 = arith.constant 0 : index
    %c0_28 = arith.constant 0 : index
    %c0_29 = arith.constant 0 : index
    %50 = vector.load %arg9[%c0_27, %c0_28, %c0_29] : memref<1x32x32xbf16, #tpu.memory_space<vmem>>, vector<1x32x32xbf16>
    %51 = vector.shape_cast %50 : vector<1x32x32xbf16> to vector<32x32xbf16>
    %cst_30 = arith.constant dense<0.000000e+00> : vector<8x32xf32>
    %52 = tpu.matmul %33, %51, %cst_30 {dimension_numbers = #tpu.dot_dimension_numbers<[1], [0], [0], [1], [0, 0, 1, 1], [], []>} : vector<8x32xbf16>, vector<32x32xbf16>, vector<8x32xf32> -> vector<8x32xf32>
    %c0_31 = arith.constant 0 : index
    %c0_32 = arith.constant 0 : index
    %c0_33 = arith.constant 0 : index
    %53 = vector.load %arg10[%c0_31, %c0_32, %c0_33] : memref<1x1x32xf32, #tpu.memory_space<vmem>>, vector<1x1x32xf32>
    %54 = vector.shape_cast %53 : vector<1x1x32xf32> to vector<1x32xf32>
    %55 = vector.broadcast %54 : vector<1x32xf32> to vector<8x32xf32>
    %56 = arith.addf %52, %55 : vector<8x32xf32>
    %57 = vector.shape_cast %56 : vector<8x32xf32> to vector<2x4x32xf32>
    %58 = vector.extract_strided_slice %41 {offsets = [0, 0, 0], sizes = [2, 4, 16], strides = [1, 1, 1]} : vector<2x4x32xf32> to vector<2x4x16xf32>
    %59 = arith.truncf %58 : vector<2x4x16xf32> to vector<2x4x16xbf16>
    %60 = vector.extract_strided_slice %49 {offsets = [0, 0, 0], sizes = [2, 4, 16], strides = [1, 1, 1]} : vector<2x4x32xf32> to vector<2x4x16xf32>
    %61 = arith.truncf %60 : vector<2x4x16xf32> to vector<2x4x16xbf16>
    %62 = vector.extract_strided_slice %57 {offsets = [0, 0, 0], sizes = [2, 4, 16], strides = [1, 1, 1]} : vector<2x4x32xf32> to vector<2x4x16xf32>
    %63 = arith.truncf %62 : vector<2x4x16xf32> to vector<2x4x16xbf16>
    "tpu.trace_start"() <{level = 10 : i32, message = "bqe,bke->bqk"}> : () -> ()
    %cst_34 = arith.constant dense<0.000000e+00> : vector<2x4x4xf32>
    %64 = tpu.matmul %59, %61, %cst_34 {dimension_numbers = #tpu.dot_dimension_numbers<[2], [2], [1], [1], [0, 0, 0, 1, 1, 1], [0], [0]>} : vector<2x4x16xbf16>, vector<2x4x16xbf16>, vector<2x4x4xf32> -> vector<2x4x4xf32>
    "tpu.trace_stop"() : () -> ()
    %cst_35 = arith.constant 2.500000e-01 : f32
    %65 = vector.broadcast %cst_35 : f32 to vector<2x4x4xf32>
    %66 = arith.mulf %64, %65 : vector<2x4x4xf32>
    %cst_36 = arith.constant dense<0xFF800000> : vector<2x4xf32>
    %67 = vector.multi_reduction <maximumf>, %66, %cst_36 [2] : vector<2x4x4xf32> to vector<2x4xf32>
    %68 = vector.shape_cast %67 : vector<2x4xf32> to vector<2x4x1xf32>
    %69 = vector.broadcast %68 : vector<2x4x1xf32> to vector<2x4x4xf32>
    %70 = arith.subf %66, %69 : vector<2x4x4xf32>
    %71 = math.exp %70 : vector<2x4x4xf32>
    %cst_37 = arith.constant dense<0.000000e+00> : vector<2x4xf32>
    %72 = vector.multi_reduction <add>, %71, %cst_37 [2] : vector<2x4x4xf32> to vector<2x4xf32>
    %73 = vector.shape_cast %72 : vector<2x4xf32> to vector<2x4x1xf32>
    %74 = tpu.reciprocal %73 {approx = true} : vector<2x4x1xf32> -> vector<2x4x1xf32>
    %75 = vector.broadcast %74 : vector<2x4x1xf32> to vector<2x4x4xf32>
    %76 = arith.mulf %71, %75 : vector<2x4x4xf32>
    %77 = arith.truncf %76 : vector<2x4x4xf32> to vector<2x4x4xbf16>
    "tpu.trace_start"() <{level = 10 : i32, message = "bqk,bke->bqe"}> : () -> ()
    %cst_38 = arith.constant dense<0.000000e+00> : vector<2x4x16xf32>
    %78 = tpu.matmul %77, %63, %cst_38 {dimension_numbers = #tpu.dot_dimension_numbers<[2], [1], [1], [2], [0, 0, 0, 1, 1, 2], [0], [0]>} : vector<2x4x4xbf16>, vector<2x4x16xbf16>, vector<2x4x16xf32> -> vector<2x4x16xf32>
    "tpu.trace_stop"() : () -> ()
    %79 = vector.extract_strided_slice %41 {offsets = [0, 0, 16], sizes = [2, 4, 16], strides = [1, 1, 1]} : vector<2x4x32xf32> to vector<2x4x16xf32>
    %80 = arith.truncf %79 : vector<2x4x16xf32> to vector<2x4x16xbf16>
    %81 = vector.extract_strided_slice %49 {offsets = [0, 0, 16], sizes = [2, 4, 16], strides = [1, 1, 1]} : vector<2x4x32xf32> to vector<2x4x16xf32>
    %82 = arith.truncf %81 : vector<2x4x16xf32> to vector<2x4x16xbf16>
    %83 = vector.extract_strided_slice %57 {offsets = [0, 0, 16], sizes = [2, 4, 16], strides = [1, 1, 1]} : vector<2x4x32xf32> to vector<2x4x16xf32>
    %84 = arith.truncf %83 : vector<2x4x16xf32> to vector<2x4x16xbf16>
    "tpu.trace_start"() <{level = 10 : i32, message = "bqe,bke->bqk"}> : () -> ()
    %cst_39 = arith.constant dense<0.000000e+00> : vector<2x4x4xf32>
    %85 = tpu.matmul %80, %82, %cst_39 {dimension_numbers = #tpu.dot_dimension_numbers<[2], [2], [1], [1], [0, 0, 0, 1, 1, 1], [0], [0]>} : vector<2x4x16xbf16>, vector<2x4x16xbf16>, vector<2x4x4xf32> -> vector<2x4x4xf32>
    "tpu.trace_stop"() : () -> ()
    %cst_40 = arith.constant 2.500000e-01 : f32
    %86 = vector.broadcast %cst_40 : f32 to vector<2x4x4xf32>
    %87 = arith.mulf %85, %86 : vector<2x4x4xf32>
    %cst_41 = arith.constant dense<0xFF800000> : vector<2x4xf32>
    %88 = vector.multi_reduction <maximumf>, %87, %cst_41 [2] : vector<2x4x4xf32> to vector<2x4xf32>
    %89 = vector.shape_cast %88 : vector<2x4xf32> to vector<2x4x1xf32>
    %90 = vector.broadcast %89 : vector<2x4x1xf32> to vector<2x4x4xf32>
    %91 = arith.subf %87, %90 : vector<2x4x4xf32>
    %92 = math.exp %91 : vector<2x4x4xf32>
    %cst_42 = arith.constant dense<0.000000e+00> : vector<2x4xf32>
    %93 = vector.multi_reduction <add>, %92, %cst_42 [2] : vector<2x4x4xf32> to vector<2x4xf32>
    %94 = vector.shape_cast %93 : vector<2x4xf32> to vector<2x4x1xf32>
    %95 = tpu.reciprocal %94 {approx = true} : vector<2x4x1xf32> -> vector<2x4x1xf32>
    %96 = vector.broadcast %95 : vector<2x4x1xf32> to vector<2x4x4xf32>
    %97 = arith.mulf %92, %96 : vector<2x4x4xf32>
    %98 = arith.truncf %97 : vector<2x4x4xf32> to vector<2x4x4xbf16>
    "tpu.trace_start"() <{level = 10 : i32, message = "bqk,bke->bqe"}> : () -> ()
    %cst_43 = arith.constant dense<0.000000e+00> : vector<2x4x16xf32>
    %99 = tpu.matmul %98, %84, %cst_43 {dimension_numbers = #tpu.dot_dimension_numbers<[2], [1], [1], [2], [0, 0, 0, 1, 1, 2], [0], [0]>} : vector<2x4x4xbf16>, vector<2x4x16xbf16>, vector<2x4x16xf32> -> vector<2x4x16xf32>
    "tpu.trace_stop"() : () -> ()
    %100 = tpu.concatenate %78, %99 in 2 : vector<2x4x16xf32>, vector<2x4x16xf32> -> vector<2x4x32xf32>
    %101 = vector.shape_cast %100 : vector<2x4x32xf32> to vector<8x32xf32>
    %102 = arith.truncf %101 : vector<8x32xf32> to vector<8x32xbf16>
    %c0_44 = arith.constant 0 : index
    %c0_45 = arith.constant 0 : index
    %c0_46 = arith.constant 0 : index
    %103 = vector.load %arg11[%c0_44, %c0_45, %c0_46] : memref<1x32x32xbf16, #tpu.memory_space<vmem>>, vector<1x32x32xbf16>
    %104 = vector.shape_cast %103 : vector<1x32x32xbf16> to vector<32x32xbf16>
    %cst_47 = arith.constant dense<0.000000e+00> : vector<8x32xf32>
    %105 = tpu.matmul %102, %104, %cst_47 {dimension_numbers = #tpu.dot_dimension_numbers<[1], [0], [0], [1], [0, 0, 1, 1], [], []>} : vector<8x32xbf16>, vector<32x32xbf16>, vector<8x32xf32> -> vector<8x32xf32>
    %c0_48 = arith.constant 0 : index
    %c0_49 = arith.constant 0 : index
    %c0_50 = arith.constant 0 : index
    %106 = vector.load %arg12[%c0_48, %c0_49, %c0_50] : memref<1x1x32xf32, #tpu.memory_space<vmem>>, vector<1x1x32xf32>
    %107 = vector.shape_cast %106 : vector<1x1x32xf32> to vector<1x32xf32>
    %108 = vector.broadcast %107 : vector<1x32xf32> to vector<8x32xf32>
    %109 = arith.addf %105, %108 : vector<8x32xf32>
    %110 = vector.shape_cast %109 : vector<8x32xf32> to vector<2x4x32xf32>
    %111 = arith.addf %3, %110 : vector<2x4x32xf32>
    %c0_51 = arith.constant 0 : index
    %c0_52 = arith.constant 0 : index
    %c0_53 = arith.constant 0 : index
    %112 = vector.load %arg15[%c0_51, %c0_52, %c0_53] : memref<1x1x32xf32, #tpu.memory_space<vmem>>, vector<1x1x32xf32>
    %113 = vector.shape_cast %112 : vector<1x1x32xf32> to vector<1x32xf32>
    %c0_54 = arith.constant 0 : index
    %c0_55 = arith.constant 0 : index
    %c0_56 = arith.constant 0 : index
    %114 = vector.load %arg16[%c0_54, %c0_55, %c0_56] : memref<1x1x32xf32, #tpu.memory_space<vmem>>, vector<1x1x32xf32>
    %115 = vector.shape_cast %114 : vector<1x1x32xf32> to vector<1x32xf32>
    %cst_57 = arith.constant dense<0.000000e+00> : vector<2x4xf32>
    %116 = vector.multi_reduction <add>, %111, %cst_57 [2] : vector<2x4x32xf32> to vector<2x4xf32>
    %117 = vector.shape_cast %116 : vector<2x4xf32> to vector<2x4x1xf32>
    %cst_58 = arith.constant 3.200000e+01 : f32
    %118 = vector.broadcast %cst_58 : f32 to vector<2x4x1xf32>
    %119 = arith.divf %117, %118 : vector<2x4x1xf32>
    %120 = vector.broadcast %119 : vector<2x4x1xf32> to vector<2x4x32xf32>
    %121 = arith.subf %111, %120 : vector<2x4x32xf32>
    %122 = arith.mulf %121, %121 : vector<2x4x32xf32>
    %cst_59 = arith.constant dense<0.000000e+00> : vector<2x4xf32>
    %123 = vector.multi_reduction <add>, %122, %cst_59 [2] : vector<2x4x32xf32> to vector<2x4xf32>
    %124 = vector.shape_cast %123 : vector<2x4xf32> to vector<2x4x1xf32>
    %cst_60 = arith.constant 3.200000e+01 : f32
    %125 = vector.broadcast %cst_60 : f32 to vector<2x4x1xf32>
    %126 = arith.divf %124, %125 : vector<2x4x1xf32>
    %127 = vector.broadcast %119 : vector<2x4x1xf32> to vector<2x4x32xf32>
    %128 = arith.subf %111, %127 : vector<2x4x32xf32>
    %cst_61 = arith.constant 9.99999996E-13 : f32
    %129 = vector.broadcast %cst_61 : f32 to vector<2x4x1xf32>
    %130 = arith.addf %126, %129 : vector<2x4x1xf32>
    %131 = math.rsqrt %130 : vector<2x4x1xf32>
    %132 = vector.broadcast %131 : vector<2x4x1xf32> to vector<2x4x32xf32>
    %133 = arith.mulf %128, %132 : vector<2x4x32xf32>
    %134 = vector.shape_cast %113 : vector<1x32xf32> to vector<1x1x32xf32>
    %135 = vector.broadcast %134 : vector<1x1x32xf32> to vector<2x4x32xf32>
    %136 = arith.mulf %133, %135 : vector<2x4x32xf32>
    %137 = vector.shape_cast %115 : vector<1x32xf32> to vector<1x1x32xf32>
    %138 = vector.broadcast %137 : vector<1x1x32xf32> to vector<2x4x32xf32>
    %139 = arith.addf %136, %138 : vector<2x4x32xf32>
    %140 = vector.shape_cast %139 : vector<2x4x32xf32> to vector<8x32xf32>
    %141 = arith.truncf %140 : vector<8x32xf32> to vector<8x32xbf16>
    %c0_62 = arith.constant 0 : index
    %c0_63 = arith.constant 0 : index
    %c0_64 = arith.constant 0 : index
    %142 = vector.load %arg17[%c0_62, %c0_63, %c0_64] : memref<1x32x64xbf16, #tpu.memory_space<vmem>>, vector<1x32x64xbf16>
    %143 = vector.shape_cast %142 : vector<1x32x64xbf16> to vector<32x64xbf16>
    %cst_65 = arith.constant dense<0.000000e+00> : vector<8x64xf32>
    %144 = tpu.matmul %141, %143, %cst_65 {dimension_numbers = #tpu.dot_dimension_numbers<[1], [0], [0], [1], [0, 0, 1, 1], [], []>} : vector<8x32xbf16>, vector<32x64xbf16>, vector<8x64xf32> -> vector<8x64xf32>
    %c0_66 = arith.constant 0 : index
    %c0_67 = arith.constant 0 : index
    %c0_68 = arith.constant 0 : index
    %145 = vector.load %arg18[%c0_66, %c0_67, %c0_68] : memref<1x1x64xf32, #tpu.memory_space<vmem>>, vector<1x1x64xf32>
    %146 = vector.shape_cast %145 : vector<1x1x64xf32> to vector<1x64xf32>
    %147 = vector.broadcast %146 : vector<1x64xf32> to vector<8x64xf32>
    %148 = arith.addf %144, %147 : vector<8x64xf32>
    %cst_69 = arith.constant 5.000000e-01 : f32
    %149 = vector.broadcast %cst_69 : f32 to vector<8x64xf32>
    %150 = arith.mulf %149, %148 : vector<8x64xf32>
    %cst_70 = arith.constant 4.471500e-02 : f32
    %151 = vector.broadcast %cst_70 : f32 to vector<8x64xf32>
    %152 = arith.mulf %151, %148 : vector<8x64xf32>
    %153 = arith.mulf %152, %148 : vector<8x64xf32>
    %154 = arith.mulf %153, %148 : vector<8x64xf32>
    %155 = arith.addf %148, %154 : vector<8x64xf32>
    %cst_71 = arith.constant 0.797884583 : f32
    %156 = vector.broadcast %cst_71 : f32 to vector<8x64xf32>
    %157 = arith.mulf %156, %155 : vector<8x64xf32>
    %158 = math.tanh %157 : vector<8x64xf32>
    %cst_72 = arith.constant 1.000000e+00 : f32
    %159 = vector.broadcast %cst_72 : f32 to vector<8x64xf32>
    %160 = arith.addf %159, %158 : vector<8x64xf32>
    %161 = arith.mulf %150, %160 : vector<8x64xf32>
    %162 = arith.truncf %161 : vector<8x64xf32> to vector<8x64xbf16>
    %c0_73 = arith.constant 0 : index
    %c0_74 = arith.constant 0 : index
    %c0_75 = arith.constant 0 : index
    %163 = vector.load %arg19[%c0_73, %c0_74, %c0_75] : memref<1x64x32xbf16, #tpu.memory_space<vmem>>, vector<1x64x32xbf16>
    %164 = vector.shape_cast %163 : vector<1x64x32xbf16> to vector<64x32xbf16>
    %cst_76 = arith.constant dense<0.000000e+00> : vector<8x32xf32>
    %165 = tpu.matmul %162, %164, %cst_76 {dimension_numbers = #tpu.dot_dimension_numbers<[1], [0], [0], [1], [0, 0, 1, 1], [], []>} : vector<8x64xbf16>, vector<64x32xbf16>, vector<8x32xf32> -> vector<8x32xf32>
    %c0_77 = arith.constant 0 : index
    %c0_78 = arith.constant 0 : index
    %c0_79 = arith.constant 0 : index
    %166 = vector.load %arg20[%c0_77, %c0_78, %c0_79] : memref<1x1x32xf32, #tpu.memory_space<vmem>>, vector<1x1x32xf32>
    %167 = vector.shape_cast %166 : vector<1x1x32xf32> to vector<1x32xf32>
    %168 = vector.broadcast %167 : vector<1x32xf32> to vector<8x32xf32>
    %169 = arith.addf %165, %168 : vector<8x32xf32>
    %170 = vector.shape_cast %169 : vector<8x32xf32> to vector<2x4x32xf32>
    %171 = arith.addf %111, %170 : vector<2x4x32xf32>
    %c0_80 = arith.constant 0 : index
    %c0_81 = arith.constant 0 : index
    %c0_82 = arith.constant 0 : index
    %172 = vector.load %arg22[%c0_80, %c0_81, %c0_82] : memref<2x4x32xf32, #tpu.memory_space<vmem>>, vector<2x4x32xf32>
    tpu.vector_store %arg22[%c0_80, %c0_81, %c0_82], %171 {strides = array<i32>} : memref<2x4x32xf32, #tpu.memory_space<vmem>>, vector<2x4x32xf32>,
    %c1_i32 = arith.constant 1 : i32
    %173 = arith.cmpi eq, %arg0, %c1_i32 : i32
    %174 = arith.extui %173 : i1 to i32
    %c0_i32_83 = arith.constant 0 : i32
    %175 = arith.cmpi ne, %174, %c0_i32_83 : i32
    scf.if %175 {
      %c0_84 = arith.constant 0 : index
      %c0_85 = arith.constant 0 : index
      %c0_86 = arith.constant 0 : index
      %176 = vector.load %arg22[%c0_84, %c0_85, %c0_86] : memref<2x4x32xf32, #tpu.memory_space<vmem>>, vector<2x4x32xf32>
      %c0_87 = arith.constant 0 : index
      %c0_88 = arith.constant 0 : index
      %c0_89 = arith.constant 0 : index
      %177 = vector.load %arg21[%c0_87, %c0_88, %c0_89] : memref<2x4x32xf32, #tpu.memory_space<vmem>>, vector<2x4x32xf32>
      tpu.vector_store %arg21[%c0_87, %c0_88, %c0_89], %176 {strides = array<i32>} : memref<2x4x32xf32, #tpu.memory_space<vmem>>, vector<2x4x32xf32>,
    } else {
    }
    return
  }
  func.func @transform_0(%arg0: i32) -> (i32, i32, i32) {
    %c0_i32 = arith.constant 0 : i32
    %c0_i32_0 = arith.constant 0 : i32
    %c0_i32_1 = arith.constant 0 : i32
    %c0_i32_2 = arith.constant 0 : i32
    return %c0_i32, %c0_i32_0, %c0_i32_1 : i32, i32, i32
  }
  func.func @transform_1(%arg0: i32) -> (i32, i32) {
    %c0_i32 = arith.constant 0 : i32
    %c0_i32_0 = arith.constant 0 : i32
    %c0_i32_1 = arith.constant 0 : i32
    return %c0_i32, %c0_i32_0 : i32, i32
  }
  func.func @transform_2(%arg0: i32) -> (i32, i32) {
    %c0_i32 = arith.constant 0 : i32
    %c0_i32_0 = arith.constant 0 : i32
    %c0_i32_1 = arith.constant 0 : i32
    return %c0_i32, %c0_i32_0 : i32, i32
  }
  func.func @transform_3(%arg0: i32) -> (i32, i32, i32) {
    %c0_i32 = arith.constant 0 : i32
    %c0_i32_0 = arith.constant 0 : i32
    %c0_i32_1 = arith.constant 0 : i32
    %c0_i32_2 = arith.constant 0 : i32
    return %c0_i32, %c0_i32_0, %c0_i32_1 : i32, i32, i32
  }
  func.func @transform_4(%arg0: i32) -> (i32, i32, i32) {
    %c0_i32 = arith.constant 0 : i32
    %c0_i32_0 = arith.constant 0 : i32
    %c0_i32_1 = arith.constant 0 : i32
    return %arg0, %c0_i32, %c0_i32_0 : i32, i32, i32
  }
  func.func @transform_5(%arg0: i32) -> (i32, i32, i32) {
    %c0_i32 = arith.constant 0 : i32
    %c0_i32_0 = arith.constant 0 : i32
    %c0_i32_1 = arith.constant 0 : i32
    return %arg0, %c0_i32, %c0_i32_0 : i32, i32, i32
  }
  func.func @transform_6(%arg0: i32) -> (i32, i32, i32) {
    %c0_i32 = arith.constant 0 : i32
    %c0_i32_0 = arith.constant 0 : i32
    %c0_i32_1 = arith.constant 0 : i32
    return %arg0, %c0_i32, %c0_i32_0 : i32, i32, i32
  }
  func.func @transform_7(%arg0: i32) -> (i32, i32, i32) {
    %c0_i32 = arith.constant 0 : i32
    %c0_i32_0 = arith.constant 0 : i32
    %c0_i32_1 = arith.constant 0 : i32
    return %arg0, %c0_i32, %c0_i32_0 : i32, i32, i32
  }
  func.func @transform_8(%arg0: i32) -> (i32, i32, i32) {
    %c0_i32 = arith.constant 0 : i32
    %c0_i32_0 = arith.constant 0 : i32
    %c0_i32_1 = arith.constant 0 : i32
    return %arg0, %c0_i32, %c0_i32_0 : i32, i32, i32
  }
  func.func @transform_9(%arg0: i32) -> (i32, i32, i32) {
    %c0_i32 = arith.constant 0 : i32
    %c0_i32_0 = arith.constant 0 : i32
    %c0_i32_1 = arith.constant 0 : i32
    return %arg0, %c0_i32, %c0_i32_0 : i32, i32, i32
  }
  func.func @transform_10(%arg0: i32) -> (i32, i32, i32) {
    %c0_i32 = arith.constant 0 : i32
    %c0_i32_0 = arith.constant 0 : i32
    %c0_i32_1 = arith.constant 0 : i32
    return %arg0, %c0_i32, %c0_i32_0 : i32, i32, i32
  }
  func.func @transform_11(%arg0: i32) -> (i32, i32, i32) {
    %c0_i32 = arith.constant 0 : i32
    %c0_i32_0 = arith.constant 0 : i32
    %c0_i32_1 = arith.constant 0 : i32
    return %arg0, %c0_i32, %c0_i32_0 : i32, i32, i32
  }
  func.func @transform_12(%arg0: i32) -> (i32, i32, i32) {
    %c0_i32 = arith.constant 0 : i32
    %c0_i32_0 = arith.constant 0 : i32
    %c0_i32_1 = arith.constant 0 : i32
    return %arg0, %c0_i32, %c0_i32_0 : i32, i32, i32
  }
  func.func @transform_13(%arg0: i32) -> (i32, i32, i32) {
    %c0_i32 = arith.constant 0 : i32
    %c0_i32_0 = arith.constant 0 : i32
    %c0_i32_1 = arith.constant 0 : i32
    return %arg0, %c0_i32, %c0_i32_0 : i32, i32, i32
  }
  func.func @transform_14(%arg0: i32) -> (i32, i32, i32) {
    %c0_i32 = arith.constant 0 : i32
    %c0_i32_0 = arith.constant 0 : i32
    %c0_i32_1 = arith.constant 0 : i32
    return %arg0, %c0_i32, %c0_i32_0 : i32, i32, i32
  }
  func.func @transform_15(%arg0: i32) -> (i32, i32, i32) {
    %c0_i32 = arith.constant 0 : i32
    %c0_i32_0 = arith.constant 0 : i32
    %c0_i32_1 = arith.constant 0 : i32
    return %arg0, %c0_i32, %c0_i32_0 : i32, i32, i32
  }
  func.func @transform_16(%arg0: i32) -> (i32, i32, i32) {
    %c0_i32 = arith.constant 0 : i32
    %c0_i32_0 = arith.constant 0 : i32
    %c0_i32_1 = arith.constant 0 : i32
    return %arg0, %c0_i32, %c0_i32_0 : i32, i32, i32
  }
  func.func @transform_17(%arg0: i32) -> (i32, i32, i32) {
    %c0_i32 = arith.constant 0 : i32
    %c0_i32_0 = arith.constant 0 : i32
    %c0_i32_1 = arith.constant 0 : i32
    return %arg0, %c0_i32, %c0_i32_0 : i32, i32, i32
  }
  func.func @transform_18(%arg0: i32) -> (i32, i32, i32) {
    %c0_i32 = arith.constant 0 : i32
    %c0_i32_0 = arith.constant 0 : i32
    %c0_i32_1 = arith.constant 0 : i32
    return %arg0, %c0_i32, %c0_i32_0 : i32, i32, i32
  }
  func.func @transform_19(%arg0: i32) -> (i32, i32, i32) {
    %c0_i32 = arith.constant 0 : i32
    %c0_i32_0 = arith.constant 0 : i32
    %c0_i32_1 = arith.constant 0 : i32
    return %arg0, %c0_i32, %c0_i32_0 : i32, i32, i32
  }
  func.func @transform_20(%arg0: i32) -> (i32, i32, i32) {
    %c0_i32 = arith.constant 0 : i32
    %c0_i32_0 = arith.constant 0 : i32
    %c0_i32_1 = arith.constant 0 : i32
    %c0_i32_2 = arith.constant 0 : i32
    return %c0_i32, %c0_i32_0, %c0_i32_1 : i32, i32, i32
  }
}

module attributes {stable_mosaic.version = 11 : i64} {
  func.func @decoder_stack_kernel(%arg0: i32, %arg1: memref<2x4x32xf32, #tpu.memory_space<vmem>>, %arg2: memref<32x16xbf16, #tpu.memory_space<vmem>>, %arg3: memref<2x4x16xf32, #tpu.memory_space<vmem>>, %arg4: memref<2x4x16xf32, #tpu.memory_space<vmem>>, %arg5: memref<1x16xf32, #tpu.memory_space<vmem>>, %arg6: memref<1x16x16xbf16, #tpu.memory_space<vmem>>, %arg7: memref<1x1x16xf32, #tpu.memory_space<vmem>>, %arg8: memref<1x16x16xbf16, #tpu.memory_space<vmem>>, %arg9: memref<1x1x16xf32, #tpu.memory_space<vmem>>, %arg10: memref<1x16x16xbf16, #tpu.memory_space<vmem>>, %arg11: memref<1x1x16xf32, #tpu.memory_space<vmem>>, %arg12: memref<1x16x16xbf16, #tpu.memory_space<vmem>>, %arg13: memref<1x1x16xf32, #tpu.memory_space<vmem>>, %arg14: memref<1x1x16xf32, #tpu.memory_space<vmem>>, %arg15: memref<1x1x16xf32, #tpu.memory_space<vmem>>, %arg16: memref<1x1x16xf32, #tpu.memory_space<vmem>>, %arg17: memref<1x1x16xf32, #tpu.memory_space<vmem>>, %arg18: memref<1x16x32xbf16, #tpu.memory_space<vmem>>, %arg19: memref<1x1x32xf32, #tpu.memory_space<vmem>>, %arg20: memref<1x32x16xbf16, #tpu.memory_space<vmem>>, %arg21: memref<1x1x16xf32, #tpu.memory_space<vmem>>, %arg22: memref<2x4x16xf32, #tpu.memory_space<vmem>>, %arg23: memref<2x8x16xf32, #tpu.memory_space<vmem>>) attributes {dimension_semantics = [#tpu.dimension_semantics<arbitrary>], iteration_bounds = array<i64: 1>, scalar_prefetch = 0 : i64, scratch_operands = 1 : i64, tpu.core_type = #tpu.core_type<tc>, window_params = [{pipeline_mode = #tpu.pipeline_mode<synchronous>, transform_indices = @transform_0, window_bounds = array<i64: 2, 4, 32>}, {pipeline_mode = #tpu.pipeline_mode<synchronous>, transform_indices = @transform_1, window_bounds = array<i64: 32, 16>}, {pipeline_mode = #tpu.pipeline_mode<synchronous>, transform_indices = @transform_2, window_bounds = array<i64: 2, 4, 16>}, {pipeline_mode = #tpu.pipeline_mode<synchronous>, transform_indices = @transform_3, window_bounds = array<i64: 2, 4, 16>}, {pipeline_mode = #tpu.pipeline_mode<synchronous>, transform_indices = @transform_4, window_bounds = array<i64: 1, 16>}, {transform_indices = @transform_5, window_bounds = array<i64: 1, 16, 16>}, {transform_indices = @transform_6, window_bounds = array<i64: 1, 1, 16>}, {transform_indices = @transform_7, window_bounds = array<i64: 1, 16, 16>}, {transform_indices = @transform_8, window_bounds = array<i64: 1, 1, 16>}, {transform_indices = @transform_9, window_bounds = array<i64: 1, 16, 16>}, {transform_indices = @transform_10, window_bounds = array<i64: 1, 1, 16>}, {transform_indices = @transform_11, window_bounds = array<i64: 1, 16, 16>}, {transform_indices = @transform_12, window_bounds = array<i64: 1, 1, 16>}, {transform_indices = @transform_13, window_bounds = array<i64: 1, 1, 16>}, {transform_indices = @transform_14, window_bounds = array<i64: 1, 1, 16>}, {transform_indices = @transform_15, window_bounds = array<i64: 1, 1, 16>}, {transform_indices = @transform_16, window_bounds = array<i64: 1, 1, 16>}, {transform_indices = @transform_17, window_bounds = array<i64: 1, 16, 32>}, {transform_indices = @transform_18, window_bounds = array<i64: 1, 1, 32>}, {transform_indices = @transform_19, window_bounds = array<i64: 1, 32, 16>}, {transform_indices = @transform_20, window_bounds = array<i64: 1, 1, 16>}, {pipeline_mode = #tpu.pipeline_mode<synchronous>, transform_indices = @transform_21, window_bounds = array<i64: 2, 4, 16>}]} {
    %c0_i32 = arith.constant 0 : i32
    %0 = arith.cmpi eq, %arg0, %c0_i32 : i32
    %1 = arith.extui %0 : i1 to i32
    %c0_i32_0 = arith.constant 0 : i32
    %2 = arith.cmpi ne, %1, %c0_i32_0 : i32
    scf.if %2 {
      %c0_85 = arith.constant 0 : index
      %c0_86 = arith.constant 0 : index
      %c0_87 = arith.constant 0 : index
      %176 = vector.load %arg1[%c0_85, %c0_86, %c0_87] : memref<2x4x32xf32, #tpu.memory_space<vmem>>, vector<2x4x32xf32>
      %177 = vector.shape_cast %176 : vector<2x4x32xf32> to vector<8x32xf32>
      %178 = arith.truncf %177 : vector<8x32xf32> to vector<8x32xbf16>
      %c0_88 = arith.constant 0 : index
      %c0_89 = arith.constant 0 : index
      %179 = vector.load %arg2[%c0_88, %c0_89] : memref<32x16xbf16, #tpu.memory_space<vmem>>, vector<32x16xbf16>
      %cst_90 = arith.constant dense<0.000000e+00> : vector<8x16xf32>
      %180 = tpu.matmul %178, %179, %cst_90 {dimension_numbers = #tpu.dot_dimension_numbers<[1], [0], [0], [1], [0, 0, 1, 1], [], []>} : vector<8x32xbf16>, vector<32x16xbf16>, vector<8x16xf32> -> vector<8x16xf32>
      %181 = vector.shape_cast %180 : vector<8x16xf32> to vector<2x4x16xf32>
      %c0_91 = arith.constant 0 : index
      %c0_92 = arith.constant 0 : index
      %c0_93 = arith.constant 0 : index
      %182 = vector.load %arg3[%c0_91, %c0_92, %c0_93] : memref<2x4x16xf32, #tpu.memory_space<vmem>>, vector<2x4x16xf32>
      %183 = arith.addf %181, %182 : vector<2x4x16xf32>
      %c0_94 = arith.constant 0 : index
      %c0_95 = arith.constant 0 : index
      %c0_96 = arith.constant 0 : index
      %184 = vector.load %arg23[%c0_94, %c0_95, %c0_96] : memref<2x8x16xf32, #tpu.memory_space<vmem>>, vector<2x4x16xf32>
      tpu.vector_store %arg23[%c0_94, %c0_95, %c0_96], %183 {strides = array<i32>} : memref<2x8x16xf32, #tpu.memory_space<vmem>>, vector<2x4x16xf32>,
      %c0_97 = arith.constant 0 : index
      %c0_98 = arith.constant 0 : index
      %185 = vector.load %arg5[%c0_97, %c0_98] : memref<1x16xf32, #tpu.memory_space<vmem>>, vector<1x16xf32>
      %c0_99 = arith.constant 0 : index
      %c0_100 = arith.constant 0 : index
      %c0_101 = arith.constant 0 : index
      %186 = vector.load %arg4[%c0_99, %c0_100, %c0_101] : memref<2x4x16xf32, #tpu.memory_space<vmem>>, vector<2x4x16xf32>
      %187 = vector.shape_cast %185 : vector<1x16xf32> to vector<1x1x16xf32>
      %188 = vector.broadcast %187 : vector<1x1x16xf32> to vector<2x4x16xf32>
      %189 = arith.addf %188, %186 : vector<2x4x16xf32>
      %c0_102 = arith.constant 0 : index
      %c4 = arith.constant 4 : index
      %c0_103 = arith.constant 0 : index
      %190 = vector.load %arg23[%c0_102, %c4, %c0_103] : memref<2x8x16xf32, #tpu.memory_space<vmem>>, vector<2x4x16xf32>
      tpu.vector_store %arg23[%c0_102, %c4, %c0_103], %189 {strides = array<i32>} : memref<2x8x16xf32, #tpu.memory_space<vmem>>, vector<2x4x16xf32>,
    } else {
    }
    %c0 = arith.constant 0 : index
    %c0_1 = arith.constant 0 : index
    %c0_2 = arith.constant 0 : index
    %3 = vector.load %arg23[%c0, %c0_1, %c0_2] : memref<2x8x16xf32, #tpu.memory_space<vmem>>, vector<2x8x16xf32>
    %c0_3 = arith.constant 0 : index
    %c0_4 = arith.constant 0 : index
    %c0_5 = arith.constant 0 : index
    %4 = vector.load %arg14[%c0_3, %c0_4, %c0_5] : memref<1x1x16xf32, #tpu.memory_space<vmem>>, vector<1x1x16xf32>
    %5 = vector.shape_cast %4 : vector<1x1x16xf32> to vector<1x16xf32>
    %c0_6 = arith.constant 0 : index
    %c0_7 = arith.constant 0 : index
    %c0_8 = arith.constant 0 : index
    %6 = vector.load %arg15[%c0_6, %c0_7, %c0_8] : memref<1x1x16xf32, #tpu.memory_space<vmem>>, vector<1x1x16xf32>
    %7 = vector.shape_cast %6 : vector<1x1x16xf32> to vector<1x16xf32>
    %cst = arith.constant dense<0.000000e+00> : vector<2x8xf32>
    %8 = vector.multi_reduction <add>, %3, %cst [2] : vector<2x8x16xf32> to vector<2x8xf32>
    %9 = vector.shape_cast %8 : vector<2x8xf32> to vector<2x8x1xf32>
    %cst_9 = arith.constant 1.600000e+01 : f32
    %10 = vector.broadcast %cst_9 : f32 to vector<2x8x1xf32>
    %11 = arith.divf %9, %10 : vector<2x8x1xf32>
    %12 = vector.broadcast %11 : vector<2x8x1xf32> to vector<2x8x16xf32>
    %13 = arith.subf %3, %12 : vector<2x8x16xf32>
    %14 = arith.mulf %13, %13 : vector<2x8x16xf32>
    %cst_10 = arith.constant dense<0.000000e+00> : vector<2x8xf32>
    %15 = vector.multi_reduction <add>, %14, %cst_10 [2] : vector<2x8x16xf32> to vector<2x8xf32>
    %16 = vector.shape_cast %15 : vector<2x8xf32> to vector<2x8x1xf32>
    %cst_11 = arith.constant 1.600000e+01 : f32
    %17 = vector.broadcast %cst_11 : f32 to vector<2x8x1xf32>
    %18 = arith.divf %16, %17 : vector<2x8x1xf32>
    %19 = vector.broadcast %11 : vector<2x8x1xf32> to vector<2x8x16xf32>
    %20 = arith.subf %3, %19 : vector<2x8x16xf32>
    %cst_12 = arith.constant 9.99999996E-13 : f32
    %21 = vector.broadcast %cst_12 : f32 to vector<2x8x1xf32>
    %22 = arith.addf %18, %21 : vector<2x8x1xf32>
    %23 = math.rsqrt %22 : vector<2x8x1xf32>
    %24 = vector.broadcast %23 : vector<2x8x1xf32> to vector<2x8x16xf32>
    %25 = arith.mulf %20, %24 : vector<2x8x16xf32>
    %26 = vector.shape_cast %5 : vector<1x16xf32> to vector<1x1x16xf32>
    %27 = vector.broadcast %26 : vector<1x1x16xf32> to vector<2x8x16xf32>
    %28 = arith.mulf %25, %27 : vector<2x8x16xf32>
    %29 = vector.shape_cast %7 : vector<1x16xf32> to vector<1x1x16xf32>
    %30 = vector.broadcast %29 : vector<1x1x16xf32> to vector<2x8x16xf32>
    %31 = arith.addf %28, %30 : vector<2x8x16xf32>
    %32 = vector.shape_cast %31 : vector<2x8x16xf32> to vector<16x16xf32>
    %33 = arith.truncf %32 : vector<16x16xf32> to vector<16x16xbf16>
    %c0_13 = arith.constant 0 : index
    %c0_14 = arith.constant 0 : index
    %c0_15 = arith.constant 0 : index
    %34 = vector.load %arg6[%c0_13, %c0_14, %c0_15] : memref<1x16x16xbf16, #tpu.memory_space<vmem>>, vector<1x16x16xbf16>
    %35 = vector.shape_cast %34 : vector<1x16x16xbf16> to vector<16x16xbf16>
    %cst_16 = arith.constant dense<0.000000e+00> : vector<16x16xf32>
    %36 = tpu.matmul %33, %35, %cst_16 {dimension_numbers = #tpu.dot_dimension_numbers<[1], [0], [0], [1], [0, 0, 1, 1], [], []>} : vector<16x16xbf16>, vector<16x16xbf16>, vector<16x16xf32> -> vector<16x16xf32>
    %c0_17 = arith.constant 0 : index
    %c0_18 = arith.constant 0 : index
    %c0_19 = arith.constant 0 : index
    %37 = vector.load %arg7[%c0_17, %c0_18, %c0_19] : memref<1x1x16xf32, #tpu.memory_space<vmem>>, vector<1x1x16xf32>
    %38 = vector.shape_cast %37 : vector<1x1x16xf32> to vector<1x16xf32>
    %39 = vector.broadcast %38 : vector<1x16xf32> to vector<16x16xf32>
    %40 = arith.addf %36, %39 : vector<16x16xf32>
    %41 = vector.shape_cast %40 : vector<16x16xf32> to vector<2x8x16xf32>
    %c0_20 = arith.constant 0 : index
    %c0_21 = arith.constant 0 : index
    %c0_22 = arith.constant 0 : index
    %42 = vector.load %arg8[%c0_20, %c0_21, %c0_22] : memref<1x16x16xbf16, #tpu.memory_space<vmem>>, vector<1x16x16xbf16>
    %43 = vector.shape_cast %42 : vector<1x16x16xbf16> to vector<16x16xbf16>
    %cst_23 = arith.constant dense<0.000000e+00> : vector<16x16xf32>
    %44 = tpu.matmul %33, %43, %cst_23 {dimension_numbers = #tpu.dot_dimension_numbers<[1], [0], [0], [1], [0, 0, 1, 1], [], []>} : vector<16x16xbf16>, vector<16x16xbf16>, vector<16x16xf32> -> vector<16x16xf32>
    %c0_24 = arith.constant 0 : index
    %c0_25 = arith.constant 0 : index
    %c0_26 = arith.constant 0 : index
    %45 = vector.load %arg9[%c0_24, %c0_25, %c0_26] : memref<1x1x16xf32, #tpu.memory_space<vmem>>, vector<1x1x16xf32>
    %46 = vector.shape_cast %45 : vector<1x1x16xf32> to vector<1x16xf32>
    %47 = vector.broadcast %46 : vector<1x16xf32> to vector<16x16xf32>
    %48 = arith.addf %44, %47 : vector<16x16xf32>
    %49 = vector.shape_cast %48 : vector<16x16xf32> to vector<2x8x16xf32>
    %c0_27 = arith.constant 0 : index
    %c0_28 = arith.constant 0 : index
    %c0_29 = arith.constant 0 : index
    %50 = vector.load %arg10[%c0_27, %c0_28, %c0_29] : memref<1x16x16xbf16, #tpu.memory_space<vmem>>, vector<1x16x16xbf16>
    %51 = vector.shape_cast %50 : vector<1x16x16xbf16> to vector<16x16xbf16>
    %cst_30 = arith.constant dense<0.000000e+00> : vector<16x16xf32>
    %52 = tpu.matmul %33, %51, %cst_30 {dimension_numbers = #tpu.dot_dimension_numbers<[1], [0], [0], [1], [0, 0, 1, 1], [], []>} : vector<16x16xbf16>, vector<16x16xbf16>, vector<16x16xf32> -> vector<16x16xf32>
    %c0_31 = arith.constant 0 : index
    %c0_32 = arith.constant 0 : index
    %c0_33 = arith.constant 0 : index
    %53 = vector.load %arg11[%c0_31, %c0_32, %c0_33] : memref<1x1x16xf32, #tpu.memory_space<vmem>>, vector<1x1x16xf32>
    %54 = vector.shape_cast %53 : vector<1x1x16xf32> to vector<1x16xf32>
    %55 = vector.broadcast %54 : vector<1x16xf32> to vector<16x16xf32>
    %56 = arith.addf %52, %55 : vector<16x16xf32>
    %57 = vector.shape_cast %56 : vector<16x16xf32> to vector<2x8x16xf32>
    %58 = vector.extract_strided_slice %41 {offsets = [0, 0, 0], sizes = [2, 8, 8], strides = [1, 1, 1]} : vector<2x8x16xf32> to vector<2x8x8xf32>
    %59 = arith.truncf %58 : vector<2x8x8xf32> to vector<2x8x8xbf16>
    %60 = vector.extract_strided_slice %49 {offsets = [0, 0, 0], sizes = [2, 8, 8], strides = [1, 1, 1]} : vector<2x8x16xf32> to vector<2x8x8xf32>
    %61 = arith.truncf %60 : vector<2x8x8xf32> to vector<2x8x8xbf16>
    %62 = vector.extract_strided_slice %57 {offsets = [0, 0, 0], sizes = [2, 8, 8], strides = [1, 1, 1]} : vector<2x8x16xf32> to vector<2x8x8xf32>
    %63 = arith.truncf %62 : vector<2x8x8xf32> to vector<2x8x8xbf16>
    "tpu.trace_start"() <{level = 10 : i32, message = "bqe,bke->bqk"}> : () -> ()
    %cst_34 = arith.constant dense<0.000000e+00> : vector<2x8x8xf32>
    %64 = tpu.matmul %59, %61, %cst_34 {dimension_numbers = #tpu.dot_dimension_numbers<[2], [2], [1], [1], [0, 0, 0, 1, 1, 1], [0], [0]>} : vector<2x8x8xbf16>, vector<2x8x8xbf16>, vector<2x8x8xf32> -> vector<2x8x8xf32>
    "tpu.trace_stop"() : () -> ()
    %cst_35 = arith.constant 0.353553385 : f32
    %65 = vector.broadcast %cst_35 : f32 to vector<2x8x8xf32>
    %66 = arith.mulf %64, %65 : vector<2x8x8xf32>
    %cst_36 = arith.constant dense<0xFF800000> : vector<2x8xf32>
    %67 = vector.multi_reduction <maximumf>, %66, %cst_36 [2] : vector<2x8x8xf32> to vector<2x8xf32>
    %68 = vector.shape_cast %67 : vector<2x8xf32> to vector<2x8x1xf32>
    %69 = vector.broadcast %68 : vector<2x8x1xf32> to vector<2x8x8xf32>
    %70 = arith.subf %66, %69 : vector<2x8x8xf32>
    %71 = math.exp %70 : vector<2x8x8xf32>
    %cst_37 = arith.constant dense<0.000000e+00> : vector<2x8xf32>
    %72 = vector.multi_reduction <add>, %71, %cst_37 [2] : vector<2x8x8xf32> to vector<2x8xf32>
    %73 = vector.shape_cast %72 : vector<2x8xf32> to vector<2x8x1xf32>
    %74 = tpu.reciprocal %73 {approx = true} : vector<2x8x1xf32> -> vector<2x8x1xf32>
    %75 = vector.broadcast %74 : vector<2x8x1xf32> to vector<2x8x8xf32>
    %76 = arith.mulf %71, %75 : vector<2x8x8xf32>
    %77 = arith.truncf %76 : vector<2x8x8xf32> to vector<2x8x8xbf16>
    "tpu.trace_start"() <{level = 10 : i32, message = "bqk,bke->bqe"}> : () -> ()
    %cst_38 = arith.constant dense<0.000000e+00> : vector<2x8x8xf32>
    %78 = tpu.matmul %77, %63, %cst_38 {dimension_numbers = #tpu.dot_dimension_numbers<[2], [1], [1], [2], [0, 0, 0, 1, 1, 2], [0], [0]>} : vector<2x8x8xbf16>, vector<2x8x8xbf16>, vector<2x8x8xf32> -> vector<2x8x8xf32>
    "tpu.trace_stop"() : () -> ()
    %79 = vector.extract_strided_slice %41 {offsets = [0, 0, 8], sizes = [2, 8, 8], strides = [1, 1, 1]} : vector<2x8x16xf32> to vector<2x8x8xf32>
    %80 = arith.truncf %79 : vector<2x8x8xf32> to vector<2x8x8xbf16>
    %81 = vector.extract_strided_slice %49 {offsets = [0, 0, 8], sizes = [2, 8, 8], strides = [1, 1, 1]} : vector<2x8x16xf32> to vector<2x8x8xf32>
    %82 = arith.truncf %81 : vector<2x8x8xf32> to vector<2x8x8xbf16>
    %83 = vector.extract_strided_slice %57 {offsets = [0, 0, 8], sizes = [2, 8, 8], strides = [1, 1, 1]} : vector<2x8x16xf32> to vector<2x8x8xf32>
    %84 = arith.truncf %83 : vector<2x8x8xf32> to vector<2x8x8xbf16>
    "tpu.trace_start"() <{level = 10 : i32, message = "bqe,bke->bqk"}> : () -> ()
    %cst_39 = arith.constant dense<0.000000e+00> : vector<2x8x8xf32>
    %85 = tpu.matmul %80, %82, %cst_39 {dimension_numbers = #tpu.dot_dimension_numbers<[2], [2], [1], [1], [0, 0, 0, 1, 1, 1], [0], [0]>} : vector<2x8x8xbf16>, vector<2x8x8xbf16>, vector<2x8x8xf32> -> vector<2x8x8xf32>
    "tpu.trace_stop"() : () -> ()
    %cst_40 = arith.constant 0.353553385 : f32
    %86 = vector.broadcast %cst_40 : f32 to vector<2x8x8xf32>
    %87 = arith.mulf %85, %86 : vector<2x8x8xf32>
    %cst_41 = arith.constant dense<0xFF800000> : vector<2x8xf32>
    %88 = vector.multi_reduction <maximumf>, %87, %cst_41 [2] : vector<2x8x8xf32> to vector<2x8xf32>
    %89 = vector.shape_cast %88 : vector<2x8xf32> to vector<2x8x1xf32>
    %90 = vector.broadcast %89 : vector<2x8x1xf32> to vector<2x8x8xf32>
    %91 = arith.subf %87, %90 : vector<2x8x8xf32>
    %92 = math.exp %91 : vector<2x8x8xf32>
    %cst_42 = arith.constant dense<0.000000e+00> : vector<2x8xf32>
    %93 = vector.multi_reduction <add>, %92, %cst_42 [2] : vector<2x8x8xf32> to vector<2x8xf32>
    %94 = vector.shape_cast %93 : vector<2x8xf32> to vector<2x8x1xf32>
    %95 = tpu.reciprocal %94 {approx = true} : vector<2x8x1xf32> -> vector<2x8x1xf32>
    %96 = vector.broadcast %95 : vector<2x8x1xf32> to vector<2x8x8xf32>
    %97 = arith.mulf %92, %96 : vector<2x8x8xf32>
    %98 = arith.truncf %97 : vector<2x8x8xf32> to vector<2x8x8xbf16>
    "tpu.trace_start"() <{level = 10 : i32, message = "bqk,bke->bqe"}> : () -> ()
    %cst_43 = arith.constant dense<0.000000e+00> : vector<2x8x8xf32>
    %99 = tpu.matmul %98, %84, %cst_43 {dimension_numbers = #tpu.dot_dimension_numbers<[2], [1], [1], [2], [0, 0, 0, 1, 1, 2], [0], [0]>} : vector<2x8x8xbf16>, vector<2x8x8xbf16>, vector<2x8x8xf32> -> vector<2x8x8xf32>
    "tpu.trace_stop"() : () -> ()
    %100 = tpu.concatenate %78, %99 in 2 : vector<2x8x8xf32>, vector<2x8x8xf32> -> vector<2x8x16xf32>
    %101 = vector.shape_cast %100 : vector<2x8x16xf32> to vector<16x16xf32>
    %102 = arith.truncf %101 : vector<16x16xf32> to vector<16x16xbf16>
    %c0_44 = arith.constant 0 : index
    %c0_45 = arith.constant 0 : index
    %c0_46 = arith.constant 0 : index
    %103 = vector.load %arg12[%c0_44, %c0_45, %c0_46] : memref<1x16x16xbf16, #tpu.memory_space<vmem>>, vector<1x16x16xbf16>
    %104 = vector.shape_cast %103 : vector<1x16x16xbf16> to vector<16x16xbf16>
    %cst_47 = arith.constant dense<0.000000e+00> : vector<16x16xf32>
    %105 = tpu.matmul %102, %104, %cst_47 {dimension_numbers = #tpu.dot_dimension_numbers<[1], [0], [0], [1], [0, 0, 1, 1], [], []>} : vector<16x16xbf16>, vector<16x16xbf16>, vector<16x16xf32> -> vector<16x16xf32>
    %c0_48 = arith.constant 0 : index
    %c0_49 = arith.constant 0 : index
    %c0_50 = arith.constant 0 : index
    %106 = vector.load %arg13[%c0_48, %c0_49, %c0_50] : memref<1x1x16xf32, #tpu.memory_space<vmem>>, vector<1x1x16xf32>
    %107 = vector.shape_cast %106 : vector<1x1x16xf32> to vector<1x16xf32>
    %108 = vector.broadcast %107 : vector<1x16xf32> to vector<16x16xf32>
    %109 = arith.addf %105, %108 : vector<16x16xf32>
    %110 = vector.shape_cast %109 : vector<16x16xf32> to vector<2x8x16xf32>
    %111 = arith.addf %3, %110 : vector<2x8x16xf32>
    %c0_51 = arith.constant 0 : index
    %c0_52 = arith.constant 0 : index
    %c0_53 = arith.constant 0 : index
    %112 = vector.load %arg16[%c0_51, %c0_52, %c0_53] : memref<1x1x16xf32, #tpu.memory_space<vmem>>, vector<1x1x16xf32>
    %113 = vector.shape_cast %112 : vector<1x1x16xf32> to vector<1x16xf32>
    %c0_54 = arith.constant 0 : index
    %c0_55 = arith.constant 0 : index
    %c0_56 = arith.constant 0 : index
    %114 = vector.load %arg17[%c0_54, %c0_55, %c0_56] : memref<1x1x16xf32, #tpu.memory_space<vmem>>, vector<1x1x16xf32>
    %115 = vector.shape_cast %114 : vector<1x1x16xf32> to vector<1x16xf32>
    %cst_57 = arith.constant dense<0.000000e+00> : vector<2x8xf32>
    %116 = vector.multi_reduction <add>, %111, %cst_57 [2] : vector<2x8x16xf32> to vector<2x8xf32>
    %117 = vector.shape_cast %116 : vector<2x8xf32> to vector<2x8x1xf32>
    %cst_58 = arith.constant 1.600000e+01 : f32
    %118 = vector.broadcast %cst_58 : f32 to vector<2x8x1xf32>
    %119 = arith.divf %117, %118 : vector<2x8x1xf32>
    %120 = vector.broadcast %119 : vector<2x8x1xf32> to vector<2x8x16xf32>
    %121 = arith.subf %111, %120 : vector<2x8x16xf32>
    %122 = arith.mulf %121, %121 : vector<2x8x16xf32>
    %cst_59 = arith.constant dense<0.000000e+00> : vector<2x8xf32>
    %123 = vector.multi_reduction <add>, %122, %cst_59 [2] : vector<2x8x16xf32> to vector<2x8xf32>
    %124 = vector.shape_cast %123 : vector<2x8xf32> to vector<2x8x1xf32>
    %cst_60 = arith.constant 1.600000e+01 : f32
    %125 = vector.broadcast %cst_60 : f32 to vector<2x8x1xf32>
    %126 = arith.divf %124, %125 : vector<2x8x1xf32>
    %127 = vector.broadcast %119 : vector<2x8x1xf32> to vector<2x8x16xf32>
    %128 = arith.subf %111, %127 : vector<2x8x16xf32>
    %cst_61 = arith.constant 9.99999996E-13 : f32
    %129 = vector.broadcast %cst_61 : f32 to vector<2x8x1xf32>
    %130 = arith.addf %126, %129 : vector<2x8x1xf32>
    %131 = math.rsqrt %130 : vector<2x8x1xf32>
    %132 = vector.broadcast %131 : vector<2x8x1xf32> to vector<2x8x16xf32>
    %133 = arith.mulf %128, %132 : vector<2x8x16xf32>
    %134 = vector.shape_cast %113 : vector<1x16xf32> to vector<1x1x16xf32>
    %135 = vector.broadcast %134 : vector<1x1x16xf32> to vector<2x8x16xf32>
    %136 = arith.mulf %133, %135 : vector<2x8x16xf32>
    %137 = vector.shape_cast %115 : vector<1x16xf32> to vector<1x1x16xf32>
    %138 = vector.broadcast %137 : vector<1x1x16xf32> to vector<2x8x16xf32>
    %139 = arith.addf %136, %138 : vector<2x8x16xf32>
    %140 = vector.shape_cast %139 : vector<2x8x16xf32> to vector<16x16xf32>
    %141 = arith.truncf %140 : vector<16x16xf32> to vector<16x16xbf16>
    %c0_62 = arith.constant 0 : index
    %c0_63 = arith.constant 0 : index
    %c0_64 = arith.constant 0 : index
    %142 = vector.load %arg18[%c0_62, %c0_63, %c0_64] : memref<1x16x32xbf16, #tpu.memory_space<vmem>>, vector<1x16x32xbf16>
    %143 = vector.shape_cast %142 : vector<1x16x32xbf16> to vector<16x32xbf16>
    %cst_65 = arith.constant dense<0.000000e+00> : vector<16x32xf32>
    %144 = tpu.matmul %141, %143, %cst_65 {dimension_numbers = #tpu.dot_dimension_numbers<[1], [0], [0], [1], [0, 0, 1, 1], [], []>} : vector<16x16xbf16>, vector<16x32xbf16>, vector<16x32xf32> -> vector<16x32xf32>
    %c0_66 = arith.constant 0 : index
    %c0_67 = arith.constant 0 : index
    %c0_68 = arith.constant 0 : index
    %145 = vector.load %arg19[%c0_66, %c0_67, %c0_68] : memref<1x1x32xf32, #tpu.memory_space<vmem>>, vector<1x1x32xf32>
    %146 = vector.shape_cast %145 : vector<1x1x32xf32> to vector<1x32xf32>
    %147 = vector.broadcast %146 : vector<1x32xf32> to vector<16x32xf32>
    %148 = arith.addf %144, %147 : vector<16x32xf32>
    %cst_69 = arith.constant 5.000000e-01 : f32
    %149 = vector.broadcast %cst_69 : f32 to vector<16x32xf32>
    %150 = arith.mulf %149, %148 : vector<16x32xf32>
    %cst_70 = arith.constant 4.471500e-02 : f32
    %151 = vector.broadcast %cst_70 : f32 to vector<16x32xf32>
    %152 = arith.mulf %151, %148 : vector<16x32xf32>
    %153 = arith.mulf %152, %148 : vector<16x32xf32>
    %154 = arith.mulf %153, %148 : vector<16x32xf32>
    %155 = arith.addf %148, %154 : vector<16x32xf32>
    %cst_71 = arith.constant 0.797884583 : f32
    %156 = vector.broadcast %cst_71 : f32 to vector<16x32xf32>
    %157 = arith.mulf %156, %155 : vector<16x32xf32>
    %158 = math.tanh %157 : vector<16x32xf32>
    %cst_72 = arith.constant 1.000000e+00 : f32
    %159 = vector.broadcast %cst_72 : f32 to vector<16x32xf32>
    %160 = arith.addf %159, %158 : vector<16x32xf32>
    %161 = arith.mulf %150, %160 : vector<16x32xf32>
    %162 = arith.truncf %161 : vector<16x32xf32> to vector<16x32xbf16>
    %c0_73 = arith.constant 0 : index
    %c0_74 = arith.constant 0 : index
    %c0_75 = arith.constant 0 : index
    %163 = vector.load %arg20[%c0_73, %c0_74, %c0_75] : memref<1x32x16xbf16, #tpu.memory_space<vmem>>, vector<1x32x16xbf16>
    %164 = vector.shape_cast %163 : vector<1x32x16xbf16> to vector<32x16xbf16>
    %cst_76 = arith.constant dense<0.000000e+00> : vector<16x16xf32>
    %165 = tpu.matmul %162, %164, %cst_76 {dimension_numbers = #tpu.dot_dimension_numbers<[1], [0], [0], [1], [0, 0, 1, 1], [], []>} : vector<16x32xbf16>, vector<32x16xbf16>, vector<16x16xf32> -> vector<16x16xf32>
    %c0_77 = arith.constant 0 : index
    %c0_78 = arith.constant 0 : index
    %c0_79 = arith.constant 0 : index
    %166 = vector.load %arg21[%c0_77, %c0_78, %c0_79] : memref<1x1x16xf32, #tpu.memory_space<vmem>>, vector<1x1x16xf32>
    %167 = vector.shape_cast %166 : vector<1x1x16xf32> to vector<1x16xf32>
    %168 = vector.broadcast %167 : vector<1x16xf32> to vector<16x16xf32>
    %169 = arith.addf %165, %168 : vector<16x16xf32>
    %170 = vector.shape_cast %169 : vector<16x16xf32> to vector<2x8x16xf32>
    %171 = arith.addf %111, %170 : vector<2x8x16xf32>
    %c0_80 = arith.constant 0 : index
    %c0_81 = arith.constant 0 : index
    %c0_82 = arith.constant 0 : index
    %172 = vector.load %arg23[%c0_80, %c0_81, %c0_82] : memref<2x8x16xf32, #tpu.memory_space<vmem>>, vector<2x8x16xf32>
    tpu.vector_store %arg23[%c0_80, %c0_81, %c0_82], %171 {strides = array<i32>} : memref<2x8x16xf32, #tpu.memory_space<vmem>>, vector<2x8x16xf32>,
    %c0_i32_83 = arith.constant 0 : i32
    %173 = arith.cmpi eq, %arg0, %c0_i32_83 : i32
    %174 = arith.extui %173 : i1 to i32
    %c0_i32_84 = arith.constant 0 : i32
    %175 = arith.cmpi ne, %174, %c0_i32_84 : i32
    scf.if %175 {
      %c0_85 = arith.constant 0 : index
      %c4 = arith.constant 4 : index
      %c0_86 = arith.constant 0 : index
      %176 = vector.load %arg23[%c0_85, %c4, %c0_86] : memref<2x8x16xf32, #tpu.memory_space<vmem>>, vector<2x4x16xf32>
      %c0_87 = arith.constant 0 : index
      %c0_88 = arith.constant 0 : index
      %c0_89 = arith.constant 0 : index
      %177 = vector.load %arg22[%c0_87, %c0_88, %c0_89] : memref<2x4x16xf32, #tpu.memory_space<vmem>>, vector<2x4x16xf32>
      tpu.vector_store %arg22[%c0_87, %c0_88, %c0_89], %176 {strides = array<i32>} : memref<2x4x16xf32, #tpu.memory_space<vmem>>, vector<2x4x16xf32>,
    } else {
    }
    return
  }
  func.func @transform_0(%arg0: i32) -> (i32, i32, i32) {
    %c0_i32 = arith.constant 0 : i32
    %c0_i32_0 = arith.constant 0 : i32
    %c0_i32_1 = arith.constant 0 : i32
    %c0_i32_2 = arith.constant 0 : i32
    return %c0_i32, %c0_i32_0, %c0_i32_1 : i32, i32, i32
  }
  func.func @transform_1(%arg0: i32) -> (i32, i32) {
    %c0_i32 = arith.constant 0 : i32
    %c0_i32_0 = arith.constant 0 : i32
    %c0_i32_1 = arith.constant 0 : i32
    return %c0_i32, %c0_i32_0 : i32, i32
  }
  func.func @transform_2(%arg0: i32) -> (i32, i32, i32) {
    %c0_i32 = arith.constant 0 : i32
    %c0_i32_0 = arith.constant 0 : i32
    %c0_i32_1 = arith.constant 0 : i32
    %c0_i32_2 = arith.constant 0 : i32
    return %c0_i32, %c0_i32_0, %c0_i32_1 : i32, i32, i32
  }
  func.func @transform_3(%arg0: i32) -> (i32, i32, i32) {
    %c0_i32 = arith.constant 0 : i32
    %c0_i32_0 = arith.constant 0 : i32
    %c0_i32_1 = arith.constant 0 : i32
    %c0_i32_2 = arith.constant 0 : i32
    return %c0_i32, %c0_i32_0, %c0_i32_1 : i32, i32, i32
  }
  func.func @transform_4(%arg0: i32) -> (i32, i32) {
    %c0_i32 = arith.constant 0 : i32
    %c0_i32_0 = arith.constant 0 : i32
    %c0_i32_1 = arith.constant 0 : i32
    return %c0_i32, %c0_i32_0 : i32, i32
  }
  func.func @transform_5(%arg0: i32) -> (i32, i32, i32) {
    %c0_i32 = arith.constant 0 : i32
    %c0_i32_0 = arith.constant 0 : i32
    %c0_i32_1 = arith.constant 0 : i32
    return %arg0, %c0_i32, %c0_i32_0 : i32, i32, i32
  }
  func.func @transform_6(%arg0: i32) -> (i32, i32, i32) {
    %c0_i32 = arith.constant 0 : i32
    %c0_i32_0 = arith.constant 0 : i32
    %c0_i32_1 = arith.constant 0 : i32
    return %arg0, %c0_i32, %c0_i32_0 : i32, i32, i32
  }
  func.func @transform_7(%arg0: i32) -> (i32, i32, i32) {
    %c0_i32 = arith.constant 0 : i32
    %c0_i32_0 = arith.constant 0 : i32
    %c0_i32_1 = arith.constant 0 : i32
    return %arg0, %c0_i32, %c0_i32_0 : i32, i32, i32
  }
  func.func @transform_8(%arg0: i32) -> (i32, i32, i32) {
    %c0_i32 = arith.constant 0 : i32
    %c0_i32_0 = arith.constant 0 : i32
    %c0_i32_1 = arith.constant 0 : i32
    return %arg0, %c0_i32, %c0_i32_0 : i32, i32, i32
  }
  func.func @transform_9(%arg0: i32) -> (i32, i32, i32) {
    %c0_i32 = arith.constant 0 : i32
    %c0_i32_0 = arith.constant 0 : i32
    %c0_i32_1 = arith.constant 0 : i32
    return %arg0, %c0_i32, %c0_i32_0 : i32, i32, i32
  }
  func.func @transform_10(%arg0: i32) -> (i32, i32, i32) {
    %c0_i32 = arith.constant 0 : i32
    %c0_i32_0 = arith.constant 0 : i32
    %c0_i32_1 = arith.constant 0 : i32
    return %arg0, %c0_i32, %c0_i32_0 : i32, i32, i32
  }
  func.func @transform_11(%arg0: i32) -> (i32, i32, i32) {
    %c0_i32 = arith.constant 0 : i32
    %c0_i32_0 = arith.constant 0 : i32
    %c0_i32_1 = arith.constant 0 : i32
    return %arg0, %c0_i32, %c0_i32_0 : i32, i32, i32
  }
  func.func @transform_12(%arg0: i32) -> (i32, i32, i32) {
    %c0_i32 = arith.constant 0 : i32
    %c0_i32_0 = arith.constant 0 : i32
    %c0_i32_1 = arith.constant 0 : i32
    return %arg0, %c0_i32, %c0_i32_0 : i32, i32, i32
  }
  func.func @transform_13(%arg0: i32) -> (i32, i32, i32) {
    %c0_i32 = arith.constant 0 : i32
    %c0_i32_0 = arith.constant 0 : i32
    %c0_i32_1 = arith.constant 0 : i32
    return %arg0, %c0_i32, %c0_i32_0 : i32, i32, i32
  }
  func.func @transform_14(%arg0: i32) -> (i32, i32, i32) {
    %c0_i32 = arith.constant 0 : i32
    %c0_i32_0 = arith.constant 0 : i32
    %c0_i32_1 = arith.constant 0 : i32
    return %arg0, %c0_i32, %c0_i32_0 : i32, i32, i32
  }
  func.func @transform_15(%arg0: i32) -> (i32, i32, i32) {
    %c0_i32 = arith.constant 0 : i32
    %c0_i32_0 = arith.constant 0 : i32
    %c0_i32_1 = arith.constant 0 : i32
    return %arg0, %c0_i32, %c0_i32_0 : i32, i32, i32
  }
  func.func @transform_16(%arg0: i32) -> (i32, i32, i32) {
    %c0_i32 = arith.constant 0 : i32
    %c0_i32_0 = arith.constant 0 : i32
    %c0_i32_1 = arith.constant 0 : i32
    return %arg0, %c0_i32, %c0_i32_0 : i32, i32, i32
  }
  func.func @transform_17(%arg0: i32) -> (i32, i32, i32) {
    %c0_i32 = arith.constant 0 : i32
    %c0_i32_0 = arith.constant 0 : i32
    %c0_i32_1 = arith.constant 0 : i32
    return %arg0, %c0_i32, %c0_i32_0 : i32, i32, i32
  }
  func.func @transform_18(%arg0: i32) -> (i32, i32, i32) {
    %c0_i32 = arith.constant 0 : i32
    %c0_i32_0 = arith.constant 0 : i32
    %c0_i32_1 = arith.constant 0 : i32
    return %arg0, %c0_i32, %c0_i32_0 : i32, i32, i32
  }
  func.func @transform_19(%arg0: i32) -> (i32, i32, i32) {
    %c0_i32 = arith.constant 0 : i32
    %c0_i32_0 = arith.constant 0 : i32
    %c0_i32_1 = arith.constant 0 : i32
    return %arg0, %c0_i32, %c0_i32_0 : i32, i32, i32
  }
  func.func @transform_20(%arg0: i32) -> (i32, i32, i32) {
    %c0_i32 = arith.constant 0 : i32
    %c0_i32_0 = arith.constant 0 : i32
    %c0_i32_1 = arith.constant 0 : i32
    return %arg0, %c0_i32, %c0_i32_0 : i32, i32, i32
  }
  func.func @transform_21(%arg0: i32) -> (i32, i32, i32) {
    %c0_i32 = arith.constant 0 : i32
    %c0_i32_0 = arith.constant 0 : i32
    %c0_i32_1 = arith.constant 0 : i32
    %c0_i32_2 = arith.constant 0 : i32
    return %c0_i32, %c0_i32_0, %c0_i32_1 : i32, i32, i32
  }
}

module attributes {stable_mosaic.version = 11 : i64} {
  func.func @head_loss_kernel(%arg0: memref<2x4x16xf32, #tpu.memory_space<vmem>>, %arg1: memref<1x16xf32, #tpu.memory_space<vmem>>, %arg2: memref<1x16xf32, #tpu.memory_space<vmem>>, %arg3: memref<16x512xbf16, #tpu.memory_space<vmem>>, %arg4: memref<1x512xf32, #tpu.memory_space<vmem>>, %arg5: memref<2x4x512xf32, #tpu.memory_space<vmem>>, %arg6: memref<2x4x1xf32, #tpu.memory_space<vmem>>, %arg7: memref<2x4x512xf32, #tpu.memory_space<vmem>>, %arg8: memref<1x1xf32, #tpu.memory_space<vmem>>) attributes {dimension_semantics = [], scalar_prefetch = 0 : i64, scratch_operands = 0 : i64, tpu.core_type = #tpu.core_type<tc>} {
    %c0 = arith.constant 0 : index
    %c0_0 = arith.constant 0 : index
    %c0_1 = arith.constant 0 : index
    %0 = vector.load %arg0[%c0, %c0_0, %c0_1] : memref<2x4x16xf32, #tpu.memory_space<vmem>>, vector<2x4x16xf32>
    %c0_2 = arith.constant 0 : index
    %c0_3 = arith.constant 0 : index
    %1 = vector.load %arg1[%c0_2, %c0_3] : memref<1x16xf32, #tpu.memory_space<vmem>>, vector<1x16xf32>
    %c0_4 = arith.constant 0 : index
    %c0_5 = arith.constant 0 : index
    %2 = vector.load %arg2[%c0_4, %c0_5] : memref<1x16xf32, #tpu.memory_space<vmem>>, vector<1x16xf32>
    %cst = arith.constant dense<0.000000e+00> : vector<2x4xf32>
    %3 = vector.multi_reduction <add>, %0, %cst [2] : vector<2x4x16xf32> to vector<2x4xf32>
    %4 = vector.shape_cast %3 : vector<2x4xf32> to vector<2x4x1xf32>
    %cst_6 = arith.constant 1.600000e+01 : f32
    %5 = vector.broadcast %cst_6 : f32 to vector<2x4x1xf32>
    %6 = arith.divf %4, %5 : vector<2x4x1xf32>
    %7 = vector.broadcast %6 : vector<2x4x1xf32> to vector<2x4x16xf32>
    %8 = arith.subf %0, %7 : vector<2x4x16xf32>
    %9 = arith.mulf %8, %8 : vector<2x4x16xf32>
    %cst_7 = arith.constant dense<0.000000e+00> : vector<2x4xf32>
    %10 = vector.multi_reduction <add>, %9, %cst_7 [2] : vector<2x4x16xf32> to vector<2x4xf32>
    %11 = vector.shape_cast %10 : vector<2x4xf32> to vector<2x4x1xf32>
    %cst_8 = arith.constant 1.600000e+01 : f32
    %12 = vector.broadcast %cst_8 : f32 to vector<2x4x1xf32>
    %13 = arith.divf %11, %12 : vector<2x4x1xf32>
    %14 = vector.broadcast %6 : vector<2x4x1xf32> to vector<2x4x16xf32>
    %15 = arith.subf %0, %14 : vector<2x4x16xf32>
    %cst_9 = arith.constant 9.99999996E-13 : f32
    %16 = vector.broadcast %cst_9 : f32 to vector<2x4x1xf32>
    %17 = arith.addf %13, %16 : vector<2x4x1xf32>
    %18 = math.rsqrt %17 : vector<2x4x1xf32>
    %19 = vector.broadcast %18 : vector<2x4x1xf32> to vector<2x4x16xf32>
    %20 = arith.mulf %15, %19 : vector<2x4x16xf32>
    %21 = vector.shape_cast %1 : vector<1x16xf32> to vector<1x1x16xf32>
    %22 = vector.broadcast %21 : vector<1x1x16xf32> to vector<2x4x16xf32>
    %23 = arith.mulf %20, %22 : vector<2x4x16xf32>
    %24 = vector.shape_cast %2 : vector<1x16xf32> to vector<1x1x16xf32>
    %25 = vector.broadcast %24 : vector<1x1x16xf32> to vector<2x4x16xf32>
    %26 = arith.addf %23, %25 : vector<2x4x16xf32>
    %27 = vector.shape_cast %26 : vector<2x4x16xf32> to vector<8x16xf32>
    %28 = arith.truncf %27 : vector<8x16xf32> to vector<8x16xbf16>
    %c0_10 = arith.constant 0 : index
    %c0_11 = arith.constant 0 : index
    %29 = vector.load %arg3[%c0_10, %c0_11] : memref<16x512xbf16, #tpu.memory_space<vmem>>, vector<16x512xbf16>
    %cst_12 = arith.constant dense<0.000000e+00> : vector<8x512xf32>
    %30 = tpu.matmul %28, %29, %cst_12 {dimension_numbers = #tpu.dot_dimension_numbers<[1], [0], [0], [1], [0, 0, 1, 1], [], []>} : vector<8x16xbf16>, vector<16x512xbf16>, vector<8x512xf32> -> vector<8x512xf32>
    %c0_13 = arith.constant 0 : index
    %c0_14 = arith.constant 0 : index
    %31 = vector.load %arg4[%c0_13, %c0_14] : memref<1x512xf32, #tpu.memory_space<vmem>>, vector<1x512xf32>
    %32 = vector.broadcast %31 : vector<1x512xf32> to vector<8x512xf32>
    %33 = arith.addf %30, %32 : vector<8x512xf32>
    %34 = vector.shape_cast %33 : vector<8x512xf32> to vector<2x4x512xf32>
    %c0_15 = arith.constant 0 : index
    %c0_16 = arith.constant 0 : index
    %c0_17 = arith.constant 0 : index
    %35 = vector.load %arg7[%c0_15, %c0_16, %c0_17] : memref<2x4x512xf32, #tpu.memory_space<vmem>>, vector<2x4x512xf32>
    tpu.vector_store %arg7[%c0_15, %c0_16, %c0_17], %34 {strides = array<i32>} : memref<2x4x512xf32, #tpu.memory_space<vmem>>, vector<2x4x512xf32>,
    %c0_18 = arith.constant 0 : index
    %c0_19 = arith.constant 0 : index
    %c0_20 = arith.constant 0 : index
    %36 = vector.load %arg5[%c0_18, %c0_19, %c0_20] : memref<2x4x512xf32, #tpu.memory_space<vmem>>, vector<2x4x512xf32>
    %37 = arith.subf %34, %36 : vector<2x4x512xf32>
    %c0_21 = arith.constant 0 : index
    %c0_22 = arith.constant 0 : index
    %c0_23 = arith.constant 0 : index
    %38 = vector.load %arg6[%c0_21, %c0_22, %c0_23] : memref<2x4x1xf32, #tpu.memory_space<vmem>>, vector<2x4x1xf32>
    %39 = arith.mulf %37, %37 : vector<2x4x512xf32>
    %40 = vector.broadcast %38 : vector<2x4x1xf32> to vector<2x4x512xf32>
    %41 = arith.mulf %39, %40 : vector<2x4x512xf32>
    %42 = vector.shape_cast %41 : vector<2x4x512xf32> to vector<8x512xf32>
    %43 = vector.shape_cast %42 : vector<8x512xf32> to vector<1x8x512xf32>
    %cst_24 = arith.constant dense<0.000000e+00> : vector<1xf32>
    %44 = vector.multi_reduction <add>, %43, %cst_24 [1, 2] : vector<1x8x512xf32> to vector<1xf32>
    %45 = vector.shape_cast %44 : vector<1xf32> to vector<1x1x1xf32>
    %46 = vector.extract %45[0, 0, 0] : f32 from vector<1x1x1xf32>
    %47 = vector.broadcast %46 : f32 to vector<1x1xf32>
    %48 = vector.shape_cast %38 : vector<2x4x1xf32> to vector<8x1xf32>
    %49 = vector.shape_cast %48 : vector<8x1xf32> to vector<1x8x1xf32>
    %cst_25 = arith.constant dense<0.000000e+00> : vector<1xf32>
    %50 = vector.multi_reduction <add>, %49, %cst_25 [1, 2] : vector<1x8x1xf32> to vector<1xf32>
    %51 = vector.shape_cast %50 : vector<1xf32> to vector<1x1x1xf32>
    %52 = vector.extract %51[0, 0, 0] : f32 from vector<1x1x1xf32>
    %53 = vector.broadcast %52 : f32 to vector<1x1xf32>
    %cst_26 = arith.constant 5.120000e+02 : f32
    %54 = vector.broadcast %cst_26 : f32 to vector<1x1xf32>
    %55 = arith.mulf %53, %54 : vector<1x1xf32>
    %cst_27 = arith.constant 1.000000e+00 : f32
    %56 = vector.broadcast %cst_27 : f32 to vector<1x1xf32>
    %57 = arith.maximumf %55, %56 : vector<1x1xf32>
    %58 = arith.divf %47, %57 : vector<1x1xf32>
    %c0_28 = arith.constant 0 : index
    %c0_29 = arith.constant 0 : index
    %59 = vector.load %arg8[%c0_28, %c0_29] : memref<1x1xf32, #tpu.memory_space<vmem>>, vector<1x1xf32>
    tpu.vector_store %arg8[%c0_28, %c0_29], %58 {strides = array<i32>} : memref<1x1xf32, #tpu.memory_space<vmem>>, vector<1x1xf32>,
    return
  }
}

</mosaic_0001>

<llo_original>
// kernel: _forward_impl.4
$region0: #{_forward_impl.4}
  #allocation0 [shape = 'u32[]', space=smem, size = 0x4, offset = 0x4, fixed_abs, tag = 'smem constant byte address 0x4 - core index']
  #allocation1 [shape = 'u32[144,128]{1,0:T(1,128)}', space=vmem, size = 0x12000, scoped, tag = 'internal scratch']
  #allocation2 [shape = 'f32[2,8,16]{2,1,0:T(8,128)}', space=vmem, size = 0x2000, scoped, tag = 'scratch operand']
  %s0 = inlined_call_operand.hbm [shape: f32[2,4,32], index: 0, kind: input, shape index: {}]
  %s1 = inlined_call_operand.hbm [shape: bf16[32,16], index: 1, kind: input, shape index: {}]
  %s2 = inlined_call_operand.hbm [shape: f32[2,4,16], index: 2, kind: input, shape index: {}]
  %s3 = inlined_call_operand.hbm [shape: f32[2,4,16], index: 3, kind: input, shape index: {}]
  %s4 = inlined_call_operand.hbm [shape: f32[1,16], index: 4, kind: input, shape index: {}]
  %s5 = inlined_call_operand.hbm [shape: bf16[1,16,16], index: 5, kind: input, shape index: {}]
  %s6 = inlined_call_operand.hbm [shape: f32[1,1,16], index: 6, kind: input, shape index: {}]
  %s7 = inlined_call_operand.hbm [shape: bf16[1,16,16], index: 7, kind: input, shape index: {}]
  %s8 = inlined_call_operand.hbm [shape: f32[1,1,16], index: 8, kind: input, shape index: {}]
  %s9 = inlined_call_operand.hbm [shape: bf16[1,16,16], index: 9, kind: input, shape index: {}]
  %s10 = inlined_call_operand.hbm [shape: f32[1,1,16], index: 10, kind: input, shape index: {}]
  %s11 = inlined_call_operand.hbm [shape: bf16[1,16,16], index: 11, kind: input, shape index: {}]
  %s12 = inlined_call_operand.hbm [shape: f32[1,1,16], index: 12, kind: input, shape index: {}]
  %s13 = inlined_call_operand.hbm [shape: f32[1,1,16], index: 13, kind: input, shape index: {}]
  %s14 = inlined_call_operand.hbm [shape: f32[1,1,16], index: 14, kind: input, shape index: {}]
  %s15 = inlined_call_operand.hbm [shape: f32[1,1,16], index: 15, kind: input, shape index: {}]
  %s16 = inlined_call_operand.hbm [shape: f32[1,1,16], index: 16, kind: input, shape index: {}]
  %s17 = inlined_call_operand.hbm [shape: bf16[1,16,32], index: 17, kind: input, shape index: {}]
  %s18 = inlined_call_operand.hbm [shape: f32[1,1,32], index: 18, kind: input, shape index: {}]
  %s19 = inlined_call_operand.hbm [shape: bf16[1,32,16], index: 19, kind: input, shape index: {}]
  %s20 = inlined_call_operand.hbm [shape: f32[1,1,16], index: 20, kind: input, shape index: {}]
  %s21 = inlined_call_operand.hbm [shape: f32[2,4,16], index: 21, kind: output, shape index: {}]
  %s22 = sld [smem:[#allocation0]]
  $region186: #{_forward_impl.4} parent=0
    _
  %s24 = ssub.s32 1, %s22
  %s25 = scalar_select 0, %s24, %s22
  $region1: #{_forward_impl.4} parent=0
    #allocation3 [shape = 'u8[4096]{0}', space=vmem, size = 0x1000, scoped, tag = 'input window, operand 0, single buffered']
    #allocation4 [shape = 's32[1]{0}', space=sflag, size = 0x4, scoped, tag = 'scoped memory for _forward_impl.4']
    #allocation5 [shape = 's32[1]{0}', space=sflag, size = 0x4, scoped, tag = 'scoped memory for _forward_impl.4']
    #allocation6 [shape = 'u8[8192]{0}', space=vmem, size = 0x2000, scoped, tag = 'input window, operand 1, single buffered']
    #allocation7 [shape = 's32[1]{0}', space=sflag, size = 0x4, scoped, tag = 'scoped memory for _forward_impl.4']
    #allocation8 [shape = 'u8[4096]{0}', space=vmem, size = 0x1000, scoped, tag = 'input window, operand 2, single buffered']
    #allocation9 [shape = 'u8[4096]{0}', space=vmem, size = 0x1000, scoped, tag = 'input window, operand 3, single buffered']
    #allocation10 [shape = 's32[1]{0}', space=sflag, size = 0x4, scoped, tag = 'scoped memory for _forward_impl.4']
    #allocation11 [shape = 'u8[512]{0}', space=vmem, size = 0x400, scoped, tag = 'input window, operand 4, single buffered']
    #allocation12 [shape = 'u8[4096]{0}', space=vmem, size = 0x1000, scoped, tag = 'input window, operand 5, single buffered']
    #allocation13 [shape = 's32[1]{0}', space=sflag, size = 0x4, scoped, tag = 'scoped memory for _forward_impl.4']
    #allocation14 [shape = 'u8[512]{0}', space=vmem, size = 0x400, scoped, tag = 'input window, operand 6, single buffered']
    #allocation15 [shape = 'u8[4096]{0}', space=vmem, size = 0x1000, scoped, tag = 'input window, operand 7, single buffered']
    #allocation16 [shape = 's32[1]{0}', space=sflag, size = 0x4, scoped, tag = 'scoped memory for _forward_impl.4']
    #allocation17 [shape = 'u8[512]{0}', space=vmem, size = 0x400, scoped, tag = 'input window, operand 8, single buffered']
    #allocation18 [shape = 'u8[4096]{0}', space=vmem, size = 0x1000, scoped, tag = 'input window, operand 9, single buffered']
    #allocation19 [shape = 's32[1]{0}', space=sflag, size = 0x4, scoped, tag = 'scoped memory for _forward_impl.4']
    #allocation20 [shape = 'u8[512]{0}', space=vmem, size = 0x400, scoped, tag = 'input window, operand 10, single buffered']
    #allocation21 [shape = 'u8[4096]{0}', space=vmem, size = 0x1000, scoped, tag = 'input window, operand 11, single buffered']
    #allocation22 [shape = 's32[1]{0}', space=sflag, size = 0x4, scoped, tag = 'scoped memory for _forward_impl.4']
    #allocation23 [shape = 'u8[512]{0}', space=vmem, size = 0x400, scoped, tag = 'input window, operand 12, single buffered']
    #allocation24 [shape = 'u8[512]{0}', space=vmem, size = 0x400, scoped, tag = 'input window, operand 13, single buffered']
    #allocation25 [shape = 's32[1]{0}', space=sflag, size = 0x4, scoped, tag = 'scoped memory for _forward_impl.4']
    #allocation26 [shape = 'u8[512]{0}', space=vmem, size = 0x400, scoped, tag = 'input window, operand 14, single buffered']
    #allocation27 [shape = 'u8[512]{0}', space=vmem, size = 0x400, scoped, tag = 'input window, operand 15, single buffered']
    #allocation28 [shape = 's32[1]{0}', space=sflag, size = 0x4, scoped, tag = 'scoped memory for _forward_impl.4']
    #allocation29 [shape = 'u8[512]{0}', space=vmem, size = 0x400, scoped, tag = 'input window, operand 16, single buffered']
    #allocation30 [shape = 'u8[4096]{0}', space=vmem, size = 0x1000, scoped, tag = 'input window, operand 17, single buffered']
    #allocation31 [shape = 's32[1]{0}', space=sflag, size = 0x4, scoped, tag = 'scoped memory for _forward_impl.4']
    #allocation32 [shape = 'u8[512]{0}', space=vmem, size = 0x400, scoped, tag = 'input window, operand 18, single buffered']
    #allocation33 [shape = 'u8[8192]{0}', space=vmem, size = 0x2000, scoped, tag = 'input window, operand 19, single buffered']
    #allocation34 [shape = 's32[1]{0}', space=sflag, size = 0x4, scoped, tag = 'scoped memory for _forward_impl.4']
    #allocation35 [shape = 'u8[512]{0}', space=vmem, size = 0x400, scoped, tag = 'input window, operand 20, single buffered']
    #allocation36 [shape = 'u8[4096]{0}', space=vmem, size = 0x1000, scoped, tag = 'output window, operand 0, single buffered']
    %26 = vsyncpa [#allocation4], 0
    %27 = vsyncpa [#allocation7], 0
    %28 = vsyncpa [#allocation10], 0
    %29 = vsyncpa [#allocation13], 0
    %30 = vsyncpa [#allocation16], 0
    %31 = vsyncpa [#allocation19], 0
    %32 = vsyncpa [#allocation22], 0
    %33 = vsyncpa [#allocation25], 0
    %34 = vsyncpa [#allocation28], 0
    %35 = vsyncpa [#allocation31], 0
    %36 = vsyncpa [#allocation34], 0
    %37 = vsyncpa [#allocation5], 0
    // Predicated region
    $region2: #{_forward_impl.4} parent=1 // pred_check
      _
    $region3: #{_forward_impl.4} parent=1 // pred_check_branch
      %39 = sbr.rel (0) target = $region5
    $region4: #{_forward_impl.4} parent=1 // pred_region
      %s41 = ssub.s32 128, 128
      %42 = vsyncadd [#allocation4], %s41
      %s43 = sshll.u32 [#allocation3], 4
      %s44 = int_to_ptr.vmem [resolvable:$true] %s43
      %49 = dma.hbm_to_vmem [thread:$0]  %s0, 128, %s44, [#allocation4], 64, 64, 4
    $region5: #{_forward_impl.4} parent=1 // pred_fallthru
      _
    // Predicated region
    $region6: #{_forward_impl.4} parent=1 // pred_check
      _
    $region7: #{_forward_impl.4} parent=1 // pred_check_branch
      %51 = sbr.rel (0) target = $region9
    $region8: #{_forward_impl.4} parent=1 // pred_region
      %s53 = ssub.s32 256, 256
      %54 = vsyncadd [#allocation7], %s53
      %s55 = sshll.u32 [#allocation6], 4
      %s56 = int_to_ptr.vmem [resolvable:$true] %s55
      %61 = dma.hbm_to_vmem [thread:$0]  %s1, 256, %s56, [#allocation7], 64, 64, 4
    $region9: #{_forward_impl.4} parent=1 // pred_fallthru
      _
    // Predicated region
    $region10: #{_forward_impl.4} parent=1 // pred_check
      _
    $region11: #{_forward_impl.4} parent=1 // pred_check_branch
      %63 = sbr.rel (0) target = $region13
    $region12: #{_forward_impl.4} parent=1 // pred_region
      %s65 = ssub.s32 128, 128
      %66 = vsyncadd [#allocation7], %s65
      %s67 = sshll.u32 [#allocation8], 4
      %s68 = int_to_ptr.vmem [resolvable:$true] %s67
      %73 = dma.hbm_to_vmem [thread:$0]  %s2, 128, %s68, [#allocation7], 64, 64, 4
    $region13: #{_forward_impl.4} parent=1 // pred_fallthru
      _
    // Predicated region
    $region14: #{_forward_impl.4} parent=1 // pred_check
      _
    $region15: #{_forward_impl.4} parent=1 // pred_check_branch
      %75 = sbr.rel (0) target = $region17
    $region16: #{_forward_impl.4} parent=1 // pred_region
      %s77 = ssub.s32 128, 128
      %78 = vsyncadd [#allocation10], %s77
      %s79 = sshll.u32 [#allocation9], 4
      %s80 = int_to_ptr.vmem [resolvable:$true] %s79
      %85 = dma.hbm_to_vmem [thread:$0]  %s3, 128, %s80, [#allocation10], 64, 64, 4
    $region17: #{_forward_impl.4} parent=1 // pred_fallthru
      _
    // Predicated region
    $region18: #{_forward_impl.4} parent=1 // pred_check
      _
    $region19: #{_forward_impl.4} parent=1 // pred_check_branch
      %87 = sbr.rel (0) target = $region21
    $region20: #{_forward_impl.4} parent=1 // pred_region
      %s89 = ssub.s32 16, 16
      %90 = vsyncadd [#allocation10], %s89
      %s92 = sshll.u32 [#allocation11], 4
      %s93 = int_to_ptr.vmem [resolvable:$true] %s92
      %95 = dma.hbm_to_vmem [thread:$0]  %s4, 16, %s93, [#allocation10]
    $region21: #{_forward_impl.4} parent=1 // pred_fallthru
      _
    // Predicated region
    $region22: #{_forward_impl.4} parent=1 // pred_check
      _
    $region23: #{_forward_impl.4} parent=1 // pred_check_branch
      %97 = sbr.rel (0) target = $region25
    $region24: #{_forward_impl.4} parent=1 // pred_region
      %s99 = ssub.s32 128, 128
      %100 = vsyncadd [#allocation13], %s99
      %s101 = sshll.u32 [#allocation12], 4
      %s102 = int_to_ptr.vmem [resolvable:$true] %s101
      %107 = dma.hbm_to_vmem [thread:$0]  %s5, 128, %s102, [#allocation13], 64, 64, 4
    $region25: #{_forward_impl.4} parent=1 // pred_fallthru
      _
    // Predicated region
    $region26: #{_forward_impl.4} parent=1 // pred_check
      _
    $region27: #{_forward_impl.4} parent=1 // pred_check_branch
      %109 = sbr.rel (0) target = $region29
    $region28: #{_forward_impl.4} parent=1 // pred_region
      %s111 = ssub.s32 16, 16
      %112 = vsyncadd [#allocation13], %s111
      %s114 = sshll.u32 [#allocation14], 4
      %s115 = int_to_ptr.vmem [resolvable:$true] %s114
      %117 = dma.hbm_to_vmem [thread:$0]  %s6, 16, %s115, [#allocation13]
    $region29: #{_forward_impl.4} parent=1 // pred_fallthru
      _
    // Predicated region
    $region30: #{_forward_impl.4} parent=1 // pred_check
      _
    $region31: #{_forward_impl.4} parent=1 // pred_check_branch
      %119 = sbr.rel (0) target = $region33
    $region32: #{_forward_impl.4} parent=1 // pred_region
      %s121 = ssub.s32 128, 128
      %122 = vsyncadd [#allocation16], %s121
      %s123 = sshll.u32 [#allocation15], 4
      %s124 = int_to_ptr.vmem [resolvable:$true] %s123
      %129 = dma.hbm_to_vmem [thread:$0]  %s7, 128, %s124, [#allocation16], 64, 64, 4
    $region33: #{_forward_impl.4} parent=1 // pred_fallthru
      _
    // Predicated region
    $region34: #{_forward_impl.4} parent=1 // pred_check
      _
    $region35: #{_forward_impl.4} parent=1 // pred_check_branch
      %131 = sbr.rel (0) target = $region37
    $region36: #{_forward_impl.4} parent=1 // pred_region
      %s133 = ssub.s32 16, 16
      %134 = vsyncadd [#allocation16], %s133
      %s136 = sshll.u32 [#allocation17], 4
      %s137 = int_to_ptr.vmem [resolvable:$true] %s136
      %139 = dma.hbm_to_vmem [thread:$0]  %s8, 16, %s137, [#allocation16]
    $region37: #{_forward_impl.4} parent=1 // pred_fallthru
      _
    // Predicated region
    $region38: #{_forward_impl.4} parent=1 // pred_check
      _
    $region39: #{_forward_impl.4} parent=1 // pred_check_branch
      %141 = sbr.rel (0) target = $region41
    $region40: #{_forward_impl.4} parent=1 // pred_region
      %s143 = ssub.s32 128, 128
      %144 = vsyncadd [#allocation19], %s143
      %s145 = sshll.u32 [#allocation18], 4
      %s146 = int_to_ptr.vmem [resolvable:$true] %s145
      %151 = dma.hbm_to_vmem [thread:$0]  %s9, 128, %s146, [#allocation19], 64, 64, 4
    $region41: #{_forward_impl.4} parent=1 // pred_fallthru
      _
    // Predicated region
    $region42: #{_forward_impl.4} parent=1 // pred_check
      _
    $region43: #{_forward_impl.4} parent=1 // pred_check_branch
      %153 = sbr.rel (0) target = $region45
    $region44: #{_forward_impl.4} parent=1 // pred_region
      %s155 = ssub.s32 16, 16
      %156 = vsyncadd [#allocation19], %s155
      %s158 = sshll.u32 [#allocation20], 4
      %s159 = int_to_ptr.vmem [resolvable:$true] %s158
      %161 = dma.hbm_to_vmem [thread:$0]  %s10, 16, %s159, [#allocation19]
    $region45: #{_forward_impl.4} parent=1 // pred_fallthru
      _
    // Predicated region
    $region46: #{_forward_impl.4} parent=1 // pred_check
      _
    $region47: #{_forward_impl.4} parent=1 // pred_check_branch
      %163 = sbr.rel (0) target = $region49
    $region48: #{_forward_impl.4} parent=1 // pred_region
      %s165 = ssub.s32 128, 128
      %166 = vsyncadd [#allocation22], %s165
      %s167 = sshll.u32 [#allocation21], 4
      %s168 = int_to_ptr.vmem [resolvable:$true] %s167
      %173 = dma.hbm_to_vmem [thread:$0]  %s11, 128, %s168, [#allocation22], 64, 64, 4
    $region49: #{_forward_impl.4} parent=1 // pred_fallthru
      _
    // Predicated region
    $region50: #{_forward_impl.4} parent=1 // pred_check
      _
    $region51: #{_forward_impl.4} parent=1 // pred_check_branch
      %175 = sbr.rel (0) target = $region53
    $region52: #{_forward_impl.4} parent=1 // pred_region
      %s177 = ssub.s32 16, 16
      %178 = vsyncadd [#allocation22], %s177
      %s180 = sshll.u32 [#allocation23], 4
      %s181 = int_to_ptr.vmem [resolvable:$true] %s180
      %183 = dma.hbm_to_vmem [thread:$0]  %s12, 16, %s181, [#allocation22]
    $region53: #{_forward_impl.4} parent=1 // pred_fallthru
      _
    // Predicated region
    $region54: #{_forward_impl.4} parent=1 // pred_check
      _
    $region55: #{_forward_impl.4} parent=1 // pred_check_branch
      %185 = sbr.rel (0) target = $region57
    $region56: #{_forward_impl.4} parent=1 // pred_region
      %s187 = ssub.s32 16, 16
      %188 = vsyncadd [#allocation25], %s187
      %s190 = sshll.u32 [#allocation24], 4
      %s191 = int_to_ptr.vmem [resolvable:$true] %s190
      %193 = dma.hbm_to_vmem [thread:$0]  %s13, 16, %s191, [#allocation25]
    $region57: #{_forward_impl.4} parent=1 // pred_fallthru
      _
    // Predicated region
    $region58: #{_forward_impl.4} parent=1 // pred_check
      _
    $region59: #{_forward_impl.4} parent=1 // pred_check_branch
      %195 = sbr.rel (0) target = $region61
    $region60: #{_forward_impl.4} parent=1 // pred_region
      %s197 = ssub.s32 16, 16
      %198 = vsyncadd [#allocation25], %s197
      %s200 = sshll.u32 [#allocation26], 4
      %s201 = int_to_ptr.vmem [resolvable:$true] %s200
      %203 = dma.hbm_to_vmem [thread:$0]  %s14, 16, %s201, [#allocation25]
    $region61: #{_forward_impl.4} parent=1 // pred_fallthru
      _
    // Predicated region
    $region62: #{_forward_impl.4} parent=1 // pred_check
      _
    $region63: #{_forward_impl.4} parent=1 // pred_check_branch
      %205 = sbr.rel (0) target = $region65
    $region64: #{_forward_impl.4} parent=1 // pred_region
      %s207 = ssub.s32 16, 16
      %208 = vsyncadd [#allocation28], %s207
      %s210 = sshll.u32 [#allocation27], 4
      %s211 = int_to_ptr.vmem [resolvable:$true] %s210
      %213 = dma.hbm_to_vmem [thread:$0]  %s15, 16, %s211, [#allocation28]
    $region65: #{_forward_impl.4} parent=1 // pred_fallthru
      _
    // Predicated region
    $region66: #{_forward_impl.4} parent=1 // pred_check
      _
    $region67: #{_forward_impl.4} parent=1 // pred_check_branch
      %215 = sbr.rel (0) target = $region69
    $region68: #{_forward_impl.4} parent=1 // pred_region
      %s217 = ssub.s32 16, 16
      %218 = vsyncadd [#allocation28], %s217
      %s220 = sshll.u32 [#allocation29], 4
      %s221 = int_to_ptr.vmem [resolvable:$true] %s220
      %223 = dma.hbm_to_vmem [thread:$0]  %s16, 16, %s221, [#allocation28]
    $region69: #{_forward_impl.4} parent=1 // pred_fallthru
      _
    // Predicated region
    $region70: #{_forward_impl.4} parent=1 // pred_check
      _
    $region71: #{_forward_impl.4} parent=1 // pred_check_branch
      %225 = sbr.rel (0) target = $region73
    $region72: #{_forward_impl.4} parent=1 // pred_region
      %s227 = ssub.s32 128, 128
      %228 = vsyncadd [#allocation31], %s227
      %s229 = sshll.u32 [#allocation30], 4
      %s230 = int_to_ptr.vmem [resolvable:$true] %s229
      %235 = dma.hbm_to_vmem [thread:$0]  %s17, 128, %s230, [#allocation31], 64, 64, 4
    $region73: #{_forward_impl.4} parent=1 // pred_fallthru
      _
    // Predicated region
    $region74: #{_forward_impl.4} parent=1 // pred_check
      _
    $region75: #{_forward_impl.4} parent=1 // pred_check_branch
      %237 = sbr.rel (0) target = $region77
    $region76: #{_forward_impl.4} parent=1 // pred_region
      %s239 = ssub.s32 16, 16
      %240 = vsyncadd [#allocation31], %s239
      %s242 = sshll.u32 [#allocation32], 4
      %s243 = int_to_ptr.vmem [resolvable:$true] %s242
      %245 = dma.hbm_to_vmem [thread:$0]  %s18, 16, %s243, [#allocation31]
    $region77: #{_forward_impl.4} parent=1 // pred_fallthru
      _
    // Predicated region
    $region78: #{_forward_impl.4} parent=1 // pred_check
      _
    $region79: #{_forward_impl.4} parent=1 // pred_check_branch
      %247 = sbr.rel (0) target = $region81
    $region80: #{_forward_impl.4} parent=1 // pred_region
      %s249 = ssub.s32 256, 256
      %250 = vsyncadd [#allocation34], %s249
      %s251 = sshll.u32 [#allocation33], 4
      %s252 = int_to_ptr.vmem [resolvable:$true] %s251
      %257 = dma.hbm_to_vmem [thread:$0]  %s19, 256, %s252, [#allocation34], 64, 64, 4
    $region81: #{_forward_impl.4} parent=1 // pred_fallthru
      _
    // Predicated region
    $region82: #{_forward_impl.4} parent=1 // pred_check
      _
    $region83: #{_forward_impl.4} parent=1 // pred_check_branch
      %259 = sbr.rel (0) target = $region85
    $region84: #{_forward_impl.4} parent=1 // pred_region
      %s261 = ssub.s32 16, 16
      %262 = vsyncadd [#allocation34], %s261
      %s264 = sshll.u32 [#allocation35], 4
      %s265 = int_to_ptr.vmem [resolvable:$true] %s264
      %267 = dma.hbm_to_vmem [thread:$0]  %s20, 16, %s265, [#allocation34]
    $region85: #{_forward_impl.4} parent=1 // pred_fallthru
      _
    // Predicated region
    $region86: #{_forward_impl.4} parent=1 // pred_check
      _
    $region87: #{_forward_impl.4} parent=1 // pred_check_branch
      %269 = sbr.rel (0) target = $region89
    $region88: #{_forward_impl.4} parent=1 // pred_region
      %270 = dma.done [#allocation4], 128
    $region89: #{_forward_impl.4} parent=1 // pred_fallthru
      _
    // Predicated region
    $region90: #{_forward_impl.4} parent=1 // pred_check
      _
    $region91: #{_forward_impl.4} parent=1 // pred_check_branch
      %272 = sbr.rel (0) target = $region93
    $region92: #{_forward_impl.4} parent=1 // pred_region
      %273 = dma.done [#allocation7], 256
    $region93: #{_forward_impl.4} parent=1 // pred_fallthru
      _
    // Predicated region
    $region94: #{_forward_impl.4} parent=1 // pred_check
      _
    $region95: #{_forward_impl.4} parent=1 // pred_check_branch
      %275 = sbr.rel (0) target = $region97
    $region96: #{_forward_impl.4} parent=1 // pred_region
      %276 = dma.done [#allocation7], 128
    $region97: #{_forward_impl.4} parent=1 // pred_fallthru
      _
    // Predicated region
    $region98: #{_forward_impl.4} parent=1 // pred_check
      _
    $region99: #{_forward_impl.4} parent=1 // pred_check_branch
      %278 = sbr.rel (0) target = $region101
    $region100: #{_forward_impl.4} parent=1 // pred_region
      %279 = dma.done [#allocation10], 128
    $region101: #{_forward_impl.4} parent=1 // pred_fallthru
      _
    // Predicated region
    $region102: #{_forward_impl.4} parent=1 // pred_check
      _
    $region103: #{_forward_impl.4} parent=1 // pred_check_branch
      %281 = sbr.rel (0) target = $region105
    $region104: #{_forward_impl.4} parent=1 // pred_region
      %282 = dma.done [#allocation10], 16
    $region105: #{_forward_impl.4} parent=1 // pred_fallthru
      _
    // Predicated region
    $region106: #{_forward_impl.4} parent=1 // pred_check
      _
    $region107: #{_forward_impl.4} parent=1 // pred_check_branch
      %284 = sbr.rel (0) target = $region109
    $region108: #{_forward_impl.4} parent=1 // pred_region
      %285 = dma.done [#allocation13], 128
    $region109: #{_forward_impl.4} parent=1 // pred_fallthru
      _
    // Predicated region
    $region110: #{_forward_impl.4} parent=1 // pred_check
      _
    $region111: #{_forward_impl.4} parent=1 // pred_check_branch
      %287 = sbr.rel (0) target = $region113
    $region112: #{_forward_impl.4} parent=1 // pred_region
      %288 = dma.done [#allocation13], 16
    $region113: #{_forward_impl.4} parent=1 // pred_fallthru
      _
    // Predicated region
    $region114: #{_forward_impl.4} parent=1 // pred_check
      _
    $region115: #{_forward_impl.4} parent=1 // pred_check_branch
      %290 = sbr.rel (0) target = $region117
    $region116: #{_forward_impl.4} parent=1 // pred_region
      %291 = dma.done [#allocation16], 128
    $region117: #{_forward_impl.4} parent=1 // pred_fallthru
      _
    // Predicated region
    $region118: #{_forward_impl.4} parent=1 // pred_check
      _
    $region119: #{_forward_impl.4} parent=1 // pred_check_branch
      %293 = sbr.rel (0) target = $region121
    $region120: #{_forward_impl.4} parent=1 // pred_region
      %294 = dma.done [#allocation16], 16
    $region121: #{_forward_impl.4} parent=1 // pred_fallthru
      _
    // Predicated region
    $region122: #{_forward_impl.4} parent=1 // pred_check
      _
    $region123: #{_forward_impl.4} parent=1 // pred_check_branch
      %296 = sbr.rel (0) target = $region125
    $region124: #{_forward_impl.4} parent=1 // pred_region
      %297 = dma.done [#allocation19], 128
    $region125: #{_forward_impl.4} parent=1 // pred_fallthru
      _
    // Predicated region
    $region126: #{_forward_impl.4} parent=1 // pred_check
      _
    $region127: #{_forward_impl.4} parent=1 // pred_check_branch
      %299 = sbr.rel (0) target = $region129
    $region128: #{_forward_impl.4} parent=1 // pred_region
      %300 = dma.done [#allocation19], 16
    $region129: #{_forward_impl.4} parent=1 // pred_fallthru
      _
    // Predicated region
    $region130: #{_forward_impl.4} parent=1 // pred_check
      _
    $region131: #{_forward_impl.4} parent=1 // pred_check_branch
      %302 = sbr.rel (0) target = $region133
    $region132: #{_forward_impl.4} parent=1 // pred_region
      %303 = dma.done [#allocation22], 128
    $region133: #{_forward_impl.4} parent=1 // pred_fallthru
      _
    // Predicated region
    $region134: #{_forward_impl.4} parent=1 // pred_check
      _
    $region135: #{_forward_impl.4} parent=1 // pred_check_branch
      %305 = sbr.rel (0) target = $region137
    $region136: #{_forward_impl.4} parent=1 // pred_region
      %306 = dma.done [#allocation22], 16
    $region137: #{_forward_impl.4} parent=1 // pred_fallthru
      _
    // Predicated region
    $region138: #{_forward_impl.4} parent=1 // pred_check
      _
    $region139: #{_forward_impl.4} parent=1 // pred_check_branch
      %308 = sbr.rel (0) target = $region141
    $region140: #{_forward_impl.4} parent=1 // pred_region
      %309 = dma.done [#allocation25], 16
    $region141: #{_forward_impl.4} parent=1 // pred_fallthru
      _
    // Predicated region
    $region142: #{_forward_impl.4} parent=1 // pred_check
      _
    $region143: #{_forward_impl.4} parent=1 // pred_check_branch
      %311 = sbr.rel (0) target = $region145
    $region144: #{_forward_impl.4} parent=1 // pred_region
      %312 = dma.done [#allocation25], 16
    $region145: #{_forward_impl.4} parent=1 // pred_fallthru
      _
    // Predicated region
    $region146: #{_forward_impl.4} parent=1 // pred_check
      _
    $region147: #{_forward_impl.4} parent=1 // pred_check_branch
      %314 = sbr.rel (0) target = $region149
    $region148: #{_forward_impl.4} parent=1 // pred_region
      %315 = dma.done [#allocation28], 16
    $region149: #{_forward_impl.4} parent=1 // pred_fallthru
      _
    // Predicated region
    $region150: #{_forward_impl.4} parent=1 // pred_check
      _
    $region151: #{_forward_impl.4} parent=1 // pred_check_branch
      %317 = sbr.rel (0) target = $region153
    $region152: #{_forward_impl.4} parent=1 // pred_region
      %318 = dma.done [#allocation28], 16
    $region153: #{_forward_impl.4} parent=1 // pred_fallthru
      _
    // Predicated region
    $region154: #{_forward_impl.4} parent=1 // pred_check
      _
    $region155: #{_forward_impl.4} parent=1 // pred_check_branch
      %320 = sbr.rel (0) target = $region157
    $region156: #{_forward_impl.4} parent=1 // pred_region
      %321 = dma.done [#allocation31], 128
    $region157: #{_forward_impl.4} parent=1 // pred_fallthru
      _
    // Predicated region
    $region158: #{_forward_impl.4} parent=1 // pred_check
      _
    $region159: #{_forward_impl.4} parent=1 // pred_check_branch
      %323 = sbr.rel (0) target = $region161
    $region160: #{_forward_impl.4} parent=1 // pred_region
      %324 = dma.done [#allocation31], 16
    $region161: #{_forward_impl.4} parent=1 // pred_fallthru
      _
    // Predicated region
    $region162: #{_forward_impl.4} parent=1 // pred_check
      _
    $region163: #{_forward_impl.4} parent=1 // pred_check_branch
      %326 = sbr.rel (0) target = $region165
    $region164: #{_forward_impl.4} parent=1 // pred_region
      %327 = dma.done [#allocation34], 256
    $region165: #{_forward_impl.4} parent=1 // pred_fallthru
      _
    // Predicated region
    $region166: #{_forward_impl.4} parent=1 // pred_check
      _
    $region167: #{_forward_impl.4} parent=1 // pred_check_branch
      %329 = sbr.rel (0) target = $region169
    $region168: #{_forward_impl.4} parent=1 // pred_region
      %330 = dma.done [#allocation34], 16
    $region169: #{_forward_impl.4} parent=1 // pred_fallthru
      _
    %p332 = scmp.eq.s32.totalorder 0, 0
    // Predicated region
    $region170: #{_forward_impl.4} parent=1 // pred_check
      %p333 = pneg %p332
    $region171: #{_forward_impl.4} parent=1 // pred_check_branch
      %335 = sbr.rel (%p333) target = $region173
    $region172: #{_forward_impl.4} parent=1 // pred_region
      %v336 = vld [vmem:[#allocation3] sm:$0xf]
      %v337 = vld [vmem:[#allocation3 + $0x4] sm:$0xf]
      %v340 = vcombine.low %v336, %v337
      %v342 = vpack.c.bf16 %v340, %v340
      %v343 = vld [vmem:[#allocation6] sm:$0xf]
      %v344 = vld [vmem:[#allocation6 + $0x4] sm:$0xf]
      %v345 = vld [vmem:[#allocation6 + $0x8] sm:$0xf]
      %v346 = vld [vmem:[#allocation6 + $0xc] sm:$0xf]
      %v351 = vunpack.c.l.b16 %v343
      %v352 = vunpack.c.l.b16 %v344
      %v353 = vunpack.c.l.b16 %v345
      %v354 = vunpack.c.l.b16 %v346
      %v355 = vpack.c.b16 %v352, %v351
      %v356 = vpack.c.b16 %v354, %v353
      %vm359 = vcmask 261120
      %v361 = vsel %vm359, %v342, 0
      %363 = vmatprep.subr.bf16.mxu0 0
      %364 = vmatpush1.bf16.msra.mxu0 %v355
      %365 = vmatprep.subr.bf16.mxu0 0
      %366 = vmatpush1.bf16.msra.mxu0 %v356
      %367 = vmatprep.subr.bf16.mxu0 0
      %368 = vmatpush1.bf16.msra.mxu0 0
      %369 = vmatprep.subr.bf16.mxu0 0
      %370 = vmatpush1.bf16.msra.mxu0 0
      %371 = vmatprep.subr.bf16.mxu0 0
      %372 = vmatpush1.bf16.msra.mxu0 0
      %373 = vmatprep.subr.bf16.mxu0 0
      %374 = vmatpush1.bf16.msra.mxu0 0
      %375 = vmatprep.subr.bf16.mxu0 0
      %376 = vmatpush1.bf16.msra.mxu0 0
      %377 = vmatprep.subr.bf16.mxu0 0
      %378 = vmatpush1.bf16.msra.mxu0 0
      %379 = vmatprep.subr.bf16.mxu0 0
      %380 = vmatpush1.bf16.msra.mxu0 0
      %381 = vmatprep.subr.bf16.mxu0 0
      %382 = vmatpush1.bf16.msra.mxu0 0
      %383 = vmatprep.subr.bf16.mxu0 0
      %384 = vmatpush1.bf16.msra.mxu0 0
      %385 = vmatprep.subr.bf16.mxu0 0
      %386 = vmatpush1.bf16.msra.mxu0 0
      %387 = vmatprep.subr.bf16.mxu0 0
      %388 = vmatpush1.bf16.msra.mxu0 0
      %389 = vmatprep.subr.bf16.mxu0 0
      %390 = vmatpush1.bf16.msra.mxu0 0
      %391 = vmatprep.subr.bf16.mxu0 0
      %392 = vmatpush1.bf16.msra.mxu0 0
      %393 = vmatprep.subr.bf16.mxu0 0
      %394 = vmatpush1.bf16.msra.mxu0 0
      %395 = vmatprep.mubr.bf16.mxu0 0
      %396 = vmatmul.mubr.bf16.gmra.mrb[0].mxu0 %v361
      %v397 = vpop.f32.mrb[0].mxu0
      %v398 = vadd.f32 0.0, %v397
      %v399 = vpop.f32.mrb[0].mxu0
      %v400 = vpop.f32.mrb[0].mxu0
      %v401 = vpop.f32.mrb[0].mxu0
      %402 = vdwg.mxu0
      %v404 = vcombine.high %v398, %v398
      %v406 = vld [vmem:[#allocation8] sm:$0xf]
      %v407 = vld [vmem:[#allocation8 + $0x4] sm:$0xf]
      %v408 = vadd.f32 %v398, %v406
      %v409 = vadd.f32 %v404, %v407
      %vm410 = vcmask 125952
      %411 = vst.msk [vmem:[#allocation2] sm:$0xf] %vm410, %v408
      %412 = vst.msk [vmem:[#allocation2 + $0x8] sm:$0xf] %vm410, %v409
      %v413 = vld [vmem:[#allocation11] sm:$0x1]
      %v414 = vld [vmem:[#allocation9] sm:$0xf]
      %v415 = vld [vmem:[#allocation9 + $0x4] sm:$0xf]
      %v417 = vlaneseq
      %v418 = vshrl.u32 %v417, 7
      %v419 = vsub.s32 0, %v418
      %v420 = vrot.slane %v413, %v419
      %v422 = vadd.f32 %v420, %v414
      %v423 = vadd.f32 %v420, %v415
      %424 = vst.msk [vmem:[#allocation2 + $0x4] sm:$0xf] %vm410, %v422
      %425 = vst.msk [vmem:[#allocation2 + $0xc] sm:$0xf] %vm410, %v423
    $region173: #{_forward_impl.4} parent=1 // pred_fallthru
      _
    %v426 = vld [vmem:[#allocation2] sm:$0xff]
    %v427 = vld [vmem:[#allocation2 + $0x8] sm:$0xff]
    %v428 = vld [vmem:[#allocation24] sm:$0x1]
    %v429 = vld [vmem:[#allocation26] sm:$0x1]
    %vm430 = vcmask 130048
    %v431 = vsel %vm430, %v426, 0.0
    %432 = vadd.xlane.f32.xlu0 %v431
    %v433 = vpop.xlane.xlu0 %432
    %v434 = vsel %vm430, %v427, 0.0
    %435 = vadd.xlane.f32.xlu0 %v434
    %v436 = vpop.xlane.xlu0 %435
    %v437 = vrcp.pop 16.0
    %v438 = vmul.f32 %v433, %v437
    %v439 = vmul.f32 %v436, %v437
    %v440 = vsub.f32 %v426, %v438
    %v441 = vsub.f32 %v427, %v439
    %v442 = vmul.f32 %v440, %v440
    %v443 = vmul.f32 %v441, %v441
    %v444 = vsel %vm430, %v442, 0.0
    %445 = vadd.xlane.f32.xlu0 %v444
    %v446 = vpop.xlane.xlu0 %445
    %v447 = vsel %vm430, %v443, 0.0
    %448 = vadd.xlane.f32.xlu0 %v447
    %v449 = vpop.xlane.xlu0 %448
    %v450 = vmul.f32 %v446, %v437
    %v451 = vmul.f32 %v449, %v437
    %v452 = vadd.f32 %v450, 1e-12
    %v453 = vadd.f32 %v451, 1e-12
    %v454 = vrsqrt.pop %v452
    %v455 = vrsqrt.pop %v453
    %v456 = vmul.f32 %v440, %v454
    %v457 = vmul.f32 %v441, %v455
    %v459 = vlaneseq
    %v460 = vshrl.u32 %v459, 7
    %v461 = vsub.s32 0, %v460
    %v462 = vrot.slane %v428, %v461
    %v464 = vmul.f32 %v456, %v462
    %v465 = vmul.f32 %v457, %v462
    %v467 = vlaneseq
    %v468 = vshrl.u32 %v467, 7
    %v469 = vsub.s32 0, %v468
    %v470 = vrot.slane %v429, %v469
    %v472 = vadd.f32 %v464, %v470
    %v473 = vadd.f32 %v465, %v470
    %v474 = vpack.c.bf16 %v473, %v472
    %v475 = vld [vmem:[#allocation12] sm:$0xf]
    %v476 = vld [vmem:[#allocation12 + $0x4] sm:$0xf]
    %v477 = vld [vmem:[#allocation14] sm:$0x1]
    %v479 = vlaneseq
    %v480 = vshrl.u32 %v479, 7
    %v481 = vsub.s32 0, %v480
    %v482 = vrot.slane %v477, %v481
    %v486 = vunpack.c.l.b16 %v475
    %v487 = vunpack.c.l.b16 %v476
    %v488 = vpack.c.b16 %v487, %v486
    %v491 = vsel %vm430, %v474, 0
    %493 = vmatprep.subr.bf16.mxu0 0
    %494 = vmatpush1.bf16.msra.mxu0 %v488
    %495 = vmatprep.subr.bf16.mxu0 0
    %496 = vmatpush1.bf16.msra.mxu0 0
    %497 = vmatprep.subr.bf16.mxu0 0
    %498 = vmatpush1.bf16.msra.mxu0 0
    %499 = vmatprep.subr.bf16.mxu0 0
    %500 = vmatpush1.bf16.msra.mxu0 0
    %501 = vmatprep.subr.bf16.mxu0 0
    %502 = vmatpush1.bf16.msra.mxu0 0
    %503 = vmatprep.subr.bf16.mxu0 0
    %504 = vmatpush1.bf16.msra.mxu0 0
    %505 = vmatprep.subr.bf16.mxu0 0
    %506 = vmatpush1.bf16.msra.mxu0 0
    %507 = vmatprep.subr.bf16.mxu0 0
    %508 = vmatpush1.bf16.msra.mxu0 0
    %509 = vmatprep.subr.bf16.mxu0 0
    %510 = vmatpush1.bf16.msra.mxu0 0
    %511 = vmatprep.subr.bf16.mxu0 0
    %512 = vmatpush1.bf16.msra.mxu0 0
    %513 = vmatprep.subr.bf16.mxu0 0
    %514 = vmatpush1.bf16.msra.mxu0 0
    %515 = vmatprep.subr.bf16.mxu0 0
    %516 = vmatpush1.bf16.msra.mxu0 0
    %517 = vmatprep.subr.bf16.mxu0 0
    %518 = vmatpush1.bf16.msra.mxu0 0
    %519 = vmatprep.subr.bf16.mxu0 0
    %520 = vmatpush1.bf16.msra.mxu0 0
    %521 = vmatprep.subr.bf16.mxu0 0
    %522 = vmatpush1.bf16.msra.mxu0 0
    %523 = vmatprep.subr.bf16.mxu0 0
    %524 = vmatpush1.bf16.msra.mxu0 0
    %525 = vmatprep.mubr.bf16.mxu0 0
    %526 = vmatmul.mubr.bf16.gmra.mrb[0].mxu0 %v491
    %v527 = vpop.f32.mrb[0].mxu0
    %v528 = vadd.f32 %v482, %v527
    %v529 = vpop.f32.mrb[0].mxu0
    %v530 = vpop.f32.mrb[0].mxu0
    %v531 = vadd.f32 %v482, %v530
    %v532 = vpop.f32.mrb[0].mxu0
    %533 = vdwg.mxu0
    %v534 = vld [vmem:[#allocation15] sm:$0xf]
    %v535 = vld [vmem:[#allocation15 + $0x4] sm:$0xf]
    %v536 = vld [vmem:[#allocation17] sm:$0x1]
    %v538 = vlaneseq
    %v539 = vshrl.u32 %v538, 7
    %v540 = vsub.s32 0, %v539
    %v541 = vrot.slane %v536, %v540
    %v545 = vunpack.c.l.b16 %v534
    %v546 = vunpack.c.l.b16 %v535
    %v547 = vpack.c.b16 %v546, %v545
    %549 = vmatprep.subr.bf16.mxu0 0
    %550 = vmatpush1.bf16.msra.mxu0 %v547
    %551 = vmatprep.subr.bf16.mxu0 0
    %552 = vmatpush1.bf16.msra.mxu0 0
    %553 = vmatprep.subr.bf16.mxu0 0
    %554 = vmatpush1.bf16.msra.mxu0 0
    %555 = vmatprep.subr.bf16.mxu0 0
    %556 = vmatpush1.bf16.msra.mxu0 0
    %557 = vmatprep.subr.bf16.mxu0 0
    %558 = vmatpush1.bf16.msra.mxu0 0
    %559 = vmatprep.subr.bf16.mxu0 0
    %560 = vmatpush1.bf16.msra.mxu0 0
    %561 = vmatprep.subr.bf16.mxu0 0
    %562 = vmatpush1.bf16.msra.mxu0 0
    %563 = vmatprep.subr.bf16.mxu0 0
    %564 = vmatpush1.bf16.msra.mxu0 0
    %565 = vmatprep.subr.bf16.mxu0 0
    %566 = vmatpush1.bf16.msra.mxu0 0
    %567 = vmatprep.subr.bf16.mxu0 0
    %568 = vmatpush1.bf16.msra.mxu0 0
    %569 = vmatprep.subr.bf16.mxu0 0
    %570 = vmatpush1.bf16.msra.mxu0 0
    %571 = vmatprep.subr.bf16.mxu0 0
    %572 = vmatpush1.bf16.msra.mxu0 0
    %573 = vmatprep.subr.bf16.mxu0 0
    %574 = vmatpush1.bf16.msra.mxu0 0
    %575 = vmatprep.subr.bf16.mxu0 0
    %576 = vmatpush1.bf16.msra.mxu0 0
    %577 = vmatprep.subr.bf16.mxu0 0
    %578 = vmatpush1.bf16.msra.mxu0 0
    %579 = vmatprep.subr.bf16.mxu0 0
    %580 = vmatpush1.bf16.msra.mxu0 0
    %581 = vmatprep.mubr.bf16.mxu0 0
    %582 = vmatmul.mubr.bf16.gmra.mrb[0].mxu0 %v491
    %v583 = vpop.f32.mrb[0].mxu0
    %v584 = vadd.f32 %v541, %v583
    %v585 = vpop.f32.mrb[0].mxu0
    %v586 = vpop.f32.mrb[0].mxu0
    %v587 = vadd.f32 %v541, %v586
    %v588 = vpop.f32.mrb[0].mxu0
    %589 = vdwg.mxu0
    %v590 = vld [vmem:[#allocation18] sm:$0xf]
    %v591 = vld [vmem:[#allocation18 + $0x4] sm:$0xf]
    %v592 = vld [vmem:[#allocation20] sm:$0x1]
    %v594 = vlaneseq
    %v595 = vshrl.u32 %v594, 7
    %v596 = vsub.s32 0, %v595
    %v597 = vrot.slane %v592, %v596
    %v601 = vunpack.c.l.b16 %v590
    %v602 = vunpack.c.l.b16 %v591
    %v603 = vpack.c.b16 %v602, %v601
    %605 = vmatprep.subr.bf16.mxu0 0
    %606 = vmatpush1.bf16.msra.mxu0 %v603
    %607 = vmatprep.subr.bf16.mxu0 0
    %608 = vmatpush1.bf16.msra.mxu0 0
    %609 = vmatprep.subr.bf16.mxu0 0
    %610 = vmatpush1.bf16.msra.mxu0 0
    %611 = vmatprep.subr.bf16.mxu0 0
    %612 = vmatpush1.bf16.msra.mxu0 0
    %613 = vmatprep.subr.bf16.mxu0 0
    %614 = vmatpush1.bf16.msra.mxu0 0
    %615 = vmatprep.subr.bf16.mxu0 0
    %616 = vmatpush1.bf16.msra.mxu0 0
    %617 = vmatprep.subr.bf16.mxu0 0
    %618 = vmatpush1.bf16.msra.mxu0 0
    %619 = vmatprep.subr.bf16.mxu0 0
    %620 = vmatpush1.bf16.msra.mxu0 0
    %621 = vmatprep.subr.bf16.mxu0 0
    %622 = vmatpush1.bf16.msra.mxu0 0
    %623 = vmatprep.subr.bf16.mxu0 0
    %624 = vmatpush1.bf16.msra.mxu0 0
    %625 = vmatprep.subr.bf16.mxu0 0
    %626 = vmatpush1.bf16.msra.mxu0 0
    %627 = vmatprep.subr.bf16.mxu0 0
    %628 = vmatpush1.bf16.msra.mxu0 0
    %629 = vmatprep.subr.bf16.mxu0 0
    %630 = vmatpush1.bf16.msra.mxu0 0
    %631 = vmatprep.subr.bf16.mxu0 0
    %632 = vmatpush1.bf16.msra.mxu0 0
    %633 = vmatprep.subr.bf16.mxu0 0
    %634 = vmatpush1.bf16.msra.mxu0 0
    %635 = vmatprep.subr.bf16.mxu0 0
    %636 = vmatpush1.bf16.msra.mxu0 0
    %637 = vmatprep.mubr.bf16.mxu0 0
    %638 = vmatmul.mubr.bf16.gmra.mrb[0].mxu0 %v491
    %v639 = vpop.f32.mrb[0].mxu0
    %v640 = vadd.f32 %v597, %v639
    %v641 = vpop.f32.mrb[0].mxu0
    %v642 = vpop.f32.mrb[0].mxu0
    %v643 = vadd.f32 %v597, %v642
    %v644 = vpop.f32.mrb[0].mxu0
    %645 = vdwg.mxu0
    %v646 = vpack.c.bf16 %v528, %v528
    %v647 = vpack.c.bf16 %v531, %v531
    %v648 = vpack.c.bf16 %v584, %v584
    %v649 = vpack.c.bf16 %v587, %v587
    %v650 = vpack.c.bf16 %v640, %v640
    %v651 = vpack.c.bf16 %v643, %v643
    %vm652 = vcmask 64512
    %v654 = vsel %vm652, %v646, 0
    %v657 = vsel %vm652, %v648, 0
    %659 = vmatprep.subr.bf16.mxu0 0
    %660 = vmatpush1.bf16.xpose.msra.mxu0 %v657
    %661 = vmatprep.subr.bf16.mxu0 0
    %662 = vmatpush1.bf16.xpose.msra.mxu0 0
    %663 = vmatprep.subr.bf16.mxu0 0
    %664 = vmatpush1.bf16.xpose.msra.mxu0 0
    %665 = vmatprep.subr.bf16.mxu0 0
    %666 = vmatpush1.bf16.xpose.msra.mxu0 0
    %667 = vmatprep.subr.bf16.mxu0 0
    %668 = vmatpush1.bf16.xpose.msra.mxu0 0
    %669 = vmatprep.subr.bf16.mxu0 0
    %670 = vmatpush1.bf16.xpose.msra.mxu0 0
    %671 = vmatprep.subr.bf16.mxu0 0
    %672 = vmatpush1.bf16.xpose.msra.mxu0 0
    %673 = vmatprep.subr.bf16.mxu0 0
    %674 = vmatpush1.bf16.xpose.msra.mxu0 0
    %675 = vmatprep.subr.bf16.mxu0 0
    %676 = vmatpush1.bf16.xpose.msra.mxu0 0
    %677 = vmatprep.subr.bf16.mxu0 0
    %678 = vmatpush1.bf16.xpose.msra.mxu0 0
    %679 = vmatprep.subr.bf16.mxu0 0
    %680 = vmatpush1.bf16.xpose.msra.mxu0 0
    %681 = vmatprep.subr.bf16.mxu0 0
    %682 = vmatpush1.bf16.xpose.msra.mxu0 0
    %683 = vmatprep.subr.bf16.mxu0 0
    %684 = vmatpush1.bf16.xpose.msra.mxu0 0
    %685 = vmatprep.subr.bf16.mxu0 0
    %686 = vmatpush1.bf16.xpose.msra.mxu0 0
    %687 = vmatprep.subr.bf16.mxu0 0
    %688 = vmatpush1.bf16.xpose.msra.mxu0 0
    %689 = vmatprep.subr.bf16.mxu0 0
    %690 = vmatpush1.bf16.xpose.msra.mxu0 0
    %691 = vmatprep.mubr.bf16.mxu0 0
    %692 = vmatmul.mubr.bf16.gmra.mrb[0].mxu0 %v654
    %v693 = vpop.f32.mrb[0].mxu0
    %v694 = vadd.f32 0.0, %v693
    %v695 = vpop.f32.mrb[0].mxu0
    %v696 = vpop.f32.mrb[0].mxu0
    %v697 = vpop.f32.mrb[0].mxu0
    %698 = vdwg.mxu0
    %v700 = vsel %vm652, %v647, 0
    %v703 = vsel %vm652, %v649, 0
    %705 = vmatprep.subr.bf16.mxu0 0
    %706 = vmatpush1.bf16.xpose.msra.mxu0 %v703
    %707 = vmatprep.subr.bf16.mxu0 0
    %708 = vmatpush1.bf16.xpose.msra.mxu0 0
    %709 = vmatprep.subr.bf16.mxu0 0
    %710 = vmatpush1.bf16.xpose.msra.mxu0 0
    %711 = vmatprep.subr.bf16.mxu0 0
    %712 = vmatpush1.bf16.xpose.msra.mxu0 0
    %713 = vmatprep.subr.bf16.mxu0 0
    %714 = vmatpush1.bf16.xpose.msra.mxu0 0
    %715 = vmatprep.subr.bf16.mxu0 0
    %716 = vmatpush1.bf16.xpose.msra.mxu0 0
    %717 = vmatprep.subr.bf16.mxu0 0
    %718 = vmatpush1.bf16.xpose.msra.mxu0 0
    %719 = vmatprep.subr.bf16.mxu0 0
    %720 = vmatpush1.bf16.xpose.msra.mxu0 0
    %721 = vmatprep.subr.bf16.mxu0 0
    %722 = vmatpush1.bf16.xpose.msra.mxu0 0
    %723 = vmatprep.subr.bf16.mxu0 0
    %724 = vmatpush1.bf16.xpose.msra.mxu0 0
    %725 = vmatprep.subr.bf16.mxu0 0
    %726 = vmatpush1.bf16.xpose.msra.mxu0 0
    %727 = vmatprep.subr.bf16.mxu0 0
    %728 = vmatpush1.bf16.xpose.msra.mxu0 0
    %729 = vmatprep.subr.bf16.mxu0 0
    %730 = vmatpush1.bf16.xpose.msra.mxu0 0
    %731 = vmatprep.subr.bf16.mxu0 0
    %732 = vmatpush1.bf16.xpose.msra.mxu0 0
    %733 = vmatprep.subr.bf16.mxu0 0
    %734 = vmatpush1.bf16.xpose.msra.mxu0 0
    %735 = vmatprep.subr.bf16.mxu0 0
    %736 = vmatpush1.bf16.xpose.msra.mxu0 0
    %737 = vmatprep.mubr.bf16.mxu0 0
    %738 = vmatmul.mubr.bf16.gmra.mrb[0].mxu0 %v700
    %v739 = vpop.f32.mrb[0].mxu0
    %v740 = vadd.f32 0.0, %v739
    %v741 = vpop.f32.mrb[0].mxu0
    %v742 = vpop.f32.mrb[0].mxu0
    %v743 = vpop.f32.mrb[0].mxu0
    %744 = vdwg.mxu0
    %v745 = vmul.f32 %v694, 0.35355338
    %v746 = vmul.f32 %v740, 0.35355338
    %v747 = vsel %vm652, %v745, -inf
    %748 = vmax.xlane.f32.xlu0 %v747
    %v749 = vpop.xlane.xlu0 %748
    %v750 = vsel %vm652, %v746, -inf
    %751 = vmax.xlane.f32.xlu0 %v750
    %v752 = vpop.xlane.xlu0 %751
    %v753 = vsub.f32 %v745, %v749
    %v754 = vsub.f32 %v746, %v752
    %v755 = vmul.f32 %v753, 1.442695
    %v756 = vpow.pop %v755
    %v757 = vmul.f32 %v754, 1.442695
    %v758 = vpow.pop %v757
    %v759 = vsel %vm652, %v756, 0.0
    %760 = vadd.xlane.f32.xlu0 %v759
    %v761 = vpop.xlane.xlu0 %760
    %v762 = vsel %vm652, %v758, 0.0
    %763 = vadd.xlane.f32.xlu0 %v762
    %v764 = vpop.xlane.xlu0 %763
    %v765 = vrcp.pop %v761
    %v766 = vrcp.pop %v764
    %v767 = vmul.f32 %v756, %v765
    %v768 = vmul.f32 %v758, %v766
    %v769 = vpack.c.bf16 %v767, %v767
    %v770 = vpack.c.bf16 %v768, %v768
    %v772 = vsel %vm652, %v769, 0
    %vm774 = vcmask 1043456
    %v776 = vsel %vm774, %v650, 0
    %778 = vmatprep.subr.bf16.mxu0 0
    %779 = vmatpush1.bf16.msra.mxu0 %v776
    %780 = vmatprep.subr.bf16.mxu0 0
    %781 = vmatpush1.bf16.msra.mxu0 0
    %782 = vmatprep.subr.bf16.mxu0 0
    %783 = vmatpush1.bf16.msra.mxu0 0
    %784 = vmatprep.subr.bf16.mxu0 0
    %785 = vmatpush1.bf16.msra.mxu0 0
    %786 = vmatprep.subr.bf16.mxu0 0
    %787 = vmatpush1.bf16.msra.mxu0 0
    %788 = vmatprep.subr.bf16.mxu0 0
    %789 = vmatpush1.bf16.msra.mxu0 0
    %790 = vmatprep.subr.bf16.mxu0 0
    %791 = vmatpush1.bf16.msra.mxu0 0
    %792 = vmatprep.subr.bf16.mxu0 0
    %793 = vmatpush1.bf16.msra.mxu0 0
    %794 = vmatprep.subr.bf16.mxu0 0
    %795 = vmatpush1.bf16.msra.mxu0 0
    %796 = vmatprep.subr.bf16.mxu0 0
    %797 = vmatpush1.bf16.msra.mxu0 0
    %798 = vmatprep.subr.bf16.mxu0 0
    %799 = vmatpush1.bf16.msra.mxu0 0
    %800 = vmatprep.subr.bf16.mxu0 0
    %801 = vmatpush1.bf16.msra.mxu0 0
    %802 = vmatprep.subr.bf16.mxu0 0
    %803 = vmatpush1.bf16.msra.mxu0 0
    %804 = vmatprep.subr.bf16.mxu0 0
    %805 = vmatpush1.bf16.msra.mxu0 0
    %806 = vmatprep.subr.bf16.mxu0 0
    %807 = vmatpush1.bf16.msra.mxu0 0
    %808 = vmatprep.subr.bf16.mxu0 0
    %809 = vmatpush1.bf16.msra.mxu0 0
    %810 = vmatprep.mubr.bf16.mxu0 0
    %811 = vmatmul.mubr.bf16.gmra.mrb[0].mxu0 %v772
    %v812 = vpop.f32.mrb[0].mxu0
    %v813 = vadd.f32 0.0, %v812
    %v814 = vpop.f32.mrb[0].mxu0
    %v815 = vpop.f32.mrb[0].mxu0
    %v816 = vpop.f32.mrb[0].mxu0
    %817 = vdwg.mxu0
    %v819 = vsel %vm652, %v770, 0
    %v822 = vsel %vm774, %v651, 0
    %824 = vmatprep.subr.bf16.mxu0 0
    %825 = vmatpush1.bf16.msra.mxu0 %v822
    %826 = vmatprep.subr.bf16.mxu0 0
    %827 = vmatpush1.bf16.msra.mxu0 0
    %828 = vmatprep.subr.bf16.mxu0 0
    %829 = vmatpush1.bf16.msra.mxu0 0
    %830 = vmatprep.subr.bf16.mxu0 0
    %831 = vmatpush1.bf16.msra.mxu0 0
    %832 = vmatprep.subr.bf16.mxu0 0
    %833 = vmatpush1.bf16.msra.mxu0 0
    %834 = vmatprep.subr.bf16.mxu0 0
    %835 = vmatpush1.bf16.msra.mxu0 0
    %836 = vmatprep.subr.bf16.mxu0 0
    %837 = vmatpush1.bf16.msra.mxu0 0
    %838 = vmatprep.subr.bf16.mxu0 0
    %839 = vmatpush1.bf16.msra.mxu0 0
    %840 = vmatprep.subr.bf16.mxu0 0
    %841 = vmatpush1.bf16.msra.mxu0 0
    %842 = vmatprep.subr.bf16.mxu0 0
    %843 = vmatpush1.bf16.msra.mxu0 0
    %844 = vmatprep.subr.bf16.mxu0 0
    %845 = vmatpush1.bf16.msra.mxu0 0
    %846 = vmatprep.subr.bf16.mxu0 0
    %847 = vmatpush1.bf16.msra.mxu0 0
    %848 = vmatprep.subr.bf16.mxu0 0
    %849 = vmatpush1.bf16.msra.mxu0 0
    %850 = vmatprep.subr.bf16.mxu0 0
    %851 = vmatpush1.bf16.msra.mxu0 0
    %852 = vmatprep.subr.bf16.mxu0 0
    %853 = vmatpush1.bf16.msra.mxu0 0
    %854 = vmatprep.subr.bf16.mxu0 0
    %855 = vmatpush1.bf16.msra.mxu0 0
    %856 = vmatprep.mubr.bf16.mxu0 0
    %857 = vmatmul.mubr.bf16.gmra.mrb[0].mxu0 %v819
    %v858 = vpop.f32.mrb[0].mxu0
    %v859 = vadd.f32 0.0, %v858
    %v860 = vpop.f32.mrb[0].mxu0
    %v861 = vpop.f32.mrb[0].mxu0
    %v862 = vpop.f32.mrb[0].mxu0
    %863 = vdwg.mxu0
    %865 = vrot.lane.b32.xlu0 %v646, 120
    %v866 = vpop.permute.xlu0 %865
    %868 = vrot.lane.b32.xlu0 %v648, 120
    %v869 = vpop.permute.xlu0 %868
    %v871 = vsel %vm652, %v866, 0
    %v874 = vsel %vm652, %v869, 0
    %876 = vmatprep.subr.bf16.mxu0 0
    %877 = vmatpush1.bf16.xpose.msra.mxu0 %v874
    %878 = vmatprep.subr.bf16.mxu0 0
    %879 = vmatpush1.bf16.xpose.msra.mxu0 0
    %880 = vmatprep.subr.bf16.mxu0 0
    %881 = vmatpush1.bf16.xpose.msra.mxu0 0
    %882 = vmatprep.subr.bf16.mxu0 0
    %883 = vmatpush1.bf16.xpose.msra.mxu0 0
    %884 = vmatprep.subr.bf16.mxu0 0
    %885 = vmatpush1.bf16.xpose.msra.mxu0 0
    %886 = vmatprep.subr.bf16.mxu0 0
    %887 = vmatpush1.bf16.xpose.msra.mxu0 0
    %888 = vmatprep.subr.bf16.mxu0 0
    %889 = vmatpush1.bf16.xpose.msra.mxu0 0
    %890 = vmatprep.subr.bf16.mxu0 0
    %891 = vmatpush1.bf16.xpose.msra.mxu0 0
    %892 = vmatprep.subr.bf16.mxu0 0
    %893 = vmatpush1.bf16.xpose.msra.mxu0 0
    %894 = vmatprep.subr.bf16.mxu0 0
    %895 = vmatpush1.bf16.xpose.msra.mxu0 0
    %896 = vmatprep.subr.bf16.mxu0 0
    %897 = vmatpush1.bf16.xpose.msra.mxu0 0
    %898 = vmatprep.subr.bf16.mxu0 0
    %899 = vmatpush1.bf16.xpose.msra.mxu0 0
    %900 = vmatprep.subr.bf16.mxu0 0
    %901 = vmatpush1.bf16.xpose.msra.mxu0 0
    %902 = vmatprep.subr.bf16.mxu0 0
    %903 = vmatpush1.bf16.xpose.msra.mxu0 0
    %904 = vmatprep.subr.bf16.mxu0 0
    %905 = vmatpush1.bf16.xpose.msra.mxu0 0
    %906 = vmatprep.subr.bf16.mxu0 0
    %907 = vmatpush1.bf16.xpose.msra.mxu0 0
    %908 = vmatprep.mubr.bf16.mxu0 0
    %909 = vmatmul.mubr.bf16.gmra.mrb[0].mxu0 %v871
    %v910 = vpop.f32.mrb[0].mxu0
    %v911 = vadd.f32 0.0, %v910
    %v912 = vpop.f32.mrb[0].mxu0
    %v913 = vpop.f32.mrb[0].mxu0
    %v914 = vpop.f32.mrb[0].mxu0
    %915 = vdwg.mxu0
    %917 = vrot.lane.b32.xlu0 %v647, 120
    %v918 = vpop.permute.xlu0 %917
    %920 = vrot.lane.b32.xlu0 %v649, 120
    %v921 = vpop.permute.xlu0 %920
    %v923 = vsel %vm652, %v918, 0
    %v926 = vsel %vm652, %v921, 0
    %928 = vmatprep.subr.bf16.mxu0 0
    %929 = vmatpush1.bf16.xpose.msra.mxu0 %v926
    %930 = vmatprep.subr.bf16.mxu0 0
    %931 = vmatpush1.bf16.xpose.msra.mxu0 0
    %932 = vmatprep.subr.bf16.mxu0 0
    %933 = vmatpush1.bf16.xpose.msra.mxu0 0
    %934 = vmatprep.subr.bf16.mxu0 0
    %935 = vmatpush1.bf16.xpose.msra.mxu0 0
    %936 = vmatprep.subr.bf16.mxu0 0
    %937 = vmatpush1.bf16.xpose.msra.mxu0 0
    %938 = vmatprep.subr.bf16.mxu0 0
    %939 = vmatpush1.bf16.xpose.msra.mxu0 0
    %940 = vmatprep.subr.bf16.mxu0 0
    %941 = vmatpush1.bf16.xpose.msra.mxu0 0
    %942 = vmatprep.subr.bf16.mxu0 0
    %943 = vmatpush1.bf16.xpose.msra.mxu0 0
    %944 = vmatprep.subr.bf16.mxu0 0
    %945 = vmatpush1.bf16.xpose.msra.mxu0 0
    %946 = vmatprep.subr.bf16.mxu0 0
    %947 = vmatpush1.bf16.xpose.msra.mxu0 0
    %948 = vmatprep.subr.bf16.mxu0 0
    %949 = vmatpush1.bf16.xpose.msra.mxu0 0
    %950 = vmatprep.subr.bf16.mxu0 0
    %951 = vmatpush1.bf16.xpose.msra.mxu0 0
    %952 = vmatprep.subr.bf16.mxu0 0
    %953 = vmatpush1.bf16.xpose.msra.mxu0 0
    %954 = vmatprep.subr.bf16.mxu0 0
    %955 = vmatpush1.bf16.xpose.msra.mxu0 0
    %956 = vmatprep.subr.bf16.mxu0 0
    %957 = vmatpush1.bf16.xpose.msra.mxu0 0
    %958 = vmatprep.subr.bf16.mxu0 0
    %959 = vmatpush1.bf16.xpose.msra.mxu0 0
    %960 = vmatprep.mubr.bf16.mxu0 0
    %961 = vmatmul.mubr.bf16.gmra.mrb[0].mxu0 %v923
    %v962 = vpop.f32.mrb[0].mxu0
    %v963 = vadd.f32 0.0, %v962
    %v964 = vpop.f32.mrb[0].mxu0
    %v965 = vpop.f32.mrb[0].mxu0
    %v966 = vpop.f32.mrb[0].mxu0
    %967 = vdwg.mxu0
    %v968 = vmul.f32 %v911, 0.35355338
    %v969 = vmul.f32 %v963, 0.35355338
    %v970 = vsel %vm652, %v968, -inf
    %971 = vmax.xlane.f32.xlu0 %v970
    %v972 = vpop.xlane.xlu0 %971
    %v973 = vsel %vm652, %v969, -inf
    %974 = vmax.xlane.f32.xlu0 %v973
    %v975 = vpop.xlane.xlu0 %974
    %v976 = vsub.f32 %v968, %v972
    %v977 = vsub.f32 %v969, %v975
    %v978 = vmul.f32 %v976, 1.442695
    %v979 = vpow.pop %v978
    %v980 = vmul.f32 %v977, 1.442695
    %v981 = vpow.pop %v980
    %v982 = vsel %vm652, %v979, 0.0
    %983 = vadd.xlane.f32.xlu0 %v982
    %v984 = vpop.xlane.xlu0 %983
    %v985 = vsel %vm652, %v981, 0.0
    %986 = vadd.xlane.f32.xlu0 %v985
    %v987 = vpop.xlane.xlu0 %986
    %v988 = vrcp.pop %v984
    %v989 = vrcp.pop %v987
    %v990 = vmul.f32 %v979, %v988
    %v991 = vmul.f32 %v981, %v989
    %v992 = vpack.c.bf16 %v990, %v990
    %v993 = vpack.c.bf16 %v991, %v991
    %995 = vrot.lane.b32.xlu0 %v650, 120
    %v996 = vpop.permute.xlu0 %995
    %v998 = vsel %vm652, %v992, 0
    %v1001 = vsel %vm774, %v996, 0
    %1003 = vmatprep.subr.bf16.mxu0 0
    %1004 = vmatpush1.bf16.msra.mxu0 %v1001
    %1005 = vmatprep.subr.bf16.mxu0 0
    %1006 = vmatpush1.bf16.msra.mxu0 0
    %1007 = vmatprep.subr.bf16.mxu0 0
    %1008 = vmatpush1.bf16.msra.mxu0 0
    %1009 = vmatprep.subr.bf16.mxu0 0
    %1010 = vmatpush1.bf16.msra.mxu0 0
    %1011 = vmatprep.subr.bf16.mxu0 0
    %1012 = vmatpush1.bf16.msra.mxu0 0
    %1013 = vmatprep.subr.bf16.mxu0 0
    %1014 = vmatpush1.bf16.msra.mxu0 0
    %1015 = vmatprep.subr.bf16.mxu0 0
    %1016 = vmatpush1.bf16.msra.mxu0 0
    %1017 = vmatprep.subr.bf16.mxu0 0
    %1018 = vmatpush1.bf16.msra.mxu0 0
    %1019 = vmatprep.subr.bf16.mxu0 0
    %1020 = vmatpush1.bf16.msra.mxu0 0
    %1021 = vmatprep.subr.bf16.mxu0 0
    %1022 = vmatpush1.bf16.msra.mxu0 0
    %1023 = vmatprep.subr.bf16.mxu0 0
    %1024 = vmatpush1.bf16.msra.mxu0 0
    %1025 = vmatprep.subr.bf16.mxu0 0
    %1026 = vmatpush1.bf16.msra.mxu0 0
    %1027 = vmatprep.subr.bf16.mxu0 0
    %1028 = vmatpush1.bf16.msra.mxu0 0
    %1029 = vmatprep.subr.bf16.mxu0 0
    %1030 = vmatpush1.bf16.msra.mxu0 0
    %1031 = vmatprep.subr.bf16.mxu0 0
    %1032 = vmatpush1.bf16.msra.mxu0 0
    %1033 = vmatprep.subr.bf16.mxu0 0
    %1034 = vmatpush1.bf16.msra.mxu0 0
    %1035 = vmatprep.mubr.bf16.mxu0 0
    %1036 = vmatmul.mubr.bf16.gmra.mrb[0].mxu0 %v998
    %v1037 = vpop.f32.mrb[0].mxu0
    %v1038 = vadd.f32 0.0, %v1037
    %v1039 = vpop.f32.mrb[0].mxu0
    %v1040 = vpop.f32.mrb[0].mxu0
    %v1041 = vpop.f32.mrb[0].mxu0
    %1042 = vdwg.mxu0
    %1044 = vrot.lane.b32.xlu0 %v651, 120
    %v1045 = vpop.permute.xlu0 %1044
    %v1047 = vsel %vm652, %v993, 0
    %v1050 = vsel %vm774, %v1045, 0
    %1052 = vmatprep.subr.bf16.mxu0 0
    %1053 = vmatpush1.bf16.msra.mxu0 %v1050
    %1054 = vmatprep.subr.bf16.mxu0 0
    %1055 = vmatpush1.bf16.msra.mxu0 0
    %1056 = vmatprep.subr.bf16.mxu0 0
    %1057 = vmatpush1.bf16.msra.mxu0 0
    %1058 = vmatprep.subr.bf16.mxu0 0
    %1059 = vmatpush1.bf16.msra.mxu0 0
    %1060 = vmatprep.subr.bf16.mxu0 0
    %1061 = vmatpush1.bf16.msra.mxu0 0
    %1062 = vmatprep.subr.bf16.mxu0 0
    %1063 = vmatpush1.bf16.msra.mxu0 0
    %1064 = vmatprep.subr.bf16.mxu0 0
    %1065 = vmatpush1.bf16.msra.mxu0 0
    %1066 = vmatprep.subr.bf16.mxu0 0
    %1067 = vmatpush1.bf16.msra.mxu0 0
    %1068 = vmatprep.subr.bf16.mxu0 0
    %1069 = vmatpush1.bf16.msra.mxu0 0
    %1070 = vmatprep.subr.bf16.mxu0 0
    %1071 = vmatpush1.bf16.msra.mxu0 0
    %1072 = vmatprep.subr.bf16.mxu0 0
    %1073 = vmatpush1.bf16.msra.mxu0 0
    %1074 = vmatprep.subr.bf16.mxu0 0
    %1075 = vmatpush1.bf16.msra.mxu0 0
    %1076 = vmatprep.subr.bf16.mxu0 0
    %1077 = vmatpush1.bf16.msra.mxu0 0
    %1078 = vmatprep.subr.bf16.mxu0 0
    %1079 = vmatpush1.bf16.msra.mxu0 0
    %1080 = vmatprep.subr.bf16.mxu0 0
    %1081 = vmatpush1.bf16.msra.mxu0 0
    %1082 = vmatprep.subr.bf16.mxu0 0
    %1083 = vmatpush1.bf16.msra.mxu0 0
    %1084 = vmatprep.mubr.bf16.mxu0 0
    %1085 = vmatmul.mubr.bf16.gmra.mrb[0].mxu0 %v1047
    %v1086 = vpop.f32.mrb[0].mxu0
    %v1087 = vadd.f32 0.0, %v1086
    %v1088 = vpop.f32.mrb[0].mxu0
    %v1089 = vpop.f32.mrb[0].mxu0
    %v1090 = vpop.f32.mrb[0].mxu0
    %1091 = vdwg.mxu0
    %1094 = vrot.lane.b32.xlu0 %v1038, 8
    %v1095 = vpop.permute.xlu0 %1094
    %1096 = vrot.lane.b32.xlu0 %v1087, 8
    %v1097 = vpop.permute.xlu0 %1096
    %v1100 = vsel %vm652, %v813, %v1095
    %v1101 = vsel %vm652, %v859, %v1097
    %v1102 = vpack.c.bf16 %v1101, %v1100
    %v1103 = vld [vmem:[#allocation21] sm:$0xf]
    %v1104 = vld [vmem:[#allocation21 + $0x4] sm:$0xf]
    %v1105 = vld [vmem:[#allocation23] sm:$0x1]
    %v1107 = vlaneseq
    %v1108 = vshrl.u32 %v1107, 7
    %v1109 = vsub.s32 0, %v1108
    %v1110 = vrot.slane %v1105, %v1109
    %v1114 = vunpack.c.l.b16 %v1103
    %v1115 = vunpack.c.l.b16 %v1104
    %v1116 = vpack.c.b16 %v1115, %v1114
    %v1119 = vsel %vm430, %v1102, 0
    %1121 = vmatprep.subr.bf16.mxu0 0
    %1122 = vmatpush1.bf16.msra.mxu0 %v1116
    %1123 = vmatprep.subr.bf16.mxu0 0
    %1124 = vmatpush1.bf16.msra.mxu0 0
    %1125 = vmatprep.subr.bf16.mxu0 0
    %1126 = vmatpush1.bf16.msra.mxu0 0
    %1127 = vmatprep.subr.bf16.mxu0 0
    %1128 = vmatpush1.bf16.msra.mxu0 0
    %1129 = vmatprep.subr.bf16.mxu0 0
    %1130 = vmatpush1.bf16.msra.mxu0 0
    %1131 = vmatprep.subr.bf16.mxu0 0
    %1132 = vmatpush1.bf16.msra.mxu0 0
    %1133 = vmatprep.subr.bf16.mxu0 0
    %1134 = vmatpush1.bf16.msra.mxu0 0
    %1135 = vmatprep.subr.bf16.mxu0 0
    %1136 = vmatpush1.bf16.msra.mxu0 0
    %1137 = vmatprep.subr.bf16.mxu0 0
    %1138 = vmatpush1.bf16.msra.mxu0 0
    %1139 = vmatprep.subr.bf16.mxu0 0
    %1140 = vmatpush1.bf16.msra.mxu0 0
    %1141 = vmatprep.subr.bf16.mxu0 0
    %1142 = vmatpush1.bf16.msra.mxu0 0
    %1143 = vmatprep.subr.bf16.mxu0 0
    %1144 = vmatpush1.bf16.msra.mxu0 0
    %1145 = vmatprep.subr.bf16.mxu0 0
    %1146 = vmatpush1.bf16.msra.mxu0 0
    %1147 = vmatprep.subr.bf16.mxu0 0
    %1148 = vmatpush1.bf16.msra.mxu0 0
    %1149 = vmatprep.subr.bf16.mxu0 0
    %1150 = vmatpush1.bf16.msra.mxu0 0
    %1151 = vmatprep.subr.bf16.mxu0 0
    %1152 = vmatpush1.bf16.msra.mxu0 0
    %1153 = vmatprep.mubr.bf16.mxu0 0
    %1154 = vmatmul.mubr.bf16.gmra.mrb[0].mxu0 %v1119
    %v1155 = vpop.f32.mrb[0].mxu0
    %v1156 = vadd.f32 %v1110, %v1155
    %v1157 = vpop.f32.mrb[0].mxu0
    %v1158 = vpop.f32.mrb[0].mxu0
    %v1159 = vadd.f32 %v1110, %v1158
    %v1160 = vpop.f32.mrb[0].mxu0
    %1161 = vdwg.mxu0
    %v1162 = vadd.f32 %v426, %v1156
    %v1163 = vadd.f32 %v427, %v1159
    %v1164 = vld [vmem:[#allocation27] sm:$0x1]
    %v1165 = vld [vmem:[#allocation29] sm:$0x1]
    %v1166 = vsel %vm430, %v1162, 0.0
    %1167 = vadd.xlane.f32.xlu0 %v1166
    %v1168 = vpop.xlane.xlu0 %1167
    %v1169 = vsel %vm430, %v1163, 0.0
    %1170 = vadd.xlane.f32.xlu0 %v1169
    %v1171 = vpop.xlane.xlu0 %1170
    %v1172 = vmul.f32 %v1168, %v437
    %v1173 = vmul.f32 %v1171, %v437
    %v1174 = vsub.f32 %v1162, %v1172
    %v1175 = vsub.f32 %v1163, %v1173
    %v1176 = vmul.f32 %v1174, %v1174
    %v1177 = vmul.f32 %v1175, %v1175
    %v1178 = vsel %vm430, %v1176, 0.0
    %1179 = vadd.xlane.f32.xlu0 %v1178
    %v1180 = vpop.xlane.xlu0 %1179
    %v1181 = vsel %vm430, %v1177, 0.0
    %1182 = vadd.xlane.f32.xlu0 %v1181
    %v1183 = vpop.xlane.xlu0 %1182
    %v1184 = vmul.f32 %v1180, %v437
    %v1185 = vmul.f32 %v1183, %v437
    %v1186 = vadd.f32 %v1184, 1e-12
    %v1187 = vadd.f32 %v1185, 1e-12
    %v1188 = vrsqrt.pop %v1186
    %v1189 = vrsqrt.pop %v1187
    %v1190 = vmul.f32 %v1174, %v1188
    %v1191 = vmul.f32 %v1175, %v1189
    %v1193 = vlaneseq
    %v1194 = vshrl.u32 %v1193, 7
    %v1195 = vsub.s32 0, %v1194
    %v1196 = vrot.slane %v1164, %v1195
    %v1198 = vmul.f32 %v1190, %v1196
    %v1199 = vmul.f32 %v1191, %v1196
    %v1201 = vlaneseq
    %v1202 = vshrl.u32 %v1201, 7
    %v1203 = vsub.s32 0, %v1202
    %v1204 = vrot.slane %v1165, %v1203
    %v1206 = vadd.f32 %v1198, %v1204
    %v1207 = vadd.f32 %v1199, %v1204
    %v1208 = vpack.c.bf16 %v1207, %v1206
    %v1209 = vld [vmem:[#allocation30] sm:$0xf]
    %v1210 = vld [vmem:[#allocation30 + $0x4] sm:$0xf]
    %v1211 = vld [vmem:[#allocation32] sm:$0x1]
    %v1213 = vlaneseq
    %v1214 = vshrl.u32 %v1213, 7
    %v1215 = vsub.s32 0, %v1214
    %v1216 = vrot.slane %v1211, %v1215
    %v1220 = vunpack.c.l.b16 %v1209
    %v1221 = vunpack.c.l.b16 %v1210
    %v1222 = vpack.c.b16 %v1221, %v1220
    %v1225 = vsel %vm430, %v1208, 0
    %1227 = vmatprep.subr.bf16.mxu0 0
    %1228 = vmatpush1.bf16.msra.mxu0 %v1222
    %1229 = vmatprep.subr.bf16.mxu0 0
    %1230 = vmatpush1.bf16.msra.mxu0 0
    %1231 = vmatprep.subr.bf16.mxu0 0
    %1232 = vmatpush1.bf16.msra.mxu0 0
    %1233 = vmatprep.subr.bf16.mxu0 0
    %1234 = vmatpush1.bf16.msra.mxu0 0
    %1235 = vmatprep.subr.bf16.mxu0 0
    %1236 = vmatpush1.bf16.msra.mxu0 0
    %1237 = vmatprep.subr.bf16.mxu0 0
    %1238 = vmatpush1.bf16.msra.mxu0 0
    %1239 = vmatprep.subr.bf16.mxu0 0
    %1240 = vmatpush1.bf16.msra.mxu0 0
    %1241 = vmatprep.subr.bf16.mxu0 0
    %1242 = vmatpush1.bf16.msra.mxu0 0
    %1243 = vmatprep.subr.bf16.mxu0 0
    %1244 = vmatpush1.bf16.msra.mxu0 0
    %1245 = vmatprep.subr.bf16.mxu0 0
    %1246 = vmatpush1.bf16.msra.mxu0 0
    %1247 = vmatprep.subr.bf16.mxu0 0
    %1248 = vmatpush1.bf16.msra.mxu0 0
    %1249 = vmatprep.subr.bf16.mxu0 0
    %1250 = vmatpush1.bf16.msra.mxu0 0
    %1251 = vmatprep.subr.bf16.mxu0 0
    %1252 = vmatpush1.bf16.msra.mxu0 0
    %1253 = vmatprep.subr.bf16.mxu0 0
    %1254 = vmatpush1.bf16.msra.mxu0 0
    %1255 = vmatprep.subr.bf16.mxu0 0
    %1256 = vmatpush1.bf16.msra.mxu0 0
    %1257 = vmatprep.subr.bf16.mxu0 0
    %1258 = vmatpush1.bf16.msra.mxu0 0
    %1259 = vmatprep.mubr.bf16.mxu0 0
    %1260 = vmatmul.mubr.bf16.gmra.mrb[0].mxu0 %v1225
    %v1261 = vpop.f32.mrb[0].mxu0
    %v1262 = vadd.f32 %v1216, %v1261
    %v1263 = vpop.f32.mrb[0].mxu0
    %v1264 = vpop.f32.mrb[0].mxu0
    %v1265 = vadd.f32 %v1216, %v1264
    %v1266 = vpop.f32.mrb[0].mxu0
    %1267 = vdwg.mxu0
    %v1268 = vmul.f32 %v1262, 0.5
    %v1269 = vmul.f32 %v1265, 0.5
    %v1270 = vmul.f32 %v1262, 0.044715
    %v1271 = vmul.f32 %v1265, 0.044715
    %v1272 = vmul.f32 %v1270, %v1262
    %v1273 = vmul.f32 %v1271, %v1265
    %v1274 = vmul.f32 %v1272, %v1262
    %v1275 = vmul.f32 %v1273, %v1265
    %v1276 = vadd.f32 %v1262, %v1274
    %v1277 = vadd.f32 %v1265, %v1275
    %v1278 = vmul.f32 %v1276, 0.7978846
    %v1279 = vmul.f32 %v1277, 0.7978846
    %v1280 = vtanh.pop %v1278
    %v1281 = vtanh.pop %v1279
    %v1282 = vadd.f32 %v1280, 1.0
    %v1283 = vadd.f32 %v1281, 1.0
    %v1284 = vmul.f32 %v1268, %v1282
    %v1285 = vmul.f32 %v1269, %v1283
    %v1286 = vpack.c.bf16 %v1285, %v1284
    %v1287 = vld [vmem:[#allocation33] sm:$0xf]
    %v1288 = vld [vmem:[#allocation33 + $0x4] sm:$0xf]
    %v1289 = vld [vmem:[#allocation33 + $0x8] sm:$0xf]
    %v1290 = vld [vmem:[#allocation33 + $0xc] sm:$0xf]
    %v1291 = vld [vmem:[#allocation35] sm:$0x1]
    %v1293 = vlaneseq
    %v1294 = vshrl.u32 %v1293, 7
    %v1295 = vsub.s32 0, %v1294
    %v1296 = vrot.slane %v1291, %v1295
    %v1302 = vunpack.c.l.b16 %v1287
    %v1303 = vunpack.c.l.b16 %v1288
    %v1304 = vunpack.c.l.b16 %v1289
    %v1305 = vunpack.c.l.b16 %v1290
    %v1306 = vpack.c.b16 %v1303, %v1302
    %v1307 = vpack.c.b16 %v1305, %v1304
    %vm1310 = vcmask 261120
    %v1312 = vsel %vm1310, %v1286, 0
    %1314 = vmatprep.subr.bf16.mxu0 0
    %1315 = vmatpush1.bf16.msra.mxu0 %v1306
    %1316 = vmatprep.subr.bf16.mxu0 0
    %1317 = vmatpush1.bf16.msra.mxu0 %v1307
    %1318 = vmatprep.subr.bf16.mxu0 0
    %1319 = vmatpush1.bf16.msra.mxu0 0
    %1320 = vmatprep.subr.bf16.mxu0 0
    %1321 = vmatpush1.bf16.msra.mxu0 0
    %1322 = vmatprep.subr.bf16.mxu0 0
    %1323 = vmatpush1.bf16.msra.mxu0 0
    %1324 = vmatprep.subr.bf16.mxu0 0
    %1325 = vmatpush1.bf16.msra.mxu0 0
    %1326 = vmatprep.subr.bf16.mxu0 0
    %1327 = vmatpush1.bf16.msra.mxu0 0
    %1328 = vmatprep.subr.bf16.mxu0 0
    %1329 = vmatpush1.bf16.msra.mxu0 0
    %1330 = vmatprep.subr.bf16.mxu0 0
    %1331 = vmatpush1.bf16.msra.mxu0 0
    %1332 = vmatprep.subr.bf16.mxu0 0
    %1333 = vmatpush1.bf16.msra.mxu0 0
    %1334 = vmatprep.subr.bf16.mxu0 0
    %1335 = vmatpush1.bf16.msra.mxu0 0
    %1336 = vmatprep.subr.bf16.mxu0 0
    %1337 = vmatpush1.bf16.msra.mxu0 0
    %1338 = vmatprep.subr.bf16.mxu0 0
    %1339 = vmatpush1.bf16.msra.mxu0 0
    %1340 = vmatprep.subr.bf16.mxu0 0
    %1341 = vmatpush1.bf16.msra.mxu0 0
    %1342 = vmatprep.subr.bf16.mxu0 0
    %1343 = vmatpush1.bf16.msra.mxu0 0
    %1344 = vmatprep.subr.bf16.mxu0 0
    %1345 = vmatpush1.bf16.msra.mxu0 0
    %1346 = vmatprep.mubr.bf16.mxu0 0
    %1347 = vmatmul.mubr.bf16.gmra.mrb[0].mxu0 %v1312
    %v1348 = vpop.f32.mrb[0].mxu0
    %v1349 = vadd.f32 %v1296, %v1348
    %v1350 = vpop.f32.mrb[0].mxu0
    %v1351 = vpop.f32.mrb[0].mxu0
    %v1352 = vadd.f32 %v1296, %v1351
    %v1353 = vpop.f32.mrb[0].mxu0
    %1354 = vdwg.mxu0
    %v1355 = vadd.f32 %v1162, %v1349
    %v1356 = vadd.f32 %v1163, %v1352
    %1357 = vst.msk [vmem:[#allocation2] sm:$0xff] %vm430, %v1355
    %1358 = vst.msk [vmem:[#allocation2 + $0x8] sm:$0xff] %vm430, %v1356
    // Predicated region
    $region174: #{_forward_impl.4} parent=1 // pred_check
      %p1359 = pneg %p332
    $region175: #{_forward_impl.4} parent=1 // pred_check_branch
      %1361 = sbr.rel (%p1359) target = $region177
    $region176: #{_forward_impl.4} parent=1 // pred_region
      %v1362 = vld [vmem:[#allocation2 + $0x4] sm:$0xf]
      %v1363 = vld [vmem:[#allocation2 + $0xc] sm:$0xf]
      %vm1364 = vcmask 125952
      %1365 = vst.msk [vmem:[#allocation36] sm:$0xf] %vm1364, %v1362
      %1366 = vst.msk [vmem:[#allocation36 + $0x4] sm:$0xf] %vm1364, %v1363
    $region177: #{_forward_impl.4} parent=1 // pred_fallthru
      _
    // Predicated region
    $region178: #{_forward_impl.4} parent=1 // pred_check
      _
    $region179: #{_forward_impl.4} parent=1 // pred_check_branch
      %1368 = sbr.rel (0) target = $region181
    $region180: #{_forward_impl.4} parent=1 // pred_region
      %s1370 = ssub.s32 128, 128
      %1371 = vsyncadd [#allocation5], %s1370
      %s1372 = sshll.u32 [#allocation36], 4
      %s1373 = int_to_ptr.vmem [resolvable:$true] %s1372
      %1378 = dma.vmem_to_hbm [thread:$0]  %s1373, 128, %s21, [#allocation5], 64, 64, 4
    $region181: #{_forward_impl.4} parent=1 // pred_fallthru
      _
    // Predicated region
    $region182: #{_forward_impl.4} parent=1 // pred_check
      _
    $region183: #{_forward_impl.4} parent=1 // pred_check_branch
      %1380 = sbr.rel (0) target = $region185
    $region184: #{_forward_impl.4} parent=1 // pred_region
      %1381 = dma.done [#allocation5], 128
    $region185: #{_forward_impl.4} parent=1 // pred_fallthru
      _
    %1382 = vsyncpa [#allocation4], 1
    %1383 = vsyncpa [#allocation7], 1
    %1384 = vsyncpa [#allocation10], 1
    %1385 = vsyncpa [#allocation13], 1
    %1386 = vsyncpa [#allocation16], 1
    %1387 = vsyncpa [#allocation19], 1
    %1388 = vsyncpa [#allocation22], 1
    %1389 = vsyncpa [#allocation25], 1
    %1390 = vsyncpa [#allocation28], 1
    %1391 = vsyncpa [#allocation31], 1
    %1392 = vsyncpa [#allocation34], 1
    %1393 = vsyncpa [#allocation5], 1

// kernel: _forward_impl.3
$region0: #{_forward_impl.3}
  #allocation0 [shape = 'u32[]', space=smem, size = 0x4, offset = 0x4, fixed_abs, tag = 'smem constant byte address 0x4 - core index']
  #allocation1 [shape = 'u32[144,128]{1,0:T(1,128)}', space=vmem, size = 0x12000, scoped, tag = 'internal scratch']
  #allocation2 [shape = 'f32[2,4,32]{2,1,0:T(4,128)}', space=vmem, size = 0x1000, scoped, tag = 'scratch operand']
  %s0 = inlined_call_operand.hbm [shape: f32[2,4,512], index: 0, kind: input, shape index: {}]
  %s1 = inlined_call_operand.hbm [shape: bf16[512,32], index: 1, kind: input, shape index: {}]
  %s2 = inlined_call_operand.hbm [shape: f32[1,32], index: 2, kind: input, shape index: {}]
  %s3 = inlined_call_operand.hbm [shape: f32[2,4,32], index: 3, kind: input, shape index: {}]
  %s4 = inlined_call_operand.hbm [shape: bf16[2,32,32], index: 4, kind: input, shape index: {}]
  %s5 = inlined_call_operand.hbm [shape: f32[2,1,32], index: 5, kind: input, shape index: {}]
  %s6 = inlined_call_operand.hbm [shape: bf16[2,32,32], index: 6, kind: input, shape index: {}]
  %s7 = inlined_call_operand.hbm [shape: f32[2,1,32], index: 7, kind: input, shape index: {}]
  %s8 = inlined_call_operand.hbm [shape: bf16[2,32,32], index: 8, kind: input, shape index: {}]
  %s9 = inlined_call_operand.hbm [shape: f32[2,1,32], index: 9, kind: input, shape index: {}]
  %s10 = inlined_call_operand.hbm [shape: bf16[2,32,32], index: 10, kind: input, shape index: {}]
  %s11 = inlined_call_operand.hbm [shape: f32[2,1,32], index: 11, kind: input, shape index: {}]
  %s12 = inlined_call_operand.hbm [shape: f32[2,1,32], index: 12, kind: input, shape index: {}]
  %s13 = inlined_call_operand.hbm [shape: f32[2,1,32], index: 13, kind: input, shape index: {}]
  %s14 = inlined_call_operand.hbm [shape: f32[2,1,32], index: 14, kind: input, shape index: {}]
  %s15 = inlined_call_operand.hbm [shape: f32[2,1,32], index: 15, kind: input, shape index: {}]
  %s16 = inlined_call_operand.hbm [shape: bf16[2,32,64], index: 16, kind: input, shape index: {}]
  %s17 = inlined_call_operand.hbm [shape: f32[2,1,64], index: 17, kind: input, shape index: {}]
  %s18 = inlined_call_operand.hbm [shape: bf16[2,64,32], index: 18, kind: input, shape index: {}]
  %s19 = inlined_call_operand.hbm [shape: f32[2,1,32], index: 19, kind: input, shape index: {}]
  %s20 = inlined_call_operand.hbm [shape: f32[2,4,32], index: 20, kind: output, shape index: {}]
  %s21 = sld [smem:[#allocation0]]
  $region201: #{_forward_impl.3} parent=0
    _
  %s23 = ssub.s32 1, %s21
  %s24 = scalar_select 0, %s23, %s21
  $region1: #{_forward_impl.3} parent=0
    #allocation3 [shape = 'u8[16384]{0}', space=vmem, size = 0x4000, scoped, tag = 'input window, operand 0, single buffered']
    #allocation4 [shape = 's32[2]{0}', space=sflag, size = 0x8, scoped, tag = 'scoped memory for _forward_impl.3']
    #allocation5 [shape = 's32[2]{0}', space=sflag, size = 0x8, scoped, tag = 'scoped memory for _forward_impl.3']
    #allocation6 [shape = 'u8[131072]{0}', space=vmem, size = 0x20000, scoped, tag = 'input window, operand 1, single buffered']
    #allocation7 [shape = 's32[1]{0}', space=sflag, size = 0x4, scoped, tag = 'scoped memory for _forward_impl.3']
    #allocation8 [shape = 'u8[512]{0}', space=vmem, size = 0x400, scoped, tag = 'input window, operand 2, single buffered']
    #allocation9 [shape = 'u8[4096]{0}', space=vmem, size = 0x1000, scoped, tag = 'input window, operand 3, single buffered']
    #allocation10 [shape = 's32[1]{0}', space=sflag, size = 0x4, scoped, tag = 'scoped memory for _forward_impl.3']
    #allocation11 [shape = 'u8[16384]{0}', space=vmem, size = 0x4000, scoped, tag = 'input window, operand 4']
    #allocation12 [shape = 'u8[1024]{0}', space=vmem, size = 0x400, scoped, tag = 'input window, operand 5']
    #allocation13 [shape = 'u8[16384]{0}', space=vmem, size = 0x4000, scoped, tag = 'input window, operand 6']
    #allocation14 [shape = 'u8[1024]{0}', space=vmem, size = 0x400, scoped, tag = 'input window, operand 7']
    #allocation15 [shape = 'u8[16384]{0}', space=vmem, size = 0x4000, scoped, tag = 'input window, operand 8']
    #allocation16 [shape = 'u8[1024]{0}', space=vmem, size = 0x400, scoped, tag = 'input window, operand 9']
    #allocation17 [shape = 'u8[16384]{0}', space=vmem, size = 0x4000, scoped, tag = 'input window, operand 10']
    #allocation18 [shape = 'u8[1024]{0}', space=vmem, size = 0x400, scoped, tag = 'input window, operand 11']
    #allocation19 [shape = 'u8[1024]{0}', space=vmem, size = 0x400, scoped, tag = 'input window, operand 12']
    #allocation20 [shape = 'u8[1024]{0}', space=vmem, size = 0x400, scoped, tag = 'input window, operand 13']
    #allocation21 [shape = 'u8[1024]{0}', space=vmem, size = 0x400, scoped, tag = 'input window, operand 14']
    #allocation22 [shape = 'u8[1024]{0}', space=vmem, size = 0x400, scoped, tag = 'input window, operand 15']
    #allocation23 [shape = 'u8[16384]{0}', space=vmem, size = 0x4000, scoped, tag = 'input window, operand 16']
    #allocation24 [shape = 'u8[1024]{0}', space=vmem, size = 0x400, scoped, tag = 'input window, operand 17']
    #allocation25 [shape = 'u8[32768]{0}', space=vmem, size = 0x8000, scoped, tag = 'input window, operand 18']
    #allocation26 [shape = 'u8[1024]{0}', space=vmem, size = 0x400, scoped, tag = 'input window, operand 19']
    #allocation27 [shape = 'u8[4096]{0}', space=vmem, size = 0x1000, scoped, tag = 'output window, operand 0, single buffered']
    %25 = vsyncpa [#allocation4], 0
    %26 = vsyncpa [#allocation7], 0
    %27 = vsyncpa [#allocation10], 0
    %28 = vsyncpa [#allocation5], 0
    loop: start=0, step=1, limit=4
    $region2: #{_forward_impl.3} parent=1 // loop_pre_header
      _
    $region3: #{_forward_impl.3} parent=1 // loop_header
      %s30 = sphi 0, %s34
      %p31 = scmp.ge.s32.totalorder %s30, 4
      %s38 = sphi 0, %s38
      %s40 = sphi 0, %s38
      %s41 = sphi 0, %s40
      %s55 = sphi 0, %s41
      %s59 = sphi 0, %s59
      %s61 = sphi 0, %s59
      %s62 = sphi 0, %s61
      %s76 = sphi 0, %s62
      %s80 = sphi 0, %s80
      %s82 = sphi 0, %s80
      %s83 = sphi 0, %s82
      %s97 = sphi 0, %s83
      %s101 = sphi 0, %s101
      %s103 = sphi 0, %s101
      %s104 = sphi 0, %s103
      %s118 = sphi 0, %s104
      %s124 = sphi 0, %s126
      %s127 = sphi 0, %s124
      %s128 = sphi 0, %s127
      %s144 = sphi 0, %s128
      %s150 = sphi 0, %s152
      %s153 = sphi 0, %s150
      %s154 = sphi 0, %s153
      %s170 = sphi 0, %s154
      %s176 = sphi 0, %s178
      %s179 = sphi 0, %s176
      %s180 = sphi 0, %s179
      %s196 = sphi 0, %s180
      %s202 = sphi 0, %s204
      %s205 = sphi 0, %s202
      %s206 = sphi 0, %s205
      %s222 = sphi 0, %s206
      %s228 = sphi 0, %s230
      %s231 = sphi 0, %s228
      %s232 = sphi 0, %s231
      %s248 = sphi 0, %s232
      %s254 = sphi 0, %s256
      %s257 = sphi 0, %s254
      %s258 = sphi 0, %s257
      %s274 = sphi 0, %s258
      %s280 = sphi 0, %s282
      %s283 = sphi 0, %s280
      %s284 = sphi 0, %s283
      %s300 = sphi 0, %s284
      %s306 = sphi 0, %s308
      %s309 = sphi 0, %s306
      %s310 = sphi 0, %s309
      %s326 = sphi 0, %s310
      %s332 = sphi 0, %s334
      %s335 = sphi 0, %s332
      %s336 = sphi 0, %s335
      %s352 = sphi 0, %s336
      %s358 = sphi 0, %s360
      %s361 = sphi 0, %s358
      %s362 = sphi 0, %s361
      %s378 = sphi 0, %s362
      %s384 = sphi 0, %s386
      %s387 = sphi 0, %s384
      %s388 = sphi 0, %s387
      %s404 = sphi 0, %s388
      %s410 = sphi 0, %s412
      %s413 = sphi 0, %s410
      %s414 = sphi 0, %s413
      %s430 = sphi 0, %s414
      %s436 = sphi 0, %s438
      %s439 = sphi 0, %s436
      %s440 = sphi 0, %s439
      %s456 = sphi 0, %s440
      %s462 = sphi 0, %s464
      %s465 = sphi 0, %s462
      %s466 = sphi 0, %s465
      %s482 = sphi 0, %s466
      %s488 = sphi 0, %s490
      %s491 = sphi 0, %s488
      %s492 = sphi 0, %s491
      %s508 = sphi 0, %s492
      %s514 = sphi 0, %s516
      %s517 = sphi 0, %s514
      %s518 = sphi 0, %s517
      %s534 = sphi 0, %s518
      %s538 = sphi 0, %s538
      %s540 = sphi 0, %s538
      %s541 = sphi 0, %s540
      %s555 = sphi 0, %s541
    $region4: #{_forward_impl.3} parent=1 // loop_header_branch
      %33 = sbr.rel (%p31) target = $region8
    $region5: #{_forward_impl.3} parent=1 // loop_body
      %s35 = ssub.s32 %s30, 1
      %s36 = ssub.s32 %s30, 2
      %s37 = sadd.s32 %s30, 1
      %s39 = sadd.s32 %s38, 1
      %p42 = scmp.eq.s32.totalorder %s30, 1
      %p43 = scmp.ne.s32.totalorder %s38, %s40
      %p44 = scmp.eq.s32.totalorder %s30, 0
      %p45 = por %p43, %p44
      %p46 = scmp.ne.s32.totalorder %s38, %s40
      %p47 = scmp.eq.s32.totalorder %s35, 1
      %p48 = por %p46, %p47
      %p49 = scmp.ne.s32.totalorder %s40, %s41
      %p50 = scmp.eq.s32.totalorder %s35, 0
      %p51 = por %p49, %p50
      %p52 = scmp.ne.s32.totalorder %s40, %s41
      %p53 = scmp.eq.s32.totalorder %s36, 1
      %p54 = por %p52, %p53
      %p56 = scmp.ne.s32.totalorder %s41, %s55
      %p57 = scmp.eq.s32.totalorder %s36, 0
      %p58 = por %p56, %p57
      %s60 = sadd.s32 %s59, 1
      %p63 = scmp.eq.s32.totalorder %s30, 1
      %p64 = scmp.ne.s32.totalorder %s59, %s61
      %p65 = scmp.eq.s32.totalorder %s30, 0
      %p66 = por %p64, %p65
      %p67 = scmp.ne.s32.totalorder %s59, %s61
      %p68 = scmp.eq.s32.totalorder %s35, 1
      %p69 = por %p67, %p68
      %p70 = scmp.ne.s32.totalorder %s61, %s62
      %p71 = scmp.eq.s32.totalorder %s35, 0
      %p72 = por %p70, %p71
      %p73 = scmp.ne.s32.totalorder %s61, %s62
      %p74 = scmp.eq.s32.totalorder %s36, 1
      %p75 = por %p73, %p74
      %p77 = scmp.ne.s32.totalorder %s62, %s76
      %p78 = scmp.eq.s32.totalorder %s36, 0
      %p79 = por %p77, %p78
      %s81 = sadd.s32 %s80, 1
      %p84 = scmp.eq.s32.totalorder %s30, 1
      %p85 = scmp.ne.s32.totalorder %s80, %s82
      %p86 = scmp.eq.s32.totalorder %s30, 0
      %p87 = por %p85, %p86
      %p88 = scmp.ne.s32.totalorder %s80, %s82
      %p89 = scmp.eq.s32.totalorder %s35, 1
      %p90 = por %p88, %p89
      %p91 = scmp.ne.s32.totalorder %s82, %s83
      %p92 = scmp.eq.s32.totalorder %s35, 0
      %p93 = por %p91, %p92
      %p94 = scmp.ne.s32.totalorder %s82, %s83
      %p95 = scmp.eq.s32.totalorder %s36, 1
      %p96 = por %p94, %p95
      %p98 = scmp.ne.s32.totalorder %s83, %s97
      %p99 = scmp.eq.s32.totalorder %s36, 0
      %p100 = por %p98, %p99
      %s102 = sadd.s32 %s101, 1
      %p105 = scmp.eq.s32.totalorder %s30, 1
      %p106 = scmp.ne.s32.totalorder %s101, %s103
      %p107 = scmp.eq.s32.totalorder %s30, 0
      %p108 = por %p106, %p107
      %p109 = scmp.ne.s32.totalorder %s101, %s103
      %p110 = scmp.eq.s32.totalorder %s35, 1
      %p111 = por %p109, %p110
      %p112 = scmp.ne.s32.totalorder %s103, %s104
      %p113 = scmp.eq.s32.totalorder %s35, 0
      %p114 = por %p112, %p113
      %p115 = scmp.ne.s32.totalorder %s103, %s104
      %p116 = scmp.eq.s32.totalorder %s36, 1
      %p117 = por %p115, %p116
      %p119 = scmp.ne.s32.totalorder %s104, %s118
      %p120 = scmp.eq.s32.totalorder %s36, 0
      %p121 = por %p119, %p120
      %s122 = ssub.s32 %s30, %s37
      %p123 = scmp.eq.s32.totalorder %s122, 0
      %s125 = sadd.s32 %s124, 1
      %s126 = scalar_select %p123, %s124, %s125
      %p129 = pneg %p123
      %p130 = scmp.eq.s32.totalorder %s30, 1
      %p131 = por %p129, %p130
      %p132 = scmp.ne.s32.totalorder %s124, %s127
      %p133 = scmp.eq.s32.totalorder %s30, 0
      %p134 = por %p132, %p133
      %p135 = scmp.ne.s32.totalorder %s124, %s127
      %p136 = scmp.eq.s32.totalorder %s35, 1
      %p137 = por %p135, %p136
      %p138 = scmp.ne.s32.totalorder %s127, %s128
      %p139 = scmp.eq.s32.totalorder %s35, 0
      %p140 = por %p138, %p139
      %p141 = scmp.ne.s32.totalorder %s127, %s128
      %p142 = scmp.eq.s32.totalorder %s36, 1
      %p143 = por %p141, %p142
      %p145 = scmp.ne.s32.totalorder %s128, %s144
      %p146 = scmp.eq.s32.totalorder %s36, 0
      %p147 = por %p145, %p146
      %s148 = ssub.s32 %s30, %s37
      %p149 = scmp.eq.s32.totalorder %s148, 0
      %s151 = sadd.s32 %s150, 1
      %s152 = scalar_select %p149, %s150, %s151
      %p155 = pneg %p149
      %p156 = scmp.eq.s32.totalorder %s30, 1
      %p157 = por %p155, %p156
      %p158 = scmp.ne.s32.totalorder %s150, %s153
      %p159 = scmp.eq.s32.totalorder %s30, 0
      %p160 = por %p158, %p159
      %p161 = scmp.ne.s32.totalorder %s150, %s153
      %p162 = scmp.eq.s32.totalorder %s35, 1
      %p163 = por %p161, %p162
      %p164 = scmp.ne.s32.totalorder %s153, %s154
      %p165 = scmp.eq.s32.totalorder %s35, 0
      %p166 = por %p164, %p165
      %p167 = scmp.ne.s32.totalorder %s153, %s154
      %p168 = scmp.eq.s32.totalorder %s36, 1
      %p169 = por %p167, %p168
      %p171 = scmp.ne.s32.totalorder %s154, %s170
      %p172 = scmp.eq.s32.totalorder %s36, 0
      %p173 = por %p171, %p172
      %s174 = ssub.s32 %s30, %s37
      %p175 = scmp.eq.s32.totalorder %s174, 0
      %s177 = sadd.s32 %s176, 1
      %s178 = scalar_select %p175, %s176, %s177
      %p181 = pneg %p175
      %p182 = scmp.eq.s32.totalorder %s30, 1
      %p183 = por %p181, %p182
      %p184 = scmp.ne.s32.totalorder %s176, %s179
      %p185 = scmp.eq.s32.totalorder %s30, 0
      %p186 = por %p184, %p185
      %p187 = scmp.ne.s32.totalorder %s176, %s179
      %p188 = scmp.eq.s32.totalorder %s35, 1
      %p189 = por %p187, %p188
      %p190 = scmp.ne.s32.totalorder %s179, %s180
      %p191 = scmp.eq.s32.totalorder %s35, 0
      %p192 = por %p190, %p191
      %p193 = scmp.ne.s32.totalorder %s179, %s180
      %p194 = scmp.eq.s32.totalorder %s36, 1
      %p195 = por %p193, %p194
      %p197 = scmp.ne.s32.totalorder %s180, %s196
      %p198 = scmp.eq.s32.totalorder %s36, 0
      %p199 = por %p197, %p198
      %s200 = ssub.s32 %s30, %s37
      %p201 = scmp.eq.s32.totalorder %s200, 0
      %s203 = sadd.s32 %s202, 1
      %s204 = scalar_select %p201, %s202, %s203
      %p207 = pneg %p201
      %p208 = scmp.eq.s32.totalorder %s30, 1
      %p209 = por %p207, %p208
      %p210 = scmp.ne.s32.totalorder %s202, %s205
      %p211 = scmp.eq.s32.totalorder %s30, 0
      %p212 = por %p210, %p211
      %p213 = scmp.ne.s32.totalorder %s202, %s205
      %p214 = scmp.eq.s32.totalorder %s35, 1
      %p215 = por %p213, %p214
      %p216 = scmp.ne.s32.totalorder %s205, %s206
      %p217 = scmp.eq.s32.totalorder %s35, 0
      %p218 = por %p216, %p217
      %p219 = scmp.ne.s32.totalorder %s205, %s206
      %p220 = scmp.eq.s32.totalorder %s36, 1
      %p221 = por %p219, %p220
      %p223 = scmp.ne.s32.totalorder %s206, %s222
      %p224 = scmp.eq.s32.totalorder %s36, 0
      %p225 = por %p223, %p224
      %s226 = ssub.s32 %s30, %s37
      %p227 = scmp.eq.s32.totalorder %s226, 0
      %s229 = sadd.s32 %s228, 1
      %s230 = scalar_select %p227, %s228, %s229
      %p233 = pneg %p227
      %p234 = scmp.eq.s32.totalorder %s30, 1
      %p235 = por %p233, %p234
      %p236 = scmp.ne.s32.totalorder %s228, %s231
      %p237 = scmp.eq.s32.totalorder %s30, 0
      %p238 = por %p236, %p237
      %p239 = scmp.ne.s32.totalorder %s228, %s231
      %p240 = scmp.eq.s32.totalorder %s35, 1
      %p241 = por %p239, %p240
      %p242 = scmp.ne.s32.totalorder %s231, %s232
      %p243 = scmp.eq.s32.totalorder %s35, 0
      %p244 = por %p242, %p243
      %p245 = scmp.ne.s32.totalorder %s231, %s232
      %p246 = scmp.eq.s32.totalorder %s36, 1
      %p247 = por %p245, %p246
      %p249 = scmp.ne.s32.totalorder %s232, %s248
      %p250 = scmp.eq.s32.totalorder %s36, 0
      %p251 = por %p249, %p250
      %s252 = ssub.s32 %s30, %s37
      %p253 = scmp.eq.s32.totalorder %s252, 0
      %s255 = sadd.s32 %s254, 1
      %s256 = scalar_select %p253, %s254, %s255
      %p259 = pneg %p253
      %p260 = scmp.eq.s32.totalorder %s30, 1
      %p261 = por %p259, %p260
      %p262 = scmp.ne.s32.totalorder %s254, %s257
      %p263 = scmp.eq.s32.totalorder %s30, 0
      %p264 = por %p262, %p263
      %p265 = scmp.ne.s32.totalorder %s254, %s257
      %p266 = scmp.eq.s32.totalorder %s35, 1
      %p267 = por %p265, %p266
      %p268 = scmp.ne.s32.totalorder %s257, %s258
      %p269 = scmp.eq.s32.totalorder %s35, 0
      %p270 = por %p268, %p269
      %p271 = scmp.ne.s32.totalorder %s257, %s258
      %p272 = scmp.eq.s32.totalorder %s36, 1
      %p273 = por %p271, %p272
      %p275 = scmp.ne.s32.totalorder %s258, %s274
      %p276 = scmp.eq.s32.totalorder %s36, 0
      %p277 = por %p275, %p276
      %s278 = ssub.s32 %s30, %s37
      %p279 = scmp.eq.s32.totalorder %s278, 0
      %s281 = sadd.s32 %s280, 1
      %s282 = scalar_select %p279, %s280, %s281
      %p285 = pneg %p279
      %p286 = scmp.eq.s32.totalorder %s30, 1
      %p287 = por %p285, %p286
      %p288 = scmp.ne.s32.totalorder %s280, %s283
      %p289 = scmp.eq.s32.totalorder %s30, 0
      %p290 = por %p288, %p289
      %p291 = scmp.ne.s32.totalorder %s280, %s283
      %p292 = scmp.eq.s32.totalorder %s35, 1
      %p293 = por %p291, %p292
      %p294 = scmp.ne.s32.totalorder %s283, %s284
      %p295 = scmp.eq.s32.totalorder %s35, 0
      %p296 = por %p294, %p295
      %p297 = scmp.ne.s32.totalorder %s283, %s284
      %p298 = scmp.eq.s32.totalorder %s36, 1
      %p299 = por %p297, %p298
      %p301 = scmp.ne.s32.totalorder %s284, %s300
      %p302 = scmp.eq.s32.totalorder %s36, 0
      %p303 = por %p301, %p302
      %s304 = ssub.s32 %s30, %s37
      %p305 = scmp.eq.s32.totalorder %s304, 0
      %s307 = sadd.s32 %s306, 1
      %s308 = scalar_select %p305, %s306, %s307
      %p311 = pneg %p305
      %p312 = scmp.eq.s32.totalorder %s30, 1
      %p313 = por %p311, %p312
      %p314 = scmp.ne.s32.totalorder %s306, %s309
      %p315 = scmp.eq.s32.totalorder %s30, 0
      %p316 = por %p314, %p315
      %p317 = scmp.ne.s32.totalorder %s306, %s309
      %p318 = scmp.eq.s32.totalorder %s35, 1
      %p319 = por %p317, %p318
      %p320 = scmp.ne.s32.totalorder %s309, %s310
      %p321 = scmp.eq.s32.totalorder %s35, 0
      %p322 = por %p320, %p321
      %p323 = scmp.ne.s32.totalorder %s309, %s310
      %p324 = scmp.eq.s32.totalorder %s36, 1
      %p325 = por %p323, %p324
      %p327 = scmp.ne.s32.totalorder %s310, %s326
      %p328 = scmp.eq.s32.totalorder %s36, 0
      %p329 = por %p327, %p328
      %s330 = ssub.s32 %s30, %s37
      %p331 = scmp.eq.s32.totalorder %s330, 0
      %s333 = sadd.s32 %s332, 1
      %s334 = scalar_select %p331, %s332, %s333
      %p337 = pneg %p331
      %p338 = scmp.eq.s32.totalorder %s30, 1
      %p339 = por %p337, %p338
      %p340 = scmp.ne.s32.totalorder %s332, %s335
      %p341 = scmp.eq.s32.totalorder %s30, 0
      %p342 = por %p340, %p341
      %p343 = scmp.ne.s32.totalorder %s332, %s335
      %p344 = scmp.eq.s32.totalorder %s35, 1
      %p345 = por %p343, %p344
      %p346 = scmp.ne.s32.totalorder %s335, %s336
      %p347 = scmp.eq.s32.totalorder %s35, 0
      %p348 = por %p346, %p347
      %p349 = scmp.ne.s32.totalorder %s335, %s336
      %p350 = scmp.eq.s32.totalorder %s36, 1
      %p351 = por %p349, %p350
      %p353 = scmp.ne.s32.totalorder %s336, %s352
      %p354 = scmp.eq.s32.totalorder %s36, 0
      %p355 = por %p353, %p354
      %s356 = ssub.s32 %s30, %s37
      %p357 = scmp.eq.s32.totalorder %s356, 0
      %s359 = sadd.s32 %s358, 1
      %s360 = scalar_select %p357, %s358, %s359
      %p363 = pneg %p357
      %p364 = scmp.eq.s32.totalorder %s30, 1
      %p365 = por %p363, %p364
      %p366 = scmp.ne.s32.totalorder %s358, %s361
      %p367 = scmp.eq.s32.totalorder %s30, 0
      %p368 = por %p366, %p367
      %p369 = scmp.ne.s32.totalorder %s358, %s361
      %p370 = scmp.eq.s32.totalorder %s35, 1
      %p371 = por %p369, %p370
      %p372 = scmp.ne.s32.totalorder %s361, %s362
      %p373 = scmp.eq.s32.totalorder %s35, 0
      %p374 = por %p372, %p373
      %p375 = scmp.ne.s32.totalorder %s361, %s362
      %p376 = scmp.eq.s32.totalorder %s36, 1
      %p377 = por %p375, %p376
      %p379 = scmp.ne.s32.totalorder %s362, %s378
      %p380 = scmp.eq.s32.totalorder %s36, 0
      %p381 = por %p379, %p380
      %s382 = ssub.s32 %s30, %s37
      %p383 = scmp.eq.s32.totalorder %s382, 0
      %s385 = sadd.s32 %s384, 1
      %s386 = scalar_select %p383, %s384, %s385
      %p389 = pneg %p383
      %p390 = scmp.eq.s32.totalorder %s30, 1
      %p391 = por %p389, %p390
      %p392 = scmp.ne.s32.totalorder %s384, %s387
      %p393 = scmp.eq.s32.totalorder %s30, 0
      %p394 = por %p392, %p393
      %p395 = scmp.ne.s32.totalorder %s384, %s387
      %p396 = scmp.eq.s32.totalorder %s35, 1
      %p397 = por %p395, %p396
      %p398 = scmp.ne.s32.totalorder %s387, %s388
      %p399 = scmp.eq.s32.totalorder %s35, 0
      %p400 = por %p398, %p399
      %p401 = scmp.ne.s32.totalorder %s387, %s388
      %p402 = scmp.eq.s32.totalorder %s36, 1
      %p403 = por %p401, %p402
      %p405 = scmp.ne.s32.totalorder %s388, %s404
      %p406 = scmp.eq.s32.totalorder %s36, 0
      %p407 = por %p405, %p406
      %s408 = ssub.s32 %s30, %s37
      %p409 = scmp.eq.s32.totalorder %s408, 0
      %s411 = sadd.s32 %s410, 1
      %s412 = scalar_select %p409, %s410, %s411
      %p415 = pneg %p409
      %p416 = scmp.eq.s32.totalorder %s30, 1
      %p417 = por %p415, %p416
      %p418 = scmp.ne.s32.totalorder %s410, %s413
      %p419 = scmp.eq.s32.totalorder %s30, 0
      %p420 = por %p418, %p419
      %p421 = scmp.ne.s32.totalorder %s410, %s413
      %p422 = scmp.eq.s32.totalorder %s35, 1
      %p423 = por %p421, %p422
      %p424 = scmp.ne.s32.totalorder %s413, %s414
      %p425 = scmp.eq.s32.totalorder %s35, 0
      %p426 = por %p424, %p425
      %p427 = scmp.ne.s32.totalorder %s413, %s414
      %p428 = scmp.eq.s32.totalorder %s36, 1
      %p429 = por %p427, %p428
      %p431 = scmp.ne.s32.totalorder %s414, %s430
      %p432 = scmp.eq.s32.totalorder %s36, 0
      %p433 = por %p431, %p432
      %s434 = ssub.s32 %s30, %s37
      %p435 = scmp.eq.s32.totalorder %s434, 0
      %s437 = sadd.s32 %s436, 1
      %s438 = scalar_select %p435, %s436, %s437
      %p441 = pneg %p435
      %p442 = scmp.eq.s32.totalorder %s30, 1
      %p443 = por %p441, %p442
      %p444 = scmp.ne.s32.totalorder %s436, %s439
      %p445 = scmp.eq.s32.totalorder %s30, 0
      %p446 = por %p444, %p445
      %p447 = scmp.ne.s32.totalorder %s436, %s439
      %p448 = scmp.eq.s32.totalorder %s35, 1
      %p449 = por %p447, %p448
      %p450 = scmp.ne.s32.totalorder %s439, %s440
      %p451 = scmp.eq.s32.totalorder %s35, 0
      %p452 = por %p450, %p451
      %p453 = scmp.ne.s32.totalorder %s439, %s440
      %p454 = scmp.eq.s32.totalorder %s36, 1
      %p455 = por %p453, %p454
      %p457 = scmp.ne.s32.totalorder %s440, %s456
      %p458 = scmp.eq.s32.totalorder %s36, 0
      %p459 = por %p457, %p458
      %s460 = ssub.s32 %s30, %s37
      %p461 = scmp.eq.s32.totalorder %s460, 0
      %s463 = sadd.s32 %s462, 1
      %s464 = scalar_select %p461, %s462, %s463
      %p467 = pneg %p461
      %p468 = scmp.eq.s32.totalorder %s30, 1
      %p469 = por %p467, %p468
      %p470 = scmp.ne.s32.totalorder %s462, %s465
      %p471 = scmp.eq.s32.totalorder %s30, 0
      %p472 = por %p470, %p471
      %p473 = scmp.ne.s32.totalorder %s462, %s465
      %p474 = scmp.eq.s32.totalorder %s35, 1
      %p475 = por %p473, %p474
      %p476 = scmp.ne.s32.totalorder %s465, %s466
      %p477 = scmp.eq.s32.totalorder %s35, 0
      %p478 = por %p476, %p477
      %p479 = scmp.ne.s32.totalorder %s465, %s466
      %p480 = scmp.eq.s32.totalorder %s36, 1
      %p481 = por %p479, %p480
      %p483 = scmp.ne.s32.totalorder %s466, %s482
      %p484 = scmp.eq.s32.totalorder %s36, 0
      %p485 = por %p483, %p484
      %s486 = ssub.s32 %s30, %s37
      %p487 = scmp.eq.s32.totalorder %s486, 0
      %s489 = sadd.s32 %s488, 1
      %s490 = scalar_select %p487, %s488, %s489
      %p493 = pneg %p487
      %p494 = scmp.eq.s32.totalorder %s30, 1
      %p495 = por %p493, %p494
      %p496 = scmp.ne.s32.totalorder %s488, %s491
      %p497 = scmp.eq.s32.totalorder %s30, 0
      %p498 = por %p496, %p497
      %p499 = scmp.ne.s32.totalorder %s488, %s491
      %p500 = scmp.eq.s32.totalorder %s35, 1
      %p501 = por %p499, %p500
      %p502 = scmp.ne.s32.totalorder %s491, %s492
      %p503 = scmp.eq.s32.totalorder %s35, 0
      %p504 = por %p502, %p503
      %p505 = scmp.ne.s32.totalorder %s491, %s492
      %p506 = scmp.eq.s32.totalorder %s36, 1
      %p507 = por %p505, %p506
      %p509 = scmp.ne.s32.totalorder %s492, %s508
      %p510 = scmp.eq.s32.totalorder %s36, 0
      %p511 = por %p509, %p510
      %s512 = ssub.s32 %s30, %s37
      %p513 = scmp.eq.s32.totalorder %s512, 0
      %s515 = sadd.s32 %s514, 1
      %s516 = scalar_select %p513, %s514, %s515
      %p519 = pneg %p513
      %p520 = scmp.eq.s32.totalorder %s30, 1
      %p521 = por %p519, %p520
      %p522 = scmp.ne.s32.totalorder %s514, %s517
      %p523 = scmp.eq.s32.totalorder %s30, 0
      %p524 = por %p522, %p523
      %p525 = scmp.ne.s32.totalorder %s514, %s517
      %p526 = scmp.eq.s32.totalorder %s35, 1
      %p527 = por %p525, %p526
      %p528 = scmp.ne.s32.totalorder %s517, %s518
      %p529 = scmp.eq.s32.totalorder %s35, 0
      %p530 = por %p528, %p529
      %p531 = scmp.ne.s32.totalorder %s517, %s518
      %p532 = scmp.eq.s32.totalorder %s36, 1
      %p533 = por %p531, %p532
      %p535 = scmp.ne.s32.totalorder %s518, %s534
      %p536 = scmp.eq.s32.totalorder %s36, 0
      %p537 = por %p535, %p536
      %s539 = sadd.s32 %s538, 1
      %p542 = scmp.eq.s32.totalorder %s30, 1
      %p543 = scmp.ne.s32.totalorder %s538, %s540
      %p544 = scmp.eq.s32.totalorder %s30, 0
      %p545 = por %p543, %p544
      %p546 = scmp.ne.s32.totalorder %s538, %s540
      %p547 = scmp.eq.s32.totalorder %s35, 1
      %p548 = por %p546, %p547
      %p549 = scmp.ne.s32.totalorder %s540, %s541
      %p550 = scmp.eq.s32.totalorder %s35, 0
      %p551 = por %p549, %p550
      %p552 = scmp.ne.s32.totalorder %s540, %s541
      %p553 = scmp.eq.s32.totalorder %s36, 1
      %p554 = por %p552, %p553
      %p556 = scmp.ne.s32.totalorder %s541, %s555
      %p557 = scmp.eq.s32.totalorder %s36, 0
      %p558 = por %p556, %p557
      %p559 = scmp.le.s32.totalorder 1, %s30
      %p560 = scmp.lt.s32.totalorder %s30, 3
      %p561 = pnand %p559, %p560
      %p562 = pneg %p561
      // Predicated region
      $region9: #{_forward_impl.3} parent=5 // pred_check
        _
      $region10: #{_forward_impl.3} parent=5 // pred_check_branch
        %564 = sbr.rel (%p561) target = $region12
      $region11: #{_forward_impl.3} parent=5 // pred_region
        %s565 = ssub.s32 %s30, 1
        // Predicated region
        $region13: #{_forward_impl.3} parent=11 // pred_check
          %p566 = pneg %p51
        $region14: #{_forward_impl.3} parent=11 // pred_check_branch
          %568 = sbr.rel (%p566) target = $region16
        $region15: #{_forward_impl.3} parent=11 // pred_region
          %s570 = ssub.s32 512, 512
          %571 = vsyncadd [#allocation4], %s570
          %s572 = sshll.u32 [#allocation3], 4
          %s573 = int_to_ptr.vmem [resolvable:$true] %s572
          %578 = dma.hbm_to_vmem [thread:$0]  %s0, 512, %s573, [#allocation4], 256, 256, 16
        $region16: #{_forward_impl.3} parent=11 // pred_fallthru
          _
        // Predicated region
        $region17: #{_forward_impl.3} parent=11 // pred_check
          %p579 = pneg %p72
        $region18: #{_forward_impl.3} parent=11 // pred_check_branch
          %581 = sbr.rel (%p579) target = $region20
        $region19: #{_forward_impl.3} parent=11 // pred_region
          %s583 = ssub.s32 4096, 4096
          %584 = vsyncadd [#allocation7], %s583
          %s585 = sshll.u32 [#allocation6], 4
          %s586 = int_to_ptr.vmem [resolvable:$true] %s585
          %591 = dma.hbm_to_vmem [thread:$0]  %s1, 4096, %s586, [#allocation7], 64, 64, 4
        $region20: #{_forward_impl.3} parent=11 // pred_fallthru
          _
        // Predicated region
        $region21: #{_forward_impl.3} parent=11 // pred_check
          %p592 = pneg %p93
        $region22: #{_forward_impl.3} parent=11 // pred_check_branch
          %594 = sbr.rel (%p592) target = $region24
        $region23: #{_forward_impl.3} parent=11 // pred_region
          %s596 = ssub.s32 16, 16
          %597 = vsyncadd [#allocation7], %s596
          %s599 = sshll.u32 [#allocation8], 4
          %s600 = int_to_ptr.vmem [resolvable:$true] %s599
          %602 = dma.hbm_to_vmem [thread:$0]  %s2, 16, %s600, [#allocation7]
        $region24: #{_forward_impl.3} parent=11 // pred_fallthru
          _
        // Predicated region
        $region25: #{_forward_impl.3} parent=11 // pred_check
          %p603 = pneg %p114
        $region26: #{_forward_impl.3} parent=11 // pred_check_branch
          %605 = sbr.rel (%p603) target = $region28
        $region27: #{_forward_impl.3} parent=11 // pred_region
          %s607 = ssub.s32 128, 128
          %608 = vsyncadd [#allocation10], %s607
          %s609 = sshll.u32 [#allocation9], 4
          %s610 = int_to_ptr.vmem [resolvable:$true] %s609
          %615 = dma.hbm_to_vmem [thread:$0]  %s3, 128, %s610, [#allocation10], 64, 64, 4
        $region28: #{_forward_impl.3} parent=11 // pred_fallthru
          _
      $region12: #{_forward_impl.3} parent=5 // pred_fallthru
        _
      %p616 = scmp.lt.s32.totalorder %s30, 2
      // Predicated region
      $region29: #{_forward_impl.3} parent=5 // pred_check
        %p617 = pneg %p616
      $region30: #{_forward_impl.3} parent=5 // pred_check_branch
        %619 = sbr.rel (%p617) target = $region32
      $region31: #{_forward_impl.3} parent=5 // pred_region
        // Predicated region
        $region33: #{_forward_impl.3} parent=31 // pred_check
          %p620 = pneg %p134
        $region34: #{_forward_impl.3} parent=31 // pred_check_branch
          %622 = sbr.rel (%p620) target = $region36
        $region35: #{_forward_impl.3} parent=31 // pred_region
          %s623 = sand.u32 %s30, 1
          %s624 = scalar_lea.sflag [#allocation4], %s623
          %s625 = sand.u32 %s124, 1
          %s626 = smul.addr %s625, 16
          %s627 = scalar_lea.vmem [#allocation11], %s626
          %s629 = ssub.s32 256, 256
          %630 = vsyncadd %s624, %s629
          %s631 = smul.addr %s30, 4
          %s632 = smul.addr %s631, 64
          %s633 = scalar_lea.hbm %s4, %s632
          %s634 = sshll.u32 %s627, 4
          %s635 = int_to_ptr.vmem [resolvable:$true] %s634
          %640 = dma.hbm_to_vmem [thread:$0]  %s633, 256, %s635, %s624, 64, 64, 4
        $region36: #{_forward_impl.3} parent=31 // pred_fallthru
          _
        // Predicated region
        $region37: #{_forward_impl.3} parent=31 // pred_check
          %p641 = pneg %p160
        $region38: #{_forward_impl.3} parent=31 // pred_check_branch
          %643 = sbr.rel (%p641) target = $region40
        $region39: #{_forward_impl.3} parent=31 // pred_region
          %s644 = sand.u32 %s30, 1
          %s645 = scalar_lea.sflag [#allocation4], %s644
          %s646 = sand.u32 %s150, 1
          %s647 = scalar_lea.vmem [#allocation12], %s646
          %s649 = ssub.s32 16, 16
          %650 = vsyncadd %s645, %s649
          %s651 = smul.addr %s30, 16
          %s652 = scalar_lea.hbm %s5, %s651
          %s654 = sshll.u32 %s647, 4
          %s655 = int_to_ptr.vmem [resolvable:$true] %s654
          %657 = dma.hbm_to_vmem [thread:$0]  %s652, 16, %s655, %s645
        $region40: #{_forward_impl.3} parent=31 // pred_fallthru
          _
        // Predicated region
        $region41: #{_forward_impl.3} parent=31 // pred_check
          %p658 = pneg %p186
        $region42: #{_forward_impl.3} parent=31 // pred_check_branch
          %660 = sbr.rel (%p658) target = $region44
        $region43: #{_forward_impl.3} parent=31 // pred_region
          %s661 = sand.u32 %s30, 1
          %s662 = scalar_lea.sflag [#allocation4], %s661
          %s663 = sand.u32 %s176, 1
          %s664 = smul.addr %s663, 16
          %s665 = scalar_lea.vmem [#allocation13], %s664
          %s667 = ssub.s32 256, 256
          %668 = vsyncadd %s662, %s667
          %s669 = smul.addr %s30, 4
          %s670 = smul.addr %s669, 64
          %s671 = scalar_lea.hbm %s6, %s670
          %s672 = sshll.u32 %s665, 4
          %s673 = int_to_ptr.vmem [resolvable:$true] %s672
          %678 = dma.hbm_to_vmem [thread:$0]  %s671, 256, %s673, %s662, 64, 64, 4
        $region44: #{_forward_impl.3} parent=31 // pred_fallthru
          _
        // Predicated region
        $region45: #{_forward_impl.3} parent=31 // pred_check
          %p679 = pneg %p212
        $region46: #{_forward_impl.3} parent=31 // pred_check_branch
          %681 = sbr.rel (%p679) target = $region48
        $region47: #{_forward_impl.3} parent=31 // pred_region
          %s682 = sand.u32 %s30, 1
          %s683 = scalar_lea.sflag [#allocation4], %s682
          %s684 = sand.u32 %s202, 1
          %s685 = scalar_lea.vmem [#allocation14], %s684
          %s687 = ssub.s32 16, 16
          %688 = vsyncadd %s683, %s687
          %s689 = smul.addr %s30, 16
          %s690 = scalar_lea.hbm %s7, %s689
          %s692 = sshll.u32 %s685, 4
          %s693 = int_to_ptr.vmem [resolvable:$true] %s692
          %695 = dma.hbm_to_vmem [thread:$0]  %s690, 16, %s693, %s683
        $region48: #{_forward_impl.3} parent=31 // pred_fallthru
          _
        // Predicated region
        $region49: #{_forward_impl.3} parent=31 // pred_check
          %p696 = pneg %p238
        $region50: #{_forward_impl.3} parent=31 // pred_check_branch
          %698 = sbr.rel (%p696) target = $region52
        $region51: #{_forward_impl.3} parent=31 // pred_region
          %s699 = sand.u32 %s30, 1
          %s700 = scalar_lea.sflag [#allocation4], %s699
          %s701 = sand.u32 %s228, 1
          %s702 = smul.addr %s701, 16
          %s703 = scalar_lea.vmem [#allocation15], %s702
          %s705 = ssub.s32 256, 256
          %706 = vsyncadd %s700, %s705
          %s707 = smul.addr %s30, 4
          %s708 = smul.addr %s707, 64
          %s709 = scalar_lea.hbm %s8, %s708
          %s710 = sshll.u32 %s703, 4
          %s711 = int_to_ptr.vmem [resolvable:$true] %s710
          %716 = dma.hbm_to_vmem [thread:$0]  %s709, 256, %s711, %s700, 64, 64, 4
        $region52: #{_forward_impl.3} parent=31 // pred_fallthru
          _
        // Predicated region
        $region53: #{_forward_impl.3} parent=31 // pred_check
          %p717 = pneg %p264
        $region54: #{_forward_impl.3} parent=31 // pred_check_branch
          %719 = sbr.rel (%p717) target = $region56
        $region55: #{_forward_impl.3} parent=31 // pred_region
          %s720 = sand.u32 %s30, 1
          %s721 = scalar_lea.sflag [#allocation4], %s720
          %s722 = sand.u32 %s254, 1
          %s723 = scalar_lea.vmem [#allocation16], %s722
          %s725 = ssub.s32 16, 16
          %726 = vsyncadd %s721, %s725
          %s727 = smul.addr %s30, 16
          %s728 = scalar_lea.hbm %s9, %s727
          %s730 = sshll.u32 %s723, 4
          %s731 = int_to_ptr.vmem [resolvable:$true] %s730
          %733 = dma.hbm_to_vmem [thread:$0]  %s728, 16, %s731, %s721
        $region56: #{_forward_impl.3} parent=31 // pred_fallthru
          _
        // Predicated region
        $region57: #{_forward_impl.3} parent=31 // pred_check
          %p734 = pneg %p290
        $region58: #{_forward_impl.3} parent=31 // pred_check_branch
          %736 = sbr.rel (%p734) target = $region60
        $region59: #{_forward_impl.3} parent=31 // pred_region
          %s737 = sand.u32 %s30, 1
          %s738 = scalar_lea.sflag [#allocation4], %s737
          %s739 = sand.u32 %s280, 1
          %s740 = smul.addr %s739, 16
          %s741 = scalar_lea.vmem [#allocation17], %s740
          %s743 = ssub.s32 256, 256
          %744 = vsyncadd %s738, %s743
          %s745 = smul.addr %s30, 4
          %s746 = smul.addr %s745, 64
          %s747 = scalar_lea.hbm %s10, %s746
          %s748 = sshll.u32 %s741, 4
          %s749 = int_to_ptr.vmem [resolvable:$true] %s748
          %754 = dma.hbm_to_vmem [thread:$0]  %s747, 256, %s749, %s738, 64, 64, 4
        $region60: #{_forward_impl.3} parent=31 // pred_fallthru
          _
        // Predicated region
        $region61: #{_forward_impl.3} parent=31 // pred_check
          %p755 = pneg %p316
        $region62: #{_forward_impl.3} parent=31 // pred_check_branch
          %757 = sbr.rel (%p755) target = $region64
        $region63: #{_forward_impl.3} parent=31 // pred_region
          %s758 = sand.u32 %s30, 1
          %s759 = scalar_lea.sflag [#allocation4], %s758
          %s760 = sand.u32 %s306, 1
          %s761 = scalar_lea.vmem [#allocation18], %s760
          %s763 = ssub.s32 16, 16
          %764 = vsyncadd %s759, %s763
          %s765 = smul.addr %s30, 16
          %s766 = scalar_lea.hbm %s11, %s765
          %s768 = sshll.u32 %s761, 4
          %s769 = int_to_ptr.vmem [resolvable:$true] %s768
          %771 = dma.hbm_to_vmem [thread:$0]  %s766, 16, %s769, %s759
        $region64: #{_forward_impl.3} parent=31 // pred_fallthru
          _
        // Predicated region
        $region65: #{_forward_impl.3} parent=31 // pred_check
          %p772 = pneg %p342
        $region66: #{_forward_impl.3} parent=31 // pred_check_branch
          %774 = sbr.rel (%p772) target = $region68
        $region67: #{_forward_impl.3} parent=31 // pred_region
          %s775 = sand.u32 %s30, 1
          %s776 = scalar_lea.sflag [#allocation4], %s775
          %s777 = sand.u32 %s332, 1
          %s778 = scalar_lea.vmem [#allocation19], %s777
          %s780 = ssub.s32 16, 16
          %781 = vsyncadd %s776, %s780
          %s782 = smul.addr %s30, 16
          %s783 = scalar_lea.hbm %s12, %s782
          %s785 = sshll.u32 %s778, 4
          %s786 = int_to_ptr.vmem [resolvable:$true] %s785
          %788 = dma.hbm_to_vmem [thread:$0]  %s783, 16, %s786, %s776
        $region68: #{_forward_impl.3} parent=31 // pred_fallthru
          _
        // Predicated region
        $region69: #{_forward_impl.3} parent=31 // pred_check
          %p789 = pneg %p368
        $region70: #{_forward_impl.3} parent=31 // pred_check_branch
          %791 = sbr.rel (%p789) target = $region72
        $region71: #{_forward_impl.3} parent=31 // pred_region
          %s792 = sand.u32 %s30, 1
          %s793 = scalar_lea.sflag [#allocation4], %s792
          %s794 = sand.u32 %s358, 1
          %s795 = scalar_lea.vmem [#allocation20], %s794
          %s797 = ssub.s32 16, 16
          %798 = vsyncadd %s793, %s797
          %s799 = smul.addr %s30, 16
          %s800 = scalar_lea.hbm %s13, %s799
          %s802 = sshll.u32 %s795, 4
          %s803 = int_to_ptr.vmem [resolvable:$true] %s802
          %805 = dma.hbm_to_vmem [thread:$0]  %s800, 16, %s803, %s793
        $region72: #{_forward_impl.3} parent=31 // pred_fallthru
          _
        // Predicated region
        $region73: #{_forward_impl.3} parent=31 // pred_check
          %p806 = pneg %p394
        $region74: #{_forward_impl.3} parent=31 // pred_check_branch
          %808 = sbr.rel (%p806) target = $region76
        $region75: #{_forward_impl.3} parent=31 // pred_region
          %s809 = sand.u32 %s30, 1
          %s810 = scalar_lea.sflag [#allocation4], %s809
          %s811 = sand.u32 %s384, 1
          %s812 = scalar_lea.vmem [#allocation21], %s811
          %s814 = ssub.s32 16, 16
          %815 = vsyncadd %s810, %s814
          %s816 = smul.addr %s30, 16
          %s817 = scalar_lea.hbm %s14, %s816
          %s819 = sshll.u32 %s812, 4
          %s820 = int_to_ptr.vmem [resolvable:$true] %s819
          %822 = dma.hbm_to_vmem [thread:$0]  %s817, 16, %s820, %s810
        $region76: #{_forward_impl.3} parent=31 // pred_fallthru
          _
        // Predicated region
        $region77: #{_forward_impl.3} parent=31 // pred_check
          %p823 = pneg %p420
        $region78: #{_forward_impl.3} parent=31 // pred_check_branch
          %825 = sbr.rel (%p823) target = $region80
        $region79: #{_forward_impl.3} parent=31 // pred_region
          %s826 = sand.u32 %s30, 1
          %s827 = scalar_lea.sflag [#allocation4], %s826
          %s828 = sand.u32 %s410, 1
          %s829 = scalar_lea.vmem [#allocation22], %s828
          %s831 = ssub.s32 16, 16
          %832 = vsyncadd %s827, %s831
          %s833 = smul.addr %s30, 16
          %s834 = scalar_lea.hbm %s15, %s833
          %s836 = sshll.u32 %s829, 4
          %s837 = int_to_ptr.vmem [resolvable:$true] %s836
          %839 = dma.hbm_to_vmem [thread:$0]  %s834, 16, %s837, %s827
        $region80: #{_forward_impl.3} parent=31 // pred_fallthru
          _
        // Predicated region
        $region81: #{_forward_impl.3} parent=31 // pred_check
          %p840 = pneg %p446
        $region82: #{_forward_impl.3} parent=31 // pred_check_branch
          %842 = sbr.rel (%p840) target = $region84
        $region83: #{_forward_impl.3} parent=31 // pred_region
          %s843 = sand.u32 %s30, 1
          %s844 = scalar_lea.sflag [#allocation4], %s843
          %s845 = sand.u32 %s436, 1
          %s846 = smul.addr %s845, 16
          %s847 = scalar_lea.vmem [#allocation23], %s846
          %s849 = ssub.s32 256, 256
          %850 = vsyncadd %s844, %s849
          %s851 = smul.addr %s30, 4
          %s852 = smul.addr %s851, 64
          %s853 = scalar_lea.hbm %s16, %s852
          %s854 = sshll.u32 %s847, 4
          %s855 = int_to_ptr.vmem [resolvable:$true] %s854
          %860 = dma.hbm_to_vmem [thread:$0]  %s853, 256, %s855, %s844, 64, 64, 4
        $region84: #{_forward_impl.3} parent=31 // pred_fallthru
          _
        // Predicated region
        $region85: #{_forward_impl.3} parent=31 // pred_check
          %p861 = pneg %p472
        $region86: #{_forward_impl.3} parent=31 // pred_check_branch
          %863 = sbr.rel (%p861) target = $region88
        $region87: #{_forward_impl.3} parent=31 // pred_region
          %s864 = sand.u32 %s30, 1
          %s865 = scalar_lea.sflag [#allocation4], %s864
          %s866 = sand.u32 %s462, 1
          %s867 = scalar_lea.vmem [#allocation24], %s866
          %s869 = ssub.s32 16, 16
          %870 = vsyncadd %s865, %s869
          %s871 = smul.addr %s30, 16
          %s872 = scalar_lea.hbm %s17, %s871
          %s874 = sshll.u32 %s867, 4
          %s875 = int_to_ptr.vmem [resolvable:$true] %s874
          %877 = dma.hbm_to_vmem [thread:$0]  %s872, 16, %s875, %s865
        $region88: #{_forward_impl.3} parent=31 // pred_fallthru
          _
        // Predicated region
        $region89: #{_forward_impl.3} parent=31 // pred_check
          %p878 = pneg %p498
        $region90: #{_forward_impl.3} parent=31 // pred_check_branch
          %880 = sbr.rel (%p878) target = $region92
        $region91: #{_forward_impl.3} parent=31 // pred_region
          %s881 = sand.u32 %s30, 1
          %s882 = scalar_lea.sflag [#allocation4], %s881
          %s883 = sand.u32 %s488, 1
          %s884 = smul.addr %s883, 32
          %s885 = scalar_lea.vmem [#allocation25], %s884
          %s887 = ssub.s32 512, 512
          %888 = vsyncadd %s882, %s887
          %s889 = smul.addr %s30, 8
          %s890 = smul.addr %s889, 64
          %s891 = scalar_lea.hbm %s18, %s890
          %s892 = sshll.u32 %s885, 4
          %s893 = int_to_ptr.vmem [resolvable:$true] %s892
          %898 = dma.hbm_to_vmem [thread:$0]  %s891, 512, %s893, %s882, 64, 64, 4
        $region92: #{_forward_impl.3} parent=31 // pred_fallthru
          _
        // Predicated region
        $region93: #{_forward_impl.3} parent=31 // pred_check
          %p899 = pneg %p524
        $region94: #{_forward_impl.3} parent=31 // pred_check_branch
          %901 = sbr.rel (%p899) target = $region96
        $region95: #{_forward_impl.3} parent=31 // pred_region
          %s902 = sand.u32 %s30, 1
          %s903 = scalar_lea.sflag [#allocation4], %s902
          %s904 = sand.u32 %s514, 1
          %s905 = scalar_lea.vmem [#allocation26], %s904
          %s907 = ssub.s32 16, 16
          %908 = vsyncadd %s903, %s907
          %s909 = smul.addr %s30, 16
          %s910 = scalar_lea.hbm %s19, %s909
          %s912 = sshll.u32 %s905, 4
          %s913 = int_to_ptr.vmem [resolvable:$true] %s912
          %915 = dma.hbm_to_vmem [thread:$0]  %s910, 16, %s913, %s903
        $region96: #{_forward_impl.3} parent=31 // pred_fallthru
          _
      $region32: #{_forward_impl.3} parent=5 // pred_fallthru
        _
      %p916 = scmp.le.s32.totalorder 1, %s30
      %p917 = scmp.lt.s32.totalorder %s30, 3
      %p918 = pnand %p916, %p917
      %p919 = pneg %p918
      // Predicated region
      $region97: #{_forward_impl.3} parent=5 // pred_check
        _
      $region98: #{_forward_impl.3} parent=5 // pred_check_branch
        %921 = sbr.rel (%p918) target = $region100
      $region99: #{_forward_impl.3} parent=5 // pred_region
        %s922 = ssub.s32 %s30, 1
        // Predicated region
        $region101: #{_forward_impl.3} parent=99 // pred_check
          %p923 = pneg %p51
        $region102: #{_forward_impl.3} parent=99 // pred_check_branch
          %925 = sbr.rel (%p923) target = $region104
        $region103: #{_forward_impl.3} parent=99 // pred_region
          %926 = dma.done [#allocation4], 512
        $region104: #{_forward_impl.3} parent=99 // pred_fallthru
          _
        // Predicated region
        $region105: #{_forward_impl.3} parent=99 // pred_check
          %p927 = pneg %p72
        $region106: #{_forward_impl.3} parent=99 // pred_check_branch
          %929 = sbr.rel (%p927) target = $region108
        $region107: #{_forward_impl.3} parent=99 // pred_region
          %930 = dma.done [#allocation7], 4096
        $region108: #{_forward_impl.3} parent=99 // pred_fallthru
          _
        // Predicated region
        $region109: #{_forward_impl.3} parent=99 // pred_check
          %p931 = pneg %p93
        $region110: #{_forward_impl.3} parent=99 // pred_check_branch
          %933 = sbr.rel (%p931) target = $region112
        $region111: #{_forward_impl.3} parent=99 // pred_region
          %934 = dma.done [#allocation7], 16
        $region112: #{_forward_impl.3} parent=99 // pred_fallthru
          _
        // Predicated region
        $region113: #{_forward_impl.3} parent=99 // pred_check
          %p935 = pneg %p114
        $region114: #{_forward_impl.3} parent=99 // pred_check_branch
          %937 = sbr.rel (%p935) target = $region116
        $region115: #{_forward_impl.3} parent=99 // pred_region
          %938 = dma.done [#allocation10], 128
        $region116: #{_forward_impl.3} parent=99 // pred_fallthru
          _
        %s939 = sand.u32 %s35, 1
        %s940 = scalar_lea.sflag [#allocation4], %s939
        %s941 = sand.u32 %s127, 1
        %s942 = smul.addr %s941, 16
        %s943 = scalar_lea.vmem [#allocation11], %s942
        // Predicated region
        $region117: #{_forward_impl.3} parent=99 // pred_check
          %p944 = pneg %p140
        $region118: #{_forward_impl.3} parent=99 // pred_check_branch
          %946 = sbr.rel (%p944) target = $region120
        $region119: #{_forward_impl.3} parent=99 // pred_region
          %947 = dma.done %s940, 256
        $region120: #{_forward_impl.3} parent=99 // pred_fallthru
          _
        %s948 = sand.u32 %s35, 1
        %s949 = scalar_lea.sflag [#allocation4], %s948
        %s950 = sand.u32 %s153, 1
        %s951 = scalar_lea.vmem [#allocation12], %s950
        // Predicated region
        $region121: #{_forward_impl.3} parent=99 // pred_check
          %p952 = pneg %p166
        $region122: #{_forward_impl.3} parent=99 // pred_check_branch
          %954 = sbr.rel (%p952) target = $region124
        $region123: #{_forward_impl.3} parent=99 // pred_region
          %955 = dma.done %s949, 16
        $region124: #{_forward_impl.3} parent=99 // pred_fallthru
          _
        %s956 = sand.u32 %s35, 1
        %s957 = scalar_lea.sflag [#allocation4], %s956
        %s958 = sand.u32 %s179, 1
        %s959 = smul.addr %s958, 16
        %s960 = scalar_lea.vmem [#allocation13], %s959
        // Predicated region
        $region125: #{_forward_impl.3} parent=99 // pred_check
          %p961 = pneg %p192
        $region126: #{_forward_impl.3} parent=99 // pred_check_branch
          %963 = sbr.rel (%p961) target = $region128
        $region127: #{_forward_impl.3} parent=99 // pred_region
          %964 = dma.done %s957, 256
        $region128: #{_forward_impl.3} parent=99 // pred_fallthru
          _
        %s965 = sand.u32 %s35, 1
        %s966 = scalar_lea.sflag [#allocation4], %s965
        %s967 = sand.u32 %s205, 1
        %s968 = scalar_lea.vmem [#allocation14], %s967
        // Predicated region
        $region129: #{_forward_impl.3} parent=99 // pred_check
          %p969 = pneg %p218
        $region130: #{_forward_impl.3} parent=99 // pred_check_branch
          %971 = sbr.rel (%p969) target = $region132
        $region131: #{_forward_impl.3} parent=99 // pred_region
          %972 = dma.done %s966, 16
        $region132: #{_forward_impl.3} parent=99 // pred_fallthru
          _
        %s973 = sand.u32 %s35, 1
        %s974 = scalar_lea.sflag [#allocation4], %s973
        %s975 = sand.u32 %s231, 1
        %s976 = smul.addr %s975, 16
        %s977 = scalar_lea.vmem [#allocation15], %s976
        // Predicated region
        $region133: #{_forward_impl.3} parent=99 // pred_check
          %p978 = pneg %p244
        $region134: #{_forward_impl.3} parent=99 // pred_check_branch
          %980 = sbr.rel (%p978) target = $region136
        $region135: #{_forward_impl.3} parent=99 // pred_region
          %981 = dma.done %s974, 256
        $region136: #{_forward_impl.3} parent=99 // pred_fallthru
          _
        %s982 = sand.u32 %s35, 1
        %s983 = scalar_lea.sflag [#allocation4], %s982
        %s984 = sand.u32 %s257, 1
        %s985 = scalar_lea.vmem [#allocation16], %s984
        // Predicated region
        $region137: #{_forward_impl.3} parent=99 // pred_check
          %p986 = pneg %p270
        $region138: #{_forward_impl.3} parent=99 // pred_check_branch
          %988 = sbr.rel (%p986) target = $region140
        $region139: #{_forward_impl.3} parent=99 // pred_region
          %989 = dma.done %s983, 16
        $region140: #{_forward_impl.3} parent=99 // pred_fallthru
          _
        %s990 = sand.u32 %s35, 1
        %s991 = scalar_lea.sflag [#allocation4], %s990
        %s992 = sand.u32 %s283, 1
        %s993 = smul.addr %s992, 16
        %s994 = scalar_lea.vmem [#allocation17], %s993
        // Predicated region
        $region141: #{_forward_impl.3} parent=99 // pred_check
          %p995 = pneg %p296
        $region142: #{_forward_impl.3} parent=99 // pred_check_branch
          %997 = sbr.rel (%p995) target = $region144
        $region143: #{_forward_impl.3} parent=99 // pred_region
          %998 = dma.done %s991, 256
        $region144: #{_forward_impl.3} parent=99 // pred_fallthru
          _
        %s999 = sand.u32 %s35, 1
        %s1000 = scalar_lea.sflag [#allocation4], %s999
        %s1001 = sand.u32 %s309, 1
        %s1002 = scalar_lea.vmem [#allocation18], %s1001
        // Predicated region
        $region145: #{_forward_impl.3} parent=99 // pred_check
          %p1003 = pneg %p322
        $region146: #{_forward_impl.3} parent=99 // pred_check_branch
          %1005 = sbr.rel (%p1003) target = $region148
        $region147: #{_forward_impl.3} parent=99 // pred_region
          %1006 = dma.done %s1000, 16
        $region148: #{_forward_impl.3} parent=99 // pred_fallthru
          _
        %s1007 = sand.u32 %s35, 1
        %s1008 = scalar_lea.sflag [#allocation4], %s1007
        %s1009 = sand.u32 %s335, 1
        %s1010 = scalar_lea.vmem [#allocation19], %s1009
        // Predicated region
        $region149: #{_forward_impl.3} parent=99 // pred_check
          %p1011 = pneg %p348
        $region150: #{_forward_impl.3} parent=99 // pred_check_branch
          %1013 = sbr.rel (%p1011) target = $region152
        $region151: #{_forward_impl.3} parent=99 // pred_region
          %1014 = dma.done %s1008, 16
        $region152: #{_forward_impl.3} parent=99 // pred_fallthru
          _
        %s1015 = sand.u32 %s35, 1
        %s1016 = scalar_lea.sflag [#allocation4], %s1015
        %s1017 = sand.u32 %s361, 1
        %s1018 = scalar_lea.vmem [#allocation20], %s1017
        // Predicated region
        $region153: #{_forward_impl.3} parent=99 // pred_check
          %p1019 = pneg %p374
        $region154: #{_forward_impl.3} parent=99 // pred_check_branch
          %1021 = sbr.rel (%p1019) target = $region156
        $region155: #{_forward_impl.3} parent=99 // pred_region
          %1022 = dma.done %s1016, 16
        $region156: #{_forward_impl.3} parent=99 // pred_fallthru
          _
        %s1023 = sand.u32 %s35, 1
        %s1024 = scalar_lea.sflag [#allocation4], %s1023
        %s1025 = sand.u32 %s387, 1
        %s1026 = scalar_lea.vmem [#allocation21], %s1025
        // Predicated region
        $region157: #{_forward_impl.3} parent=99 // pred_check
          %p1027 = pneg %p400
        $region158: #{_forward_impl.3} parent=99 // pred_check_branch
          %1029 = sbr.rel (%p1027) target = $region160
        $region159: #{_forward_impl.3} parent=99 // pred_region
          %1030 = dma.done %s1024, 16
        $region160: #{_forward_impl.3} parent=99 // pred_fallthru
          _
        %s1031 = sand.u32 %s35, 1
        %s1032 = scalar_lea.sflag [#allocation4], %s1031
        %s1033 = sand.u32 %s413, 1
        %s1034 = scalar_lea.vmem [#allocation22], %s1033
        // Predicated region
        $region161: #{_forward_impl.3} parent=99 // pred_check
          %p1035 = pneg %p426
        $region162: #{_forward_impl.3} parent=99 // pred_check_branch
          %1037 = sbr.rel (%p1035) target = $region164
        $region163: #{_forward_impl.3} parent=99 // pred_region
          %1038 = dma.done %s1032, 16
        $region164: #{_forward_impl.3} parent=99 // pred_fallthru
          _
        %s1039 = sand.u32 %s35, 1
        %s1040 = scalar_lea.sflag [#allocation4], %s1039
        %s1041 = sand.u32 %s439, 1
        %s1042 = smul.addr %s1041, 16
        %s1043 = scalar_lea.vmem [#allocation23], %s1042
        // Predicated region
        $region165: #{_forward_impl.3} parent=99 // pred_check
          %p1044 = pneg %p452
        $region166: #{_forward_impl.3} parent=99 // pred_check_branch
          %1046 = sbr.rel (%p1044) target = $region168
        $region167: #{_forward_impl.3} parent=99 // pred_region
          %1047 = dma.done %s1040, 256
        $region168: #{_forward_impl.3} parent=99 // pred_fallthru
          _
        %s1048 = sand.u32 %s35, 1
        %s1049 = scalar_lea.sflag [#allocation4], %s1048
        %s1050 = sand.u32 %s465, 1
        %s1051 = scalar_lea.vmem [#allocation24], %s1050
        // Predicated region
        $region169: #{_forward_impl.3} parent=99 // pred_check
          %p1052 = pneg %p478
        $region170: #{_forward_impl.3} parent=99 // pred_check_branch
          %1054 = sbr.rel (%p1052) target = $region172
        $region171: #{_forward_impl.3} parent=99 // pred_region
          %1055 = dma.done %s1049, 16
        $region172: #{_forward_impl.3} parent=99 // pred_fallthru
          _
        %s1056 = sand.u32 %s35, 1
        %s1057 = scalar_lea.sflag [#allocation4], %s1056
        %s1058 = sand.u32 %s491, 1
        %s1059 = smul.addr %s1058, 32
        %s1060 = scalar_lea.vmem [#allocation25], %s1059
        // Predicated region
        $region173: #{_forward_impl.3} parent=99 // pred_check
          %p1061 = pneg %p504
        $region174: #{_forward_impl.3} parent=99 // pred_check_branch
          %1063 = sbr.rel (%p1061) target = $region176
        $region175: #{_forward_impl.3} parent=99 // pred_region
          %1064 = dma.done %s1057, 512
        $region176: #{_forward_impl.3} parent=99 // pred_fallthru
          _
        %s1065 = sand.u32 %s35, 1
        %s1066 = scalar_lea.sflag [#allocation4], %s1065
        %s1067 = sand.u32 %s517, 1
        %s1068 = scalar_lea.vmem [#allocation26], %s1067
        // Predicated region
        $region177: #{_forward_impl.3} parent=99 // pred_check
          %p1069 = pneg %p530
        $region178: #{_forward_impl.3} parent=99 // pred_check_branch
          %1071 = sbr.rel (%p1069) target = $region180
        $region179: #{_forward_impl.3} parent=99 // pred_region
          %1072 = dma.done %s1066, 16
        $region180: #{_forward_impl.3} parent=99 // pred_fallthru
          _
        %p1073 = pneg %p51
        %p1074 = pneg %p48
        %p1075 = pneg %p72
        %p1076 = pneg %p69
        %p1077 = pneg %p93
        %p1078 = pneg %p90
        %p1079 = pneg %p114
        %p1080 = pneg %p111
        %s1081 = sand.u32 %s35, 1
        %s1082 = scalar_lea.sflag [#allocation4], %s1081
        %s1083 = sand.u32 %s127, 1
        %s1084 = smul.addr %s1083, 16
        %s1085 = scalar_lea.vmem [#allocation11], %s1084
        %p1086 = pneg %p140
        %p1087 = pneg %p137
        %s1088 = sand.u32 %s35, 1
        %s1089 = scalar_lea.sflag [#allocation4], %s1088
        %s1090 = sand.u32 %s153, 1
        %s1091 = scalar_lea.vmem [#allocation12], %s1090
        %p1092 = pneg %p166
        %p1093 = pneg %p163
        %s1094 = sand.u32 %s35, 1
        %s1095 = scalar_lea.sflag [#allocation4], %s1094
        %s1096 = sand.u32 %s179, 1
        %s1097 = smul.addr %s1096, 16
        %s1098 = scalar_lea.vmem [#allocation13], %s1097
        %p1099 = pneg %p192
        %p1100 = pneg %p189
        %s1101 = sand.u32 %s35, 1
        %s1102 = scalar_lea.sflag [#allocation4], %s1101
        %s1103 = sand.u32 %s205, 1
        %s1104 = scalar_lea.vmem [#allocation14], %s1103
        %p1105 = pneg %p218
        %p1106 = pneg %p215
        %s1107 = sand.u32 %s35, 1
        %s1108 = scalar_lea.sflag [#allocation4], %s1107
        %s1109 = sand.u32 %s231, 1
        %s1110 = smul.addr %s1109, 16
        %s1111 = scalar_lea.vmem [#allocation15], %s1110
        %p1112 = pneg %p244
        %p1113 = pneg %p241
        %s1114 = sand.u32 %s35, 1
        %s1115 = scalar_lea.sflag [#allocation4], %s1114
        %s1116 = sand.u32 %s257, 1
        %s1117 = scalar_lea.vmem [#allocation16], %s1116
        %p1118 = pneg %p270
        %p1119 = pneg %p267
        %s1120 = sand.u32 %s35, 1
        %s1121 = scalar_lea.sflag [#allocation4], %s1120
        %s1122 = sand.u32 %s283, 1
        %s1123 = smul.addr %s1122, 16
        %s1124 = scalar_lea.vmem [#allocation17], %s1123
        %p1125 = pneg %p296
        %p1126 = pneg %p293
        %s1127 = sand.u32 %s35, 1
        %s1128 = scalar_lea.sflag [#allocation4], %s1127
        %s1129 = sand.u32 %s309, 1
        %s1130 = scalar_lea.vmem [#allocation18], %s1129
        %p1131 = pneg %p322
        %p1132 = pneg %p319
        %s1133 = sand.u32 %s35, 1
        %s1134 = scalar_lea.sflag [#allocation4], %s1133
        %s1135 = sand.u32 %s335, 1
        %s1136 = scalar_lea.vmem [#allocation19], %s1135
        %p1137 = pneg %p348
        %p1138 = pneg %p345
        %s1139 = sand.u32 %s35, 1
        %s1140 = scalar_lea.sflag [#allocation4], %s1139
        %s1141 = sand.u32 %s361, 1
        %s1142 = scalar_lea.vmem [#allocation20], %s1141
        %p1143 = pneg %p374
        %p1144 = pneg %p371
        %s1145 = sand.u32 %s35, 1
        %s1146 = scalar_lea.sflag [#allocation4], %s1145
        %s1147 = sand.u32 %s387, 1
        %s1148 = scalar_lea.vmem [#allocation21], %s1147
        %p1149 = pneg %p400
        %p1150 = pneg %p397
        %s1151 = sand.u32 %s35, 1
        %s1152 = scalar_lea.sflag [#allocation4], %s1151
        %s1153 = sand.u32 %s413, 1
        %s1154 = scalar_lea.vmem [#allocation22], %s1153
        %p1155 = pneg %p426
        %p1156 = pneg %p423
        %s1157 = sand.u32 %s35, 1
        %s1158 = scalar_lea.sflag [#allocation4], %s1157
        %s1159 = sand.u32 %s439, 1
        %s1160 = smul.addr %s1159, 16
        %s1161 = scalar_lea.vmem [#allocation23], %s1160
        %p1162 = pneg %p452
        %p1163 = pneg %p449
        %s1164 = sand.u32 %s35, 1
        %s1165 = scalar_lea.sflag [#allocation4], %s1164
        %s1166 = sand.u32 %s465, 1
        %s1167 = scalar_lea.vmem [#allocation24], %s1166
        %p1168 = pneg %p478
        %p1169 = pneg %p475
        %s1170 = sand.u32 %s35, 1
        %s1171 = scalar_lea.sflag [#allocation4], %s1170
        %s1172 = sand.u32 %s491, 1
        %s1173 = smul.addr %s1172, 32
        %s1174 = scalar_lea.vmem [#allocation25], %s1173
        %p1175 = pneg %p504
        %p1176 = pneg %p501
        %s1177 = sand.u32 %s35, 1
        %s1178 = scalar_lea.sflag [#allocation4], %s1177
        %s1179 = sand.u32 %s517, 1
        %s1180 = scalar_lea.vmem [#allocation26], %s1179
        %p1181 = pneg %p530
        %p1182 = pneg %p527
        %p1183 = pneg %p551
        %p1184 = pneg %p548
        %p1186 = scmp.eq.s32.totalorder %s35, 0
        // Predicated region
        $region181: #{_forward_impl.3} parent=99 // pred_check
          %p1187 = pneg %p1186
        $region182: #{_forward_impl.3} parent=99 // pred_check_branch
          %1189 = sbr.rel (%p1187) target = $region184
        $region183: #{_forward_impl.3} parent=99 // pred_region
          %v1190 = vld [vmem:[#allocation3] sm:$0xff]
          %v1191 = vld [vmem:[#allocation3 + $0x8] sm:$0xff]
          %v1192 = vld [vmem:[#allocation3 + $0x10] sm:$0xff]
          %v1193 = vld [vmem:[#allocation3 + $0x18] sm:$0xff]
          %v1198 = vcombine.low %v1190, %v1192
          %v1199 = vcombine.high %v1190, %v1192
          %v1200 = vcombine.low %v1191, %v1193
          %v1201 = vcombine.high %v1191, %v1193
          %v1206 = vpack.c.bf16 %v1198, %v1198
          %v1207 = vpack.c.bf16 %v1199, %v1199
          %v1208 = vpack.c.bf16 %v1200, %v1200
          %v1209 = vpack.c.bf16 %v1201, %v1201
          %v1210 = vld [vmem:[#allocation6] sm:$0xf]
          %v1211 = vld [vmem:[#allocation6 + $0x4] sm:$0xf]
          %v1212 = vld [vmem:[#allocation6 + $0x8] sm:$0xf]
          %v1213 = vld [vmem:[#allocation6 + $0xc] sm:$0xf]
          %v1214 = vld [vmem:[#allocation6 + $0x10] sm:$0xf]
          %v1215 = vld [vmem:[#allocation6 + $0x14] sm:$0xf]
          %v1216 = vld [vmem:[#allocation6 + $0x18] sm:$0xf]
          %v1217 = vld [vmem:[#allocation6 + $0x1c] sm:$0xf]
          %v1218 = vld [vmem:[#allocation6 + $0x20] sm:$0xf]
          %v1219 = vld [vmem:[#allocation6 + $0x24] sm:$0xf]
          %v1220 = vld [vmem:[#allocation6 + $0x28] sm:$0xf]
          %v1221 = vld [vmem:[#allocation6 + $0x2c] sm:$0xf]
          %v1222 = vld [vmem:[#allocation6 + $0x30] sm:$0xf]
          %v1223 = vld [vmem:[#allocation6 + $0x34] sm:$0xf]
          %v1224 = vld [vmem:[#allocation6 + $0x38] sm:$0xf]
          %v1225 = vld [vmem:[#allocation6 + $0x3c] sm:$0xf]
          %v1226 = vld [vmem:[#allocation6 + $0x40] sm:$0xf]
          %v1227 = vld [vmem:[#allocation6 + $0x44] sm:$0xf]
          %v1228 = vld [vmem:[#allocation6 + $0x48] sm:$0xf]
          %v1229 = vld [vmem:[#allocation6 + $0x4c] sm:$0xf]
          %v1230 = vld [vmem:[#allocation6 + $0x50] sm:$0xf]
          %v1231 = vld [vmem:[#allocation6 + $0x54] sm:$0xf]
          %v1232 = vld [vmem:[#allocation6 + $0x58] sm:$0xf]
          %v1233 = vld [vmem:[#allocation6 + $0x5c] sm:$0xf]
          %v1234 = vld [vmem:[#allocation6 + $0x60] sm:$0xf]
          %v1235 = vld [vmem:[#allocation6 + $0x64] sm:$0xf]
          %v1236 = vld [vmem:[#allocation6 + $0x68] sm:$0xf]
          %v1237 = vld [vmem:[#allocation6 + $0x6c] sm:$0xf]
          %v1238 = vld [vmem:[#allocation6 + $0x70] sm:$0xf]
          %v1239 = vld [vmem:[#allocation6 + $0x74] sm:$0xf]
          %v1240 = vld [vmem:[#allocation6 + $0x78] sm:$0xf]
          %v1241 = vld [vmem:[#allocation6 + $0x7c] sm:$0xf]
          %v1242 = vld [vmem:[#allocation6 + $0x80] sm:$0xf]
          %v1243 = vld [vmem:[#allocation6 + $0x84] sm:$0xf]
          %v1244 = vld [vmem:[#allocation6 + $0x88] sm:$0xf]
          %v1245 = vld [vmem:[#allocation6 + $0x8c] sm:$0xf]
          %v1246 = vld [vmem:[#allocation6 + $0x90] sm:$0xf]
          %v1247 = vld [vmem:[#allocation6 + $0x94] sm:$0xf]
          %v1248 = vld [vmem:[#allocation6 + $0x98] sm:$0xf]
          %v1249 = vld [vmem:[#allocation6 + $0x9c] sm:$0xf]
          %v1250 = vld [vmem:[#allocation6 + $0xa0] sm:$0xf]
          %v1251 = vld [vmem:[#allocation6 + $0xa4] sm:$0xf]
          %v1252 = vld [vmem:[#allocation6 + $0xa8] sm:$0xf]
          %v1253 = vld [vmem:[#allocation6 + $0xac] sm:$0xf]
          %v1254 = vld [vmem:[#allocation6 + $0xb0] sm:$0xf]
          %v1255 = vld [vmem:[#allocation6 + $0xb4] sm:$0xf]
          %v1256 = vld [vmem:[#allocation6 + $0xb8] sm:$0xf]
          %v1257 = vld [vmem:[#allocation6 + $0xbc] sm:$0xf]
          %v1258 = vld [vmem:[#allocation6 + $0xc0] sm:$0xf]
          %v1259 = vld [vmem:[#allocation6 + $0xc4] sm:$0xf]
          %v1260 = vld [vmem:[#allocation6 + $0xc8] sm:$0xf]
          %v1261 = vld [vmem:[#allocation6 + $0xcc] sm:$0xf]
          %v1262 = vld [vmem:[#allocation6 + $0xd0] sm:$0xf]
          %v1263 = vld [vmem:[#allocation6 + $0xd4] sm:$0xf]
          %v1264 = vld [vmem:[#allocation6 + $0xd8] sm:$0xf]
          %v1265 = vld [vmem:[#allocation6 + $0xdc] sm:$0xf]
          %v1266 = vld [vmem:[#allocation6 + $0xe0] sm:$0xf]
          %v1267 = vld [vmem:[#allocation6 + $0xe4] sm:$0xf]
          %v1268 = vld [vmem:[#allocation6 + $0xe8] sm:$0xf]
          %v1269 = vld [vmem:[#allocation6 + $0xec] sm:$0xf]
          %v1270 = vld [vmem:[#allocation6 + $0xf0] sm:$0xf]
          %v1271 = vld [vmem:[#allocation6 + $0xf4] sm:$0xf]
          %v1272 = vld [vmem:[#allocation6 + $0xf8] sm:$0xf]
          %v1273 = vld [vmem:[#allocation6 + $0xfc] sm:$0xf]
          %v1274 = vld [vmem:[#allocation8] sm:$0x1]
          %v1276 = vlaneseq
          %v1277 = vshrl.u32 %v1276, 7
          %v1278 = vsub.s32 0, %v1277
          %v1279 = vrot.slane %v1274, %v1278
          %v1345 = vunpack.c.l.b16 %v1210
          %v1346 = vunpack.c.l.b16 %v1211
          %v1347 = vunpack.c.l.b16 %v1212
          %v1348 = vunpack.c.l.b16 %v1213
          %v1349 = vunpack.c.l.b16 %v1214
          %v1350 = vunpack.c.l.b16 %v1215
          %v1351 = vunpack.c.l.b16 %v1216
          %v1352 = vunpack.c.l.b16 %v1217
          %v1353 = vunpack.c.l.b16 %v1218
          %v1354 = vunpack.c.l.b16 %v1219
          %v1355 = vunpack.c.l.b16 %v1220
          %v1356 = vunpack.c.l.b16 %v1221
          %v1357 = vunpack.c.l.b16 %v1222
          %v1358 = vunpack.c.l.b16 %v1223
          %v1359 = vunpack.c.l.b16 %v1224
          %v1360 = vunpack.c.l.b16 %v1225
          %v1361 = vunpack.c.l.b16 %v1226
          %v1362 = vunpack.c.l.b16 %v1227
          %v1363 = vunpack.c.l.b16 %v1228
          %v1364 = vunpack.c.l.b16 %v1229
          %v1365 = vunpack.c.l.b16 %v1230
          %v1366 = vunpack.c.l.b16 %v1231
          %v1367 = vunpack.c.l.b16 %v1232
          %v1368 = vunpack.c.l.b16 %v1233
          %v1369 = vunpack.c.l.b16 %v1234
          %v1370 = vunpack.c.l.b16 %v1235
          %v1371 = vunpack.c.l.b16 %v1236
          %v1372 = vunpack.c.l.b16 %v1237
          %v1373 = vunpack.c.l.b16 %v1238
          %v1374 = vunpack.c.l.b16 %v1239
          %v1375 = vunpack.c.l.b16 %v1240
          %v1376 = vunpack.c.l.b16 %v1241
          %v1377 = vunpack.c.l.b16 %v1242
          %v1378 = vunpack.c.l.b16 %v1243
          %v1379 = vunpack.c.l.b16 %v1244
          %v1380 = vunpack.c.l.b16 %v1245
          %v1381 = vunpack.c.l.b16 %v1246
          %v1382 = vunpack.c.l.b16 %v1247
          %v1383 = vunpack.c.l.b16 %v1248
          %v1384 = vunpack.c.l.b16 %v1249
          %v1385 = vunpack.c.l.b16 %v1250
          %v1386 = vunpack.c.l.b16 %v1251
          %v1387 = vunpack.c.l.b16 %v1252
          %v1388 = vunpack.c.l.b16 %v1253
          %v1389 = vunpack.c.l.b16 %v1254
          %v1390 = vunpack.c.l.b16 %v1255
          %v1391 = vunpack.c.l.b16 %v1256
          %v1392 = vunpack.c.l.b16 %v1257
          %v1393 = vunpack.c.l.b16 %v1258
          %v1394 = vunpack.c.l.b16 %v1259
          %v1395 = vunpack.c.l.b16 %v1260
          %v1396 = vunpack.c.l.b16 %v1261
          %v1397 = vunpack.c.l.b16 %v1262
          %v1398 = vunpack.c.l.b16 %v1263
          %v1399 = vunpack.c.l.b16 %v1264
          %v1400 = vunpack.c.l.b16 %v1265
          %v1401 = vunpack.c.l.b16 %v1266
          %v1402 = vunpack.c.l.b16 %v1267
          %v1403 = vunpack.c.l.b16 %v1268
          %v1404 = vunpack.c.l.b16 %v1269
          %v1405 = vunpack.c.l.b16 %v1270
          %v1406 = vunpack.c.l.b16 %v1271
          %v1407 = vunpack.c.l.b16 %v1272
          %v1408 = vunpack.c.l.b16 %v1273
          %v1409 = vpack.c.b16 %v1346, %v1345
          %v1410 = vpack.c.b16 %v1348, %v1347
          %v1411 = vpack.c.b16 %v1350, %v1349
          %v1412 = vpack.c.b16 %v1352, %v1351
          %v1413 = vpack.c.b16 %v1354, %v1353
          %v1414 = vpack.c.b16 %v1356, %v1355
          %v1415 = vpack.c.b16 %v1358, %v1357
          %v1416 = vpack.c.b16 %v1360, %v1359
          %v1417 = vpack.c.b16 %v1362, %v1361
          %v1418 = vpack.c.b16 %v1364, %v1363
          %v1419 = vpack.c.b16 %v1366, %v1365
          %v1420 = vpack.c.b16 %v1368, %v1367
          %v1421 = vpack.c.b16 %v1370, %v1369
          %v1422 = vpack.c.b16 %v1372, %v1371
          %v1423 = vpack.c.b16 %v1374, %v1373
          %v1424 = vpack.c.b16 %v1376, %v1375
          %v1425 = vpack.c.b16 %v1378, %v1377
          %v1426 = vpack.c.b16 %v1380, %v1379
          %v1427 = vpack.c.b16 %v1382, %v1381
          %v1428 = vpack.c.b16 %v1384, %v1383
          %v1429 = vpack.c.b16 %v1386, %v1385
          %v1430 = vpack.c.b16 %v1388, %v1387
          %v1431 = vpack.c.b16 %v1390, %v1389
          %v1432 = vpack.c.b16 %v1392, %v1391
          %v1433 = vpack.c.b16 %v1394, %v1393
          %v1434 = vpack.c.b16 %v1396, %v1395
          %v1435 = vpack.c.b16 %v1398, %v1397
          %v1436 = vpack.c.b16 %v1400, %v1399
          %v1437 = vpack.c.b16 %v1402, %v1401
          %v1438 = vpack.c.b16 %v1404, %v1403
          %v1439 = vpack.c.b16 %v1406, %v1405
          %v1440 = vpack.c.b16 %v1408, %v1407
          %1473 = vmatprep.subr.bf16.mxu0 0
          %1474 = vmatpush1.bf16.msra.mxu0 %v1409
          %1475 = vmatprep.subr.bf16.mxu0 0
          %1476 = vmatpush1.bf16.msra.mxu0 %v1410
          %1477 = vmatprep.subr.bf16.mxu0 0
          %1478 = vmatpush1.bf16.msra.mxu0 %v1411
          %1479 = vmatprep.subr.bf16.mxu0 0
          %1480 = vmatpush1.bf16.msra.mxu0 %v1412
          %1481 = vmatprep.subr.bf16.mxu0 0
          %1482 = vmatpush1.bf16.msra.mxu0 %v1413
          %1483 = vmatprep.subr.bf16.mxu0 0
          %1484 = vmatpush1.bf16.msra.mxu0 %v1414
          %1485 = vmatprep.subr.bf16.mxu0 0
          %1486 = vmatpush1.bf16.msra.mxu0 %v1415
          %1487 = vmatprep.subr.bf16.mxu0 0
          %1488 = vmatpush1.bf16.msra.mxu0 %v1416
          %1489 = vmatprep.subr.bf16.mxu0 0
          %1490 = vmatpush1.bf16.msra.mxu0 %v1417
          %1491 = vmatprep.subr.bf16.mxu0 0
          %1492 = vmatpush1.bf16.msra.mxu0 %v1418
          %1493 = vmatprep.subr.bf16.mxu0 0
          %1494 = vmatpush1.bf16.msra.mxu0 %v1419
          %1495 = vmatprep.subr.bf16.mxu0 0
          %1496 = vmatpush1.bf16.msra.mxu0 %v1420
          %1497 = vmatprep.subr.bf16.mxu0 0
          %1498 = vmatpush1.bf16.msra.mxu0 %v1421
          %1499 = vmatprep.subr.bf16.mxu0 0
          %1500 = vmatpush1.bf16.msra.mxu0 %v1422
          %1501 = vmatprep.subr.bf16.mxu0 0
          %1502 = vmatpush1.bf16.msra.mxu0 %v1423
          %1503 = vmatprep.subr.bf16.mxu0 0
          %1504 = vmatpush1.bf16.msra.mxu0 %v1424
          %1505 = vmatprep.mubr.bf16.mxu0 %v1207
          %1506 = vmatmul.mubr.bf16.gmra.mrb[0].mxu0 %v1206
          %v1507 = vpop.f32.mrb[0].mxu0
          %v1508 = vadd.f32 %v1279, %v1507
          %v1509 = vpop.f32.mrb[0].mxu0
          %v1510 = vpop.f32.mrb[0].mxu0
          %v1511 = vpop.f32.mrb[0].mxu0
          %1512 = vdwg.mxu0
          %1513 = vmatprep.subr.bf16.mxu0 0
          %1514 = vmatpush1.bf16.msra.mxu0 %v1425
          %1515 = vmatprep.subr.bf16.mxu0 0
          %1516 = vmatpush1.bf16.msra.mxu0 %v1426
          %1517 = vmatprep.subr.bf16.mxu0 0
          %1518 = vmatpush1.bf16.msra.mxu0 %v1427
          %1519 = vmatprep.subr.bf16.mxu0 0
          %1520 = vmatpush1.bf16.msra.mxu0 %v1428
          %1521 = vmatprep.subr.bf16.mxu0 0
          %1522 = vmatpush1.bf16.msra.mxu0 %v1429
          %1523 = vmatprep.subr.bf16.mxu0 0
          %1524 = vmatpush1.bf16.msra.mxu0 %v1430
          %1525 = vmatprep.subr.bf16.mxu0 0
          %1526 = vmatpush1.bf16.msra.mxu0 %v1431
          %1527 = vmatprep.subr.bf16.mxu0 0
          %1528 = vmatpush1.bf16.msra.mxu0 %v1432
          %1529 = vmatprep.subr.bf16.mxu0 0
          %1530 = vmatpush1.bf16.msra.mxu0 %v1433
          %1531 = vmatprep.subr.bf16.mxu0 0
          %1532 = vmatpush1.bf16.msra.mxu0 %v1434
          %1533 = vmatprep.subr.bf16.mxu0 0
          %1534 = vmatpush1.bf16.msra.mxu0 %v1435
          %1535 = vmatprep.subr.bf16.mxu0 0
          %1536 = vmatpush1.bf16.msra.mxu0 %v1436
          %1537 = vmatprep.subr.bf16.mxu0 0
          %1538 = vmatpush1.bf16.msra.mxu0 %v1437
          %1539 = vmatprep.subr.bf16.mxu0 0
          %1540 = vmatpush1.bf16.msra.mxu0 %v1438
          %1541 = vmatprep.subr.bf16.mxu0 0
          %1542 = vmatpush1.bf16.msra.mxu0 %v1439
          %1543 = vmatprep.subr.bf16.mxu0 0
          %1544 = vmatpush1.bf16.msra.mxu0 %v1440
          %1545 = vmatprep.mubr.bf16.mxu0 %v1209
          %1546 = vmatmul.mubr.bf16.gmra.mrb[0].mxu0 %v1208
          %v1547 = vpop.f32.mrb[0].mxu0
          %v1548 = vadd.f32 %v1508, %v1547
          %v1549 = vpop.f32.mrb[0].mxu0
          %v1550 = vpop.f32.mrb[0].mxu0
          %v1551 = vpop.f32.mrb[0].mxu0
          %1552 = vdwg.mxu0
          %v1554 = vcombine.high %v1548, %v1548
          %v1556 = vld [vmem:[#allocation9] sm:$0xf]
          %v1557 = vld [vmem:[#allocation9 + $0x4] sm:$0xf]
          %v1558 = vadd.f32 %v1548, %v1556
          %v1559 = vadd.f32 %v1554, %v1557
          %vm1560 = vcmask 257024
          %1561 = vst.msk [vmem:[#allocation2] sm:$0xf] %vm1560, %v1558
          %1562 = vst.msk [vmem:[#allocation2 + $0x4] sm:$0xf] %vm1560, %v1559
        $region184: #{_forward_impl.3} parent=99 // pred_fallthru
          _
        %v1563 = vld [vmem:[#allocation2] sm:$0xf]
        %v1564 = vld [vmem:[#allocation2 + $0x4] sm:$0xf]
        %v1565 = vld [vmem:[%s1010] sm:$0x1]
        %v1566 = vld [vmem:[%s1018] sm:$0x1]
        %vm1567 = vcmask 257024
        %v1568 = vsel %vm1567, %v1563, 0.0
        %1569 = vadd.xlane.f32.xlu0 %v1568
        %v1570 = vpop.xlane.xlu0 %1569
        %v1571 = vsel %vm1567, %v1564, 0.0
        %1572 = vadd.xlane.f32.xlu0 %v1571
        %v1573 = vpop.xlane.xlu0 %1572
        %v1574 = vrcp.pop 32.0
        %v1575 = vmul.f32 %v1570, %v1574
        %v1576 = vmul.f32 %v1573, %v1574
        %v1577 = vsub.f32 %v1563, %v1575
        %v1578 = vsub.f32 %v1564, %v1576
        %v1579 = vmul.f32 %v1577, %v1577
        %v1580 = vmul.f32 %v1578, %v1578
        %v1581 = vsel %vm1567, %v1579, 0.0
        %1582 = vadd.xlane.f32.xlu0 %v1581
        %v1583 = vpop.xlane.xlu0 %1582
        %v1584 = vsel %vm1567, %v1580, 0.0
        %1585 = vadd.xlane.f32.xlu0 %v1584
        %v1586 = vpop.xlane.xlu0 %1585
        %v1587 = vmul.f32 %v1583, %v1574
        %v1588 = vmul.f32 %v1586, %v1574
        %v1589 = vadd.f32 %v1587, 1e-12
        %v1590 = vadd.f32 %v1588, 1e-12
        %v1591 = vrsqrt.pop %v1589
        %v1592 = vrsqrt.pop %v1590
        %v1593 = vmul.f32 %v1577, %v1591
        %v1594 = vmul.f32 %v1578, %v1592
        %v1596 = vlaneseq
        %v1597 = vshrl.u32 %v1596, 7
        %v1598 = vsub.s32 0, %v1597
        %v1599 = vrot.slane %v1565, %v1598
        %v1601 = vmul.f32 %v1593, %v1599
        %v1602 = vmul.f32 %v1594, %v1599
        %v1604 = vlaneseq
        %v1605 = vshrl.u32 %v1604, 7
        %v1606 = vsub.s32 0, %v1605
        %v1607 = vrot.slane %v1566, %v1606
        %v1609 = vadd.f32 %v1601, %v1607
        %v1610 = vadd.f32 %v1602, %v1607
        %v1613 = vcombine.low %v1609, %v1610
        %v1615 = vpack.c.bf16 %v1613, %v1613
        %v1616 = vld [vmem:[%s943] sm:$0xf]
        %v1617 = vld [vmem:[%s943 + $0x4] sm:$0xf]
        %v1618 = vld [vmem:[%s943 + $0x8] sm:$0xf]
        %v1619 = vld [vmem:[%s943 + $0xc] sm:$0xf]
        %v1620 = vld [vmem:[%s951] sm:$0x1]
        %v1622 = vlaneseq
        %v1623 = vshrl.u32 %v1622, 7
        %v1624 = vsub.s32 0, %v1623
        %v1625 = vrot.slane %v1620, %v1624
        %v1631 = vunpack.c.l.b16 %v1616
        %v1632 = vunpack.c.l.b16 %v1617
        %v1633 = vunpack.c.l.b16 %v1618
        %v1634 = vunpack.c.l.b16 %v1619
        %v1635 = vpack.c.b16 %v1632, %v1631
        %v1636 = vpack.c.b16 %v1634, %v1633
        %vm1639 = vcmask 261120
        %v1641 = vsel %vm1639, %v1615, 0
        %1643 = vmatprep.subr.bf16.mxu0 0
        %1644 = vmatpush1.bf16.msra.mxu0 %v1635
        %1645 = vmatprep.subr.bf16.mxu0 0
        %1646 = vmatpush1.bf16.msra.mxu0 %v1636
        %1647 = vmatprep.subr.bf16.mxu0 0
        %1648 = vmatpush1.bf16.msra.mxu0 0
        %1649 = vmatprep.subr.bf16.mxu0 0
        %1650 = vmatpush1.bf16.msra.mxu0 0
        %1651 = vmatprep.subr.bf16.mxu0 0
        %1652 = vmatpush1.bf16.msra.mxu0 0
        %1653 = vmatprep.subr.bf16.mxu0 0
        %1654 = vmatpush1.bf16.msra.mxu0 0
        %1655 = vmatprep.subr.bf16.mxu0 0
        %1656 = vmatpush1.bf16.msra.mxu0 0
        %1657 = vmatprep.subr.bf16.mxu0 0
        %1658 = vmatpush1.bf16.msra.mxu0 0
        %1659 = vmatprep.subr.bf16.mxu0 0
        %1660 = vmatpush1.bf16.msra.mxu0 0
        %1661 = vmatprep.subr.bf16.mxu0 0
        %1662 = vmatpush1.bf16.msra.mxu0 0
        %1663 = vmatprep.subr.bf16.mxu0 0
        %1664 = vmatpush1.bf16.msra.mxu0 0
        %1665 = vmatprep.subr.bf16.mxu0 0
        %1666 = vmatpush1.bf16.msra.mxu0 0
        %1667 = vmatprep.subr.bf16.mxu0 0
        %1668 = vmatpush1.bf16.msra.mxu0 0
        %1669 = vmatprep.subr.bf16.mxu0 0
        %1670 = vmatpush1.bf16.msra.mxu0 0
        %1671 = vmatprep.subr.bf16.mxu0 0
        %1672 = vmatpush1.bf16.msra.mxu0 0
        %1673 = vmatprep.subr.bf16.mxu0 0
        %1674 = vmatpush1.bf16.msra.mxu0 0
        %1675 = vmatprep.mubr.bf16.mxu0 0
        %1676 = vmatmul.mubr.bf16.gmra.mrb[0].mxu0 %v1641
        %v1677 = vpop.f32.mrb[0].mxu0
        %v1678 = vadd.f32 %v1625, %v1677
        %v1679 = vpop.f32.mrb[0].mxu0
        %v1680 = vpop.f32.mrb[0].mxu0
        %v1681 = vpop.f32.mrb[0].mxu0
        %1682 = vdwg.mxu0
        %v1684 = vcombine.high %v1678, %v1678
        %v1686 = vld [vmem:[%s960] sm:$0xf]
        %v1687 = vld [vmem:[%s960 + $0x4] sm:$0xf]
        %v1688 = vld [vmem:[%s960 + $0x8] sm:$0xf]
        %v1689 = vld [vmem:[%s960 + $0xc] sm:$0xf]
        %v1690 = vld [vmem:[%s968] sm:$0x1]
        %v1692 = vlaneseq
        %v1693 = vshrl.u32 %v1692, 7
        %v1694 = vsub.s32 0, %v1693
        %v1695 = vrot.slane %v1690, %v1694
        %v1701 = vunpack.c.l.b16 %v1686
        %v1702 = vunpack.c.l.b16 %v1687
        %v1703 = vunpack.c.l.b16 %v1688
        %v1704 = vunpack.c.l.b16 %v1689
        %v1705 = vpack.c.b16 %v1702, %v1701
        %v1706 = vpack.c.b16 %v1704, %v1703
        %1709 = vmatprep.subr.bf16.mxu0 0
        %1710 = vmatpush1.bf16.msra.mxu0 %v1705
        %1711 = vmatprep.subr.bf16.mxu0 0
        %1712 = vmatpush1.bf16.msra.mxu0 %v1706
        %1713 = vmatprep.subr.bf16.mxu0 0
        %1714 = vmatpush1.bf16.msra.mxu0 0
        %1715 = vmatprep.subr.bf16.mxu0 0
        %1716 = vmatpush1.bf16.msra.mxu0 0
        %1717 = vmatprep.subr.bf16.mxu0 0
        %1718 = vmatpush1.bf16.msra.mxu0 0
        %1719 = vmatprep.subr.bf16.mxu0 0
        %1720 = vmatpush1.bf16.msra.mxu0 0
        %1721 = vmatprep.subr.bf16.mxu0 0
        %1722 = vmatpush1.bf16.msra.mxu0 0
        %1723 = vmatprep.subr.bf16.mxu0 0
        %1724 = vmatpush1.bf16.msra.mxu0 0
        %1725 = vmatprep.subr.bf16.mxu0 0
        %1726 = vmatpush1.bf16.msra.mxu0 0
        %1727 = vmatprep.subr.bf16.mxu0 0
        %1728 = vmatpush1.bf16.msra.mxu0 0
        %1729 = vmatprep.subr.bf16.mxu0 0
        %1730 = vmatpush1.bf16.msra.mxu0 0
        %1731 = vmatprep.subr.bf16.mxu0 0
        %1732 = vmatpush1.bf16.msra.mxu0 0
        %1733 = vmatprep.subr.bf16.mxu0 0
        %1734 = vmatpush1.bf16.msra.mxu0 0
        %1735 = vmatprep.subr.bf16.mxu0 0
        %1736 = vmatpush1.bf16.msra.mxu0 0
        %1737 = vmatprep.subr.bf16.mxu0 0
        %1738 = vmatpush1.bf16.msra.mxu0 0
        %1739 = vmatprep.subr.bf16.mxu0 0
        %1740 = vmatpush1.bf16.msra.mxu0 0
        %1741 = vmatprep.mubr.bf16.mxu0 0
        %1742 = vmatmul.mubr.bf16.gmra.mrb[0].mxu0 %v1641
        %v1743 = vpop.f32.mrb[0].mxu0
        %v1744 = vadd.f32 %v1695, %v1743
        %v1745 = vpop.f32.mrb[0].mxu0
        %v1746 = vpop.f32.mrb[0].mxu0
        %v1747 = vpop.f32.mrb[0].mxu0
        %1748 = vdwg.mxu0
        %v1750 = vcombine.high %v1744, %v1744
        %v1752 = vld [vmem:[%s977] sm:$0xf]
        %v1753 = vld [vmem:[%s977 + $0x4] sm:$0xf]
        %v1754 = vld [vmem:[%s977 + $0x8] sm:$0xf]
        %v1755 = vld [vmem:[%s977 + $0xc] sm:$0xf]
        %v1756 = vld [vmem:[%s985] sm:$0x1]
        %v1758 = vlaneseq
        %v1759 = vshrl.u32 %v1758, 7
        %v1760 = vsub.s32 0, %v1759
        %v1761 = vrot.slane %v1756, %v1760
        %v1767 = vunpack.c.l.b16 %v1752
        %v1768 = vunpack.c.l.b16 %v1753
        %v1769 = vunpack.c.l.b16 %v1754
        %v1770 = vunpack.c.l.b16 %v1755
        %v1771 = vpack.c.b16 %v1768, %v1767
        %v1772 = vpack.c.b16 %v1770, %v1769
        %1775 = vmatprep.subr.bf16.mxu0 0
        %1776 = vmatpush1.bf16.msra.mxu0 %v1771
        %1777 = vmatprep.subr.bf16.mxu0 0
        %1778 = vmatpush1.bf16.msra.mxu0 %v1772
        %1779 = vmatprep.subr.bf16.mxu0 0
        %1780 = vmatpush1.bf16.msra.mxu0 0
        %1781 = vmatprep.subr.bf16.mxu0 0
        %1782 = vmatpush1.bf16.msra.mxu0 0
        %1783 = vmatprep.subr.bf16.mxu0 0
        %1784 = vmatpush1.bf16.msra.mxu0 0
        %1785 = vmatprep.subr.bf16.mxu0 0
        %1786 = vmatpush1.bf16.msra.mxu0 0
        %1787 = vmatprep.subr.bf16.mxu0 0
        %1788 = vmatpush1.bf16.msra.mxu0 0
        %1789 = vmatprep.subr.bf16.mxu0 0
        %1790 = vmatpush1.bf16.msra.mxu0 0
        %1791 = vmatprep.subr.bf16.mxu0 0
        %1792 = vmatpush1.bf16.msra.mxu0 0
        %1793 = vmatprep.subr.bf16.mxu0 0
        %1794 = vmatpush1.bf16.msra.mxu0 0
        %1795 = vmatprep.subr.bf16.mxu0 0
        %1796 = vmatpush1.bf16.msra.mxu0 0
        %1797 = vmatprep.subr.bf16.mxu0 0
        %1798 = vmatpush1.bf16.msra.mxu0 0
        %1799 = vmatprep.subr.bf16.mxu0 0
        %1800 = vmatpush1.bf16.msra.mxu0 0
        %1801 = vmatprep.subr.bf16.mxu0 0
        %1802 = vmatpush1.bf16.msra.mxu0 0
        %1803 = vmatprep.subr.bf16.mxu0 0
        %1804 = vmatpush1.bf16.msra.mxu0 0
        %1805 = vmatprep.subr.bf16.mxu0 0
        %1806 = vmatpush1.bf16.msra.mxu0 0
        %1807 = vmatprep.mubr.bf16.mxu0 0
        %1808 = vmatmul.mubr.bf16.gmra.mrb[0].mxu0 %v1641
        %v1809 = vpop.f32.mrb[0].mxu0
        %v1810 = vadd.f32 %v1761, %v1809
        %v1811 = vpop.f32.mrb[0].mxu0
        %v1812 = vpop.f32.mrb[0].mxu0
        %v1813 = vpop.f32.mrb[0].mxu0
        %1814 = vdwg.mxu0
        %v1816 = vcombine.high %v1810, %v1810
        %v1818 = vpack.c.bf16 %v1678, %v1678
        %v1819 = vpack.c.bf16 %v1684, %v1684
        %v1820 = vpack.c.bf16 %v1744, %v1744
        %v1821 = vpack.c.bf16 %v1750, %v1750
        %v1822 = vpack.c.bf16 %v1810, %v1810
        %v1823 = vpack.c.bf16 %v1816, %v1816
        %vm1824 = vcmask 130048
        %v1826 = vsel %vm1824, %v1818, 0
        %v1829 = vsel %vm1824, %v1820, 0
        %1831 = vmatprep.subr.bf16.mxu0 0
        %1832 = vmatpush1.bf16.xpose.msra.mxu0 %v1829
        %1833 = vmatprep.subr.bf16.mxu0 0
        %1834 = vmatpush1.bf16.xpose.msra.mxu0 0
        %1835 = vmatprep.subr.bf16.mxu0 0
        %1836 = vmatpush1.bf16.xpose.msra.mxu0 0
        %1837 = vmatprep.subr.bf16.mxu0 0
        %1838 = vmatpush1.bf16.xpose.msra.mxu0 0
        %1839 = vmatprep.subr.bf16.mxu0 0
        %1840 = vmatpush1.bf16.xpose.msra.mxu0 0
        %1841 = vmatprep.subr.bf16.mxu0 0
        %1842 = vmatpush1.bf16.xpose.msra.mxu0 0
        %1843 = vmatprep.subr.bf16.mxu0 0
        %1844 = vmatpush1.bf16.xpose.msra.mxu0 0
        %1845 = vmatprep.subr.bf16.mxu0 0
        %1846 = vmatpush1.bf16.xpose.msra.mxu0 0
        %1847 = vmatprep.subr.bf16.mxu0 0
        %1848 = vmatpush1.bf16.xpose.msra.mxu0 0
        %1849 = vmatprep.subr.bf16.mxu0 0
        %1850 = vmatpush1.bf16.xpose.msra.mxu0 0
        %1851 = vmatprep.subr.bf16.mxu0 0
        %1852 = vmatpush1.bf16.xpose.msra.mxu0 0
        %1853 = vmatprep.subr.bf16.mxu0 0
        %1854 = vmatpush1.bf16.xpose.msra.mxu0 0
        %1855 = vmatprep.subr.bf16.mxu0 0
        %1856 = vmatpush1.bf16.xpose.msra.mxu0 0
        %1857 = vmatprep.subr.bf16.mxu0 0
        %1858 = vmatpush1.bf16.xpose.msra.mxu0 0
        %1859 = vmatprep.subr.bf16.mxu0 0
        %1860 = vmatpush1.bf16.xpose.msra.mxu0 0
        %1861 = vmatprep.subr.bf16.mxu0 0
        %1862 = vmatpush1.bf16.xpose.msra.mxu0 0
        %1863 = vmatprep.mubr.bf16.mxu0 0
        %1864 = vmatmul.mubr.bf16.gmra.mrb[0].mxu0 %v1826
        %v1865 = vpop.f32.mrb[0].mxu0
        %v1866 = vadd.f32 0.0, %v1865
        %v1867 = vpop.f32.mrb[0].mxu0
        %v1868 = vpop.f32.mrb[0].mxu0
        %v1869 = vpop.f32.mrb[0].mxu0
        %1870 = vdwg.mxu0
        %v1872 = vsel %vm1824, %v1819, 0
        %v1875 = vsel %vm1824, %v1821, 0
        %1877 = vmatprep.subr.bf16.mxu0 0
        %1878 = vmatpush1.bf16.xpose.msra.mxu0 %v1875
        %1879 = vmatprep.subr.bf16.mxu0 0
        %1880 = vmatpush1.bf16.xpose.msra.mxu0 0
        %1881 = vmatprep.subr.bf16.mxu0 0
        %1882 = vmatpush1.bf16.xpose.msra.mxu0 0
        %1883 = vmatprep.subr.bf16.mxu0 0
        %1884 = vmatpush1.bf16.xpose.msra.mxu0 0
        %1885 = vmatprep.subr.bf16.mxu0 0
        %1886 = vmatpush1.bf16.xpose.msra.mxu0 0
        %1887 = vmatprep.subr.bf16.mxu0 0
        %1888 = vmatpush1.bf16.xpose.msra.mxu0 0
        %1889 = vmatprep.subr.bf16.mxu0 0
        %1890 = vmatpush1.bf16.xpose.msra.mxu0 0
        %1891 = vmatprep.subr.bf16.mxu0 0
        %1892 = vmatpush1.bf16.xpose.msra.mxu0 0
        %1893 = vmatprep.subr.bf16.mxu0 0
        %1894 = vmatpush1.bf16.xpose.msra.mxu0 0
        %1895 = vmatprep.subr.bf16.mxu0 0
        %1896 = vmatpush1.bf16.xpose.msra.mxu0 0
        %1897 = vmatprep.subr.bf16.mxu0 0
        %1898 = vmatpush1.bf16.xpose.msra.mxu0 0
        %1899 = vmatprep.subr.bf16.mxu0 0
        %1900 = vmatpush1.bf16.xpose.msra.mxu0 0
        %1901 = vmatprep.subr.bf16.mxu0 0
        %1902 = vmatpush1.bf16.xpose.msra.mxu0 0
        %1903 = vmatprep.subr.bf16.mxu0 0
        %1904 = vmatpush1.bf16.xpose.msra.mxu0 0
        %1905 = vmatprep.subr.bf16.mxu0 0
        %1906 = vmatpush1.bf16.xpose.msra.mxu0 0
        %1907 = vmatprep.subr.bf16.mxu0 0
        %1908 = vmatpush1.bf16.xpose.msra.mxu0 0
        %1909 = vmatprep.mubr.bf16.mxu0 0
        %1910 = vmatmul.mubr.bf16.gmra.mrb[0].mxu0 %v1872
        %v1911 = vpop.f32.mrb[0].mxu0
        %v1912 = vadd.f32 0.0, %v1911
        %v1913 = vpop.f32.mrb[0].mxu0
        %v1914 = vpop.f32.mrb[0].mxu0
        %v1915 = vpop.f32.mrb[0].mxu0
        %1916 = vdwg.mxu0
        %v1917 = vmul.f32 %v1866, 0.25
        %v1918 = vmul.f32 %v1912, 0.25
        %vm1919 = vcmask 27648
        %v1920 = vsel %vm1919, %v1917, -inf
        %1921 = vmax.xlane.f32.xlu0 %v1920
        %v1922 = vpop.xlane.xlu0 %1921
        %v1923 = vsel %vm1919, %v1918, -inf
        %1924 = vmax.xlane.f32.xlu0 %v1923
        %v1925 = vpop.xlane.xlu0 %1924
        %v1926 = vsub.f32 %v1917, %v1922
        %v1927 = vsub.f32 %v1918, %v1925
        %v1928 = vmul.f32 %v1926, 1.442695
        %v1929 = vpow.pop %v1928
        %v1930 = vmul.f32 %v1927, 1.442695
        %v1931 = vpow.pop %v1930
        %v1932 = vsel %vm1919, %v1929, 0.0
        %1933 = vadd.xlane.f32.xlu0 %v1932
        %v1934 = vpop.xlane.xlu0 %1933
        %v1935 = vsel %vm1919, %v1931, 0.0
        %1936 = vadd.xlane.f32.xlu0 %v1935
        %v1937 = vpop.xlane.xlu0 %1936
        %v1938 = vrcp.pop %v1934
        %v1939 = vrcp.pop %v1937
        %v1940 = vmul.f32 %v1929, %v1938
        %v1941 = vmul.f32 %v1931, %v1939
        %v1942 = vpack.c.bf16 %v1940, %v1940
        %v1943 = vpack.c.bf16 %v1941, %v1941
        %vm1944 = vcmask 31744
        %v1946 = vsel %vm1944, %v1942, 0
        %vm1948 = vcmask 1041408
        %v1950 = vsel %vm1948, %v1822, 0
        %1952 = vmatprep.subr.bf16.mxu0 0
        %1953 = vmatpush1.bf16.msra.mxu0 %v1950
        %1954 = vmatprep.subr.bf16.mxu0 0
        %1955 = vmatpush1.bf16.msra.mxu0 0
        %1956 = vmatprep.subr.bf16.mxu0 0
        %1957 = vmatpush1.bf16.msra.mxu0 0
        %1958 = vmatprep.subr.bf16.mxu0 0
        %1959 = vmatpush1.bf16.msra.mxu0 0
        %1960 = vmatprep.subr.bf16.mxu0 0
        %1961 = vmatpush1.bf16.msra.mxu0 0
        %1962 = vmatprep.subr.bf16.mxu0 0
        %1963 = vmatpush1.bf16.msra.mxu0 0
        %1964 = vmatprep.subr.bf16.mxu0 0
        %1965 = vmatpush1.bf16.msra.mxu0 0
        %1966 = vmatprep.subr.bf16.mxu0 0
        %1967 = vmatpush1.bf16.msra.mxu0 0
        %1968 = vmatprep.subr.bf16.mxu0 0
        %1969 = vmatpush1.bf16.msra.mxu0 0
        %1970 = vmatprep.subr.bf16.mxu0 0
        %1971 = vmatpush1.bf16.msra.mxu0 0
        %1972 = vmatprep.subr.bf16.mxu0 0
        %1973 = vmatpush1.bf16.msra.mxu0 0
        %1974 = vmatprep.subr.bf16.mxu0 0
        %1975 = vmatpush1.bf16.msra.mxu0 0
        %1976 = vmatprep.subr.bf16.mxu0 0
        %1977 = vmatpush1.bf16.msra.mxu0 0
        %1978 = vmatprep.subr.bf16.mxu0 0
        %1979 = vmatpush1.bf16.msra.mxu0 0
        %1980 = vmatprep.subr.bf16.mxu0 0
        %1981 = vmatpush1.bf16.msra.mxu0 0
        %1982 = vmatprep.subr.bf16.mxu0 0
        %1983 = vmatpush1.bf16.msra.mxu0 0
        %1984 = vmatprep.mubr.bf16.mxu0 0
        %1985 = vmatmul.mubr.bf16.gmra.mrb[0].mxu0 %v1946
        %v1986 = vpop.f32.mrb[0].mxu0
        %v1987 = vadd.f32 0.0, %v1986
        %v1988 = vpop.f32.mrb[0].mxu0
        %v1989 = vpop.f32.mrb[0].mxu0
        %v1990 = vpop.f32.mrb[0].mxu0
        %1991 = vdwg.mxu0
        %v1993 = vsel %vm1944, %v1943, 0
        %v1996 = vsel %vm1948, %v1823, 0
        %1998 = vmatprep.subr.bf16.mxu0 0
        %1999 = vmatpush1.bf16.msra.mxu0 %v1996
        %2000 = vmatprep.subr.bf16.mxu0 0
        %2001 = vmatpush1.bf16.msra.mxu0 0
        %2002 = vmatprep.subr.bf16.mxu0 0
        %2003 = vmatpush1.bf16.msra.mxu0 0
        %2004 = vmatprep.subr.bf16.mxu0 0
        %2005 = vmatpush1.bf16.msra.mxu0 0
        %2006 = vmatprep.subr.bf16.mxu0 0
        %2007 = vmatpush1.bf16.msra.mxu0 0
        %2008 = vmatprep.subr.bf16.mxu0 0
        %2009 = vmatpush1.bf16.msra.mxu0 0
        %2010 = vmatprep.subr.bf16.mxu0 0
        %2011 = vmatpush1.bf16.msra.mxu0 0
        %2012 = vmatprep.subr.bf16.mxu0 0
        %2013 = vmatpush1.bf16.msra.mxu0 0
        %2014 = vmatprep.subr.bf16.mxu0 0
        %2015 = vmatpush1.bf16.msra.mxu0 0
        %2016 = vmatprep.subr.bf16.mxu0 0
        %2017 = vmatpush1.bf16.msra.mxu0 0
        %2018 = vmatprep.subr.bf16.mxu0 0
        %2019 = vmatpush1.bf16.msra.mxu0 0
        %2020 = vmatprep.subr.bf16.mxu0 0
        %2021 = vmatpush1.bf16.msra.mxu0 0
        %2022 = vmatprep.subr.bf16.mxu0 0
        %2023 = vmatpush1.bf16.msra.mxu0 0
        %2024 = vmatprep.subr.bf16.mxu0 0
        %2025 = vmatpush1.bf16.msra.mxu0 0
        %2026 = vmatprep.subr.bf16.mxu0 0
        %2027 = vmatpush1.bf16.msra.mxu0 0
        %2028 = vmatprep.subr.bf16.mxu0 0
        %2029 = vmatpush1.bf16.msra.mxu0 0
        %2030 = vmatprep.mubr.bf16.mxu0 0
        %2031 = vmatmul.mubr.bf16.gmra.mrb[0].mxu0 %v1993
        %v2032 = vpop.f32.mrb[0].mxu0
        %v2033 = vadd.f32 0.0, %v2032
        %v2034 = vpop.f32.mrb[0].mxu0
        %v2035 = vpop.f32.mrb[0].mxu0
        %v2036 = vpop.f32.mrb[0].mxu0
        %2037 = vdwg.mxu0
        %2039 = vrot.lane.b32.xlu0 %v1818, 112
        %v2040 = vpop.permute.xlu0 %2039
        %2042 = vrot.lane.b32.xlu0 %v1820, 112
        %v2043 = vpop.permute.xlu0 %2042
        %v2045 = vsel %vm1824, %v2040, 0
        %v2048 = vsel %vm1824, %v2043, 0
        %2050 = vmatprep.subr.bf16.mxu0 0
        %2051 = vmatpush1.bf16.xpose.msra.mxu0 %v2048
        %2052 = vmatprep.subr.bf16.mxu0 0
        %2053 = vmatpush1.bf16.xpose.msra.mxu0 0
        %2054 = vmatprep.subr.bf16.mxu0 0
        %2055 = vmatpush1.bf16.xpose.msra.mxu0 0
        %2056 = vmatprep.subr.bf16.mxu0 0
        %2057 = vmatpush1.bf16.xpose.msra.mxu0 0
        %2058 = vmatprep.subr.bf16.mxu0 0
        %2059 = vmatpush1.bf16.xpose.msra.mxu0 0
        %2060 = vmatprep.subr.bf16.mxu0 0
        %2061 = vmatpush1.bf16.xpose.msra.mxu0 0
        %2062 = vmatprep.subr.bf16.mxu0 0
        %2063 = vmatpush1.bf16.xpose.msra.mxu0 0
        %2064 = vmatprep.subr.bf16.mxu0 0
        %2065 = vmatpush1.bf16.xpose.msra.mxu0 0
        %2066 = vmatprep.subr.bf16.mxu0 0
        %2067 = vmatpush1.bf16.xpose.msra.mxu0 0
        %2068 = vmatprep.subr.bf16.mxu0 0
        %2069 = vmatpush1.bf16.xpose.msra.mxu0 0
        %2070 = vmatprep.subr.bf16.mxu0 0
        %2071 = vmatpush1.bf16.xpose.msra.mxu0 0
        %2072 = vmatprep.subr.bf16.mxu0 0
        %2073 = vmatpush1.bf16.xpose.msra.mxu0 0
        %2074 = vmatprep.subr.bf16.mxu0 0
        %2075 = vmatpush1.bf16.xpose.msra.mxu0 0
        %2076 = vmatprep.subr.bf16.mxu0 0
        %2077 = vmatpush1.bf16.xpose.msra.mxu0 0
        %2078 = vmatprep.subr.bf16.mxu0 0
        %2079 = vmatpush1.bf16.xpose.msra.mxu0 0
        %2080 = vmatprep.subr.bf16.mxu0 0
        %2081 = vmatpush1.bf16.xpose.msra.mxu0 0
        %2082 = vmatprep.mubr.bf16.mxu0 0
        %2083 = vmatmul.mubr.bf16.gmra.mrb[0].mxu0 %v2045
        %v2084 = vpop.f32.mrb[0].mxu0
        %v2085 = vadd.f32 0.0, %v2084
        %v2086 = vpop.f32.mrb[0].mxu0
        %v2087 = vpop.f32.mrb[0].mxu0
        %v2088 = vpop.f32.mrb[0].mxu0
        %2089 = vdwg.mxu0
        %2091 = vrot.lane.b32.xlu0 %v1819, 112
        %v2092 = vpop.permute.xlu0 %2091
        %2094 = vrot.lane.b32.xlu0 %v1821, 112
        %v2095 = vpop.permute.xlu0 %2094
        %v2097 = vsel %vm1824, %v2092, 0
        %v2100 = vsel %vm1824, %v2095, 0
        %2102 = vmatprep.subr.bf16.mxu0 0
        %2103 = vmatpush1.bf16.xpose.msra.mxu0 %v2100
        %2104 = vmatprep.subr.bf16.mxu0 0
        %2105 = vmatpush1.bf16.xpose.msra.mxu0 0
        %2106 = vmatprep.subr.bf16.mxu0 0
        %2107 = vmatpush1.bf16.xpose.msra.mxu0 0
        %2108 = vmatprep.subr.bf16.mxu0 0
        %2109 = vmatpush1.bf16.xpose.msra.mxu0 0
        %2110 = vmatprep.subr.bf16.mxu0 0
        %2111 = vmatpush1.bf16.xpose.msra.mxu0 0
        %2112 = vmatprep.subr.bf16.mxu0 0
        %2113 = vmatpush1.bf16.xpose.msra.mxu0 0
        %2114 = vmatprep.subr.bf16.mxu0 0
        %2115 = vmatpush1.bf16.xpose.msra.mxu0 0
        %2116 = vmatprep.subr.bf16.mxu0 0
        %2117 = vmatpush1.bf16.xpose.msra.mxu0 0
        %2118 = vmatprep.subr.bf16.mxu0 0
        %2119 = vmatpush1.bf16.xpose.msra.mxu0 0
        %2120 = vmatprep.subr.bf16.mxu0 0
        %2121 = vmatpush1.bf16.xpose.msra.mxu0 0
        %2122 = vmatprep.subr.bf16.mxu0 0
        %2123 = vmatpush1.bf16.xpose.msra.mxu0 0
        %2124 = vmatprep.subr.bf16.mxu0 0
        %2125 = vmatpush1.bf16.xpose.msra.mxu0 0
        %2126 = vmatprep.subr.bf16.mxu0 0
        %2127 = vmatpush1.bf16.xpose.msra.mxu0 0
        %2128 = vmatprep.subr.bf16.mxu0 0
        %2129 = vmatpush1.bf16.xpose.msra.mxu0 0
        %2130 = vmatprep.subr.bf16.mxu0 0
        %2131 = vmatpush1.bf16.xpose.msra.mxu0 0
        %2132 = vmatprep.subr.bf16.mxu0 0
        %2133 = vmatpush1.bf16.xpose.msra.mxu0 0
        %2134 = vmatprep.mubr.bf16.mxu0 0
        %2135 = vmatmul.mubr.bf16.gmra.mrb[0].mxu0 %v2097
        %v2136 = vpop.f32.mrb[0].mxu0
        %v2137 = vadd.f32 0.0, %v2136
        %v2138 = vpop.f32.mrb[0].mxu0
        %v2139 = vpop.f32.mrb[0].mxu0
        %v2140 = vpop.f32.mrb[0].mxu0
        %2141 = vdwg.mxu0
        %v2142 = vmul.f32 %v2085, 0.25
        %v2143 = vmul.f32 %v2137, 0.25
        %v2144 = vsel %vm1919, %v2142, -inf
        %2145 = vmax.xlane.f32.xlu0 %v2144
        %v2146 = vpop.xlane.xlu0 %2145
        %v2147 = vsel %vm1919, %v2143, -inf
        %2148 = vmax.xlane.f32.xlu0 %v2147
        %v2149 = vpop.xlane.xlu0 %2148
        %v2150 = vsub.f32 %v2142, %v2146
        %v2151 = vsub.f32 %v2143, %v2149
        %v2152 = vmul.f32 %v2150, 1.442695
        %v2153 = vpow.pop %v2152
        %v2154 = vmul.f32 %v2151, 1.442695
        %v2155 = vpow.pop %v2154
        %v2156 = vsel %vm1919, %v2153, 0.0
        %2157 = vadd.xlane.f32.xlu0 %v2156
        %v2158 = vpop.xlane.xlu0 %2157
        %v2159 = vsel %vm1919, %v2155, 0.0
        %2160 = vadd.xlane.f32.xlu0 %v2159
        %v2161 = vpop.xlane.xlu0 %2160
        %v2162 = vrcp.pop %v2158
        %v2163 = vrcp.pop %v2161
        %v2164 = vmul.f32 %v2153, %v2162
        %v2165 = vmul.f32 %v2155, %v2163
        %v2166 = vpack.c.bf16 %v2164, %v2164
        %v2167 = vpack.c.bf16 %v2165, %v2165
        %2169 = vrot.lane.b32.xlu0 %v1822, 112
        %v2170 = vpop.permute.xlu0 %2169
        %v2172 = vsel %vm1944, %v2166, 0
        %v2175 = vsel %vm1948, %v2170, 0
        %2177 = vmatprep.subr.bf16.mxu0 0
        %2178 = vmatpush1.bf16.msra.mxu0 %v2175
        %2179 = vmatprep.subr.bf16.mxu0 0
        %2180 = vmatpush1.bf16.msra.mxu0 0
        %2181 = vmatprep.subr.bf16.mxu0 0
        %2182 = vmatpush1.bf16.msra.mxu0 0
        %2183 = vmatprep.subr.bf16.mxu0 0
        %2184 = vmatpush1.bf16.msra.mxu0 0
        %2185 = vmatprep.subr.bf16.mxu0 0
        %2186 = vmatpush1.bf16.msra.mxu0 0
        %2187 = vmatprep.subr.bf16.mxu0 0
        %2188 = vmatpush1.bf16.msra.mxu0 0
        %2189 = vmatprep.subr.bf16.mxu0 0
        %2190 = vmatpush1.bf16.msra.mxu0 0
        %2191 = vmatprep.subr.bf16.mxu0 0
        %2192 = vmatpush1.bf16.msra.mxu0 0
        %2193 = vmatprep.subr.bf16.mxu0 0
        %2194 = vmatpush1.bf16.msra.mxu0 0
        %2195 = vmatprep.subr.bf16.mxu0 0
        %2196 = vmatpush1.bf16.msra.mxu0 0
        %2197 = vmatprep.subr.bf16.mxu0 0
        %2198 = vmatpush1.bf16.msra.mxu0 0
        %2199 = vmatprep.subr.bf16.mxu0 0
        %2200 = vmatpush1.bf16.msra.mxu0 0
        %2201 = vmatprep.subr.bf16.mxu0 0
        %2202 = vmatpush1.bf16.msra.mxu0 0
        %2203 = vmatprep.subr.bf16.mxu0 0
        %2204 = vmatpush1.bf16.msra.mxu0 0
        %2205 = vmatprep.subr.bf16.mxu0 0
        %2206 = vmatpush1.bf16.msra.mxu0 0
        %2207 = vmatprep.subr.bf16.mxu0 0
        %2208 = vmatpush1.bf16.msra.mxu0 0
        %2209 = vmatprep.mubr.bf16.mxu0 0
        %2210 = vmatmul.mubr.bf16.gmra.mrb[0].mxu0 %v2172
        %v2211 = vpop.f32.mrb[0].mxu0
        %v2212 = vadd.f32 0.0, %v2211
        %v2213 = vpop.f32.mrb[0].mxu0
        %v2214 = vpop.f32.mrb[0].mxu0
        %v2215 = vpop.f32.mrb[0].mxu0
        %2216 = vdwg.mxu0
        %2218 = vrot.lane.b32.xlu0 %v1823, 112
        %v2219 = vpop.permute.xlu0 %2218
        %v2221 = vsel %vm1944, %v2167, 0
        %v2224 = vsel %vm1948, %v2219, 0
        %2226 = vmatprep.subr.bf16.mxu0 0
        %2227 = vmatpush1.bf16.msra.mxu0 %v2224
        %2228 = vmatprep.subr.bf16.mxu0 0
        %2229 = vmatpush1.bf16.msra.mxu0 0
        %2230 = vmatprep.subr.bf16.mxu0 0
        %2231 = vmatpush1.bf16.msra.mxu0 0
        %2232 = vmatprep.subr.bf16.mxu0 0
        %2233 = vmatpush1.bf16.msra.mxu0 0
        %2234 = vmatprep.subr.bf16.mxu0 0
        %2235 = vmatpush1.bf16.msra.mxu0 0
        %2236 = vmatprep.subr.bf16.mxu0 0
        %2237 = vmatpush1.bf16.msra.mxu0 0
        %2238 = vmatprep.subr.bf16.mxu0 0
        %2239 = vmatpush1.bf16.msra.mxu0 0
        %2240 = vmatprep.subr.bf16.mxu0 0
        %2241 = vmatpush1.bf16.msra.mxu0 0
        %2242 = vmatprep.subr.bf16.mxu0 0
        %2243 = vmatpush1.bf16.msra.mxu0 0
        %2244 = vmatprep.subr.bf16.mxu0 0
        %2245 = vmatpush1.bf16.msra.mxu0 0
        %2246 = vmatprep.subr.bf16.mxu0 0
        %2247 = vmatpush1.bf16.msra.mxu0 0
        %2248 = vmatprep.subr.bf16.mxu0 0
        %2249 = vmatpush1.bf16.msra.mxu0 0
        %2250 = vmatprep.subr.bf16.mxu0 0
        %2251 = vmatpush1.bf16.msra.mxu0 0
        %2252 = vmatprep.subr.bf16.mxu0 0
        %2253 = vmatpush1.bf16.msra.mxu0 0
        %2254 = vmatprep.subr.bf16.mxu0 0
        %2255 = vmatpush1.bf16.msra.mxu0 0
        %2256 = vmatprep.subr.bf16.mxu0 0
        %2257 = vmatpush1.bf16.msra.mxu0 0
        %2258 = vmatprep.mubr.bf16.mxu0 0
        %2259 = vmatmul.mubr.bf16.gmra.mrb[0].mxu0 %v2221
        %v2260 = vpop.f32.mrb[0].mxu0
        %v2261 = vadd.f32 0.0, %v2260
        %v2262 = vpop.f32.mrb[0].mxu0
        %v2263 = vpop.f32.mrb[0].mxu0
        %v2264 = vpop.f32.mrb[0].mxu0
        %2265 = vdwg.mxu0
        %2268 = vrot.lane.b32.xlu0 %v2212, 16
        %v2269 = vpop.permute.xlu0 %2268
        %2270 = vrot.lane.b32.xlu0 %v2261, 16
        %v2271 = vpop.permute.xlu0 %2270
        %v2274 = vsel %vm1824, %v1987, %v2269
        %v2275 = vsel %vm1824, %v2033, %v2271
        %v2278 = vcombine.low %v2274, %v2275
        %v2280 = vpack.c.bf16 %v2278, %v2278
        %v2281 = vld [vmem:[%s994] sm:$0xf]
        %v2282 = vld [vmem:[%s994 + $0x4] sm:$0xf]
        %v2283 = vld [vmem:[%s994 + $0x8] sm:$0xf]
        %v2284 = vld [vmem:[%s994 + $0xc] sm:$0xf]
        %v2285 = vld [vmem:[%s1002] sm:$0x1]
        %v2287 = vlaneseq
        %v2288 = vshrl.u32 %v2287, 7
        %v2289 = vsub.s32 0, %v2288
        %v2290 = vrot.slane %v2285, %v2289
        %v2296 = vunpack.c.l.b16 %v2281
        %v2297 = vunpack.c.l.b16 %v2282
        %v2298 = vunpack.c.l.b16 %v2283
        %v2299 = vunpack.c.l.b16 %v2284
        %v2300 = vpack.c.b16 %v2297, %v2296
        %v2301 = vpack.c.b16 %v2299, %v2298
        %v2305 = vsel %vm1639, %v2280, 0
        %2307 = vmatprep.subr.bf16.mxu0 0
        %2308 = vmatpush1.bf16.msra.mxu0 %v2300
        %2309 = vmatprep.subr.bf16.mxu0 0
        %2310 = vmatpush1.bf16.msra.mxu0 %v2301
        %2311 = vmatprep.subr.bf16.mxu0 0
        %2312 = vmatpush1.bf16.msra.mxu0 0
        %2313 = vmatprep.subr.bf16.mxu0 0
        %2314 = vmatpush1.bf16.msra.mxu0 0
        %2315 = vmatprep.subr.bf16.mxu0 0
        %2316 = vmatpush1.bf16.msra.mxu0 0
        %2317 = vmatprep.subr.bf16.mxu0 0
        %2318 = vmatpush1.bf16.msra.mxu0 0
        %2319 = vmatprep.subr.bf16.mxu0 0
        %2320 = vmatpush1.bf16.msra.mxu0 0
        %2321 = vmatprep.subr.bf16.mxu0 0
        %2322 = vmatpush1.bf16.msra.mxu0 0
        %2323 = vmatprep.subr.bf16.mxu0 0
        %2324 = vmatpush1.bf16.msra.mxu0 0
        %2325 = vmatprep.subr.bf16.mxu0 0
        %2326 = vmatpush1.bf16.msra.mxu0 0
        %2327 = vmatprep.subr.bf16.mxu0 0
        %2328 = vmatpush1.bf16.msra.mxu0 0
        %2329 = vmatprep.subr.bf16.mxu0 0
        %2330 = vmatpush1.bf16.msra.mxu0 0
        %2331 = vmatprep.subr.bf16.mxu0 0
        %2332 = vmatpush1.bf16.msra.mxu0 0
        %2333 = vmatprep.subr.bf16.mxu0 0
        %2334 = vmatpush1.bf16.msra.mxu0 0
        %2335 = vmatprep.subr.bf16.mxu0 0
        %2336 = vmatpush1.bf16.msra.mxu0 0
        %2337 = vmatprep.subr.bf16.mxu0 0
        %2338 = vmatpush1.bf16.msra.mxu0 0
        %2339 = vmatprep.mubr.bf16.mxu0 0
        %2340 = vmatmul.mubr.bf16.gmra.mrb[0].mxu0 %v2305
        %v2341 = vpop.f32.mrb[0].mxu0
        %v2342 = vadd.f32 %v2290, %v2341
        %v2343 = vpop.f32.mrb[0].mxu0
        %v2344 = vpop.f32.mrb[0].mxu0
        %v2345 = vpop.f32.mrb[0].mxu0
        %2346 = vdwg.mxu0
        %v2348 = vcombine.high %v2342, %v2342
        %v2350 = vadd.f32 %v1563, %v2342
        %v2351 = vadd.f32 %v1564, %v2348
        %v2352 = vld [vmem:[%s1026] sm:$0x1]
        %v2353 = vld [vmem:[%s1034] sm:$0x1]
        %v2354 = vsel %vm1567, %v2350, 0.0
        %2355 = vadd.xlane.f32.xlu0 %v2354
        %v2356 = vpop.xlane.xlu0 %2355
        %v2357 = vsel %vm1567, %v2351, 0.0
        %2358 = vadd.xlane.f32.xlu0 %v2357
        %v2359 = vpop.xlane.xlu0 %2358
        %v2360 = vmul.f32 %v2356, %v1574
        %v2361 = vmul.f32 %v2359, %v1574
        %v2362 = vsub.f32 %v2350, %v2360
        %v2363 = vsub.f32 %v2351, %v2361
        %v2364 = vmul.f32 %v2362, %v2362
        %v2365 = vmul.f32 %v2363, %v2363
        %v2366 = vsel %vm1567, %v2364, 0.0
        %2367 = vadd.xlane.f32.xlu0 %v2366
        %v2368 = vpop.xlane.xlu0 %2367
        %v2369 = vsel %vm1567, %v2365, 0.0
        %2370 = vadd.xlane.f32.xlu0 %v2369
        %v2371 = vpop.xlane.xlu0 %2370
        %v2372 = vmul.f32 %v2368, %v1574
        %v2373 = vmul.f32 %v2371, %v1574
        %v2374 = vadd.f32 %v2372, 1e-12
        %v2375 = vadd.f32 %v2373, 1e-12
        %v2376 = vrsqrt.pop %v2374
        %v2377 = vrsqrt.pop %v2375
        %v2378 = vmul.f32 %v2362, %v2376
        %v2379 = vmul.f32 %v2363, %v2377
        %v2381 = vlaneseq
        %v2382 = vshrl.u32 %v2381, 7
        %v2383 = vsub.s32 0, %v2382
        %v2384 = vrot.slane %v2352, %v2383
        %v2386 = vmul.f32 %v2378, %v2384
        %v2387 = vmul.f32 %v2379, %v2384
        %v2389 = vlaneseq
        %v2390 = vshrl.u32 %v2389, 7
        %v2391 = vsub.s32 0, %v2390
        %v2392 = vrot.slane %v2353, %v2391
        %v2394 = vadd.f32 %v2386, %v2392
        %v2395 = vadd.f32 %v2387, %v2392
        %v2398 = vcombine.low %v2394, %v2395
        %v2400 = vpack.c.bf16 %v2398, %v2398
        %v2401 = vld [vmem:[%s1043] sm:$0xf]
        %v2402 = vld [vmem:[%s1043 + $0x4] sm:$0xf]
        %v2403 = vld [vmem:[%s1043 + $0x8] sm:$0xf]
        %v2404 = vld [vmem:[%s1043 + $0xc] sm:$0xf]
        %v2405 = vld [vmem:[%s1051] sm:$0x1]
        %v2407 = vlaneseq
        %v2408 = vshrl.u32 %v2407, 7
        %v2409 = vsub.s32 0, %v2408
        %v2410 = vrot.slane %v2405, %v2409
        %v2416 = vunpack.c.l.b16 %v2401
        %v2417 = vunpack.c.l.b16 %v2402
        %v2418 = vunpack.c.l.b16 %v2403
        %v2419 = vunpack.c.l.b16 %v2404
        %v2420 = vpack.c.b16 %v2417, %v2416
        %v2421 = vpack.c.b16 %v2419, %v2418
        %v2425 = vsel %vm1639, %v2400, 0
        %2427 = vmatprep.subr.bf16.mxu0 0
        %2428 = vmatpush1.bf16.msra.mxu0 %v2420
        %2429 = vmatprep.subr.bf16.mxu0 0
        %2430 = vmatpush1.bf16.msra.mxu0 %v2421
        %2431 = vmatprep.subr.bf16.mxu0 0
        %2432 = vmatpush1.bf16.msra.mxu0 0
        %2433 = vmatprep.subr.bf16.mxu0 0
        %2434 = vmatpush1.bf16.msra.mxu0 0
        %2435 = vmatprep.subr.bf16.mxu0 0
        %2436 = vmatpush1.bf16.msra.mxu0 0
        %2437 = vmatprep.subr.bf16.mxu0 0
        %2438 = vmatpush1.bf16.msra.mxu0 0
        %2439 = vmatprep.subr.bf16.mxu0 0
        %2440 = vmatpush1.bf16.msra.mxu0 0
        %2441 = vmatprep.subr.bf16.mxu0 0
        %2442 = vmatpush1.bf16.msra.mxu0 0
        %2443 = vmatprep.subr.bf16.mxu0 0
        %2444 = vmatpush1.bf16.msra.mxu0 0
        %2445 = vmatprep.subr.bf16.mxu0 0
        %2446 = vmatpush1.bf16.msra.mxu0 0
        %2447 = vmatprep.subr.bf16.mxu0 0
        %2448 = vmatpush1.bf16.msra.mxu0 0
        %2449 = vmatprep.subr.bf16.mxu0 0
        %2450 = vmatpush1.bf16.msra.mxu0 0
        %2451 = vmatprep.subr.bf16.mxu0 0
        %2452 = vmatpush1.bf16.msra.mxu0 0
        %2453 = vmatprep.subr.bf16.mxu0 0
        %2454 = vmatpush1.bf16.msra.mxu0 0
        %2455 = vmatprep.subr.bf16.mxu0 0
        %2456 = vmatpush1.bf16.msra.mxu0 0
        %2457 = vmatprep.subr.bf16.mxu0 0
        %2458 = vmatpush1.bf16.msra.mxu0 0
        %2459 = vmatprep.mubr.bf16.mxu0 0
        %2460 = vmatmul.mubr.bf16.gmra.mrb[0].mxu0 %v2425
        %v2461 = vpop.f32.mrb[0].mxu0
        %v2462 = vadd.f32 %v2410, %v2461
        %v2463 = vpop.f32.mrb[0].mxu0
        %v2464 = vpop.f32.mrb[0].mxu0
        %v2465 = vpop.f32.mrb[0].mxu0
        %2466 = vdwg.mxu0
        %v2467 = vmul.f32 %v2462, 0.5
        %v2468 = vmul.f32 %v2462, 0.044715
        %v2469 = vmul.f32 %v2468, %v2462
        %v2470 = vmul.f32 %v2469, %v2462
        %v2471 = vadd.f32 %v2462, %v2470
        %v2472 = vmul.f32 %v2471, 0.7978846
        %v2473 = vtanh.pop %v2472
        %v2474 = vadd.f32 %v2473, 1.0
        %v2475 = vmul.f32 %v2467, %v2474
        %v2476 = vpack.c.bf16 %v2475, %v2475
        %v2477 = vld [vmem:[%s1060] sm:$0xf]
        %v2478 = vld [vmem:[%s1060 + $0x4] sm:$0xf]
        %v2479 = vld [vmem:[%s1060 + $0x8] sm:$0xf]
        %v2480 = vld [vmem:[%s1060 + $0xc] sm:$0xf]
        %v2481 = vld [vmem:[%s1060 + $0x10] sm:$0xf]
        %v2482 = vld [vmem:[%s1060 + $0x14] sm:$0xf]
        %v2483 = vld [vmem:[%s1060 + $0x18] sm:$0xf]
        %v2484 = vld [vmem:[%s1060 + $0x1c] sm:$0xf]
        %v2485 = vld [vmem:[%s1068] sm:$0x1]
        %v2487 = vlaneseq
        %v2488 = vshrl.u32 %v2487, 7
        %v2489 = vsub.s32 0, %v2488
        %v2490 = vrot.slane %v2485, %v2489
        %v2500 = vunpack.c.l.b16 %v2477
        %v2501 = vunpack.c.l.b16 %v2478
        %v2502 = vunpack.c.l.b16 %v2479
        %v2503 = vunpack.c.l.b16 %v2480
        %v2504 = vunpack.c.l.b16 %v2481
        %v2505 = vunpack.c.l.b16 %v2482
        %v2506 = vunpack.c.l.b16 %v2483
        %v2507 = vunpack.c.l.b16 %v2484
        %v2508 = vpack.c.b16 %v2501, %v2500
        %v2509 = vpack.c.b16 %v2503, %v2502
        %v2510 = vpack.c.b16 %v2505, %v2504
        %v2511 = vpack.c.b16 %v2507, %v2506
        %vm2516 = vcmask 523264
        %v2518 = vsel %vm2516, %v2476, 0
        %2520 = vmatprep.subr.bf16.mxu0 0
        %2521 = vmatpush1.bf16.msra.mxu0 %v2508
        %2522 = vmatprep.subr.bf16.mxu0 0
        %2523 = vmatpush1.bf16.msra.mxu0 %v2509
        %2524 = vmatprep.subr.bf16.mxu0 0
        %2525 = vmatpush1.bf16.msra.mxu0 %v2510
        %2526 = vmatprep.subr.bf16.mxu0 0
        %2527 = vmatpush1.bf16.msra.mxu0 %v2511
        %2528 = vmatprep.subr.bf16.mxu0 0
        %2529 = vmatpush1.bf16.msra.mxu0 0
        %2530 = vmatprep.subr.bf16.mxu0 0
        %2531 = vmatpush1.bf16.msra.mxu0 0
        %2532 = vmatprep.subr.bf16.mxu0 0
        %2533 = vmatpush1.bf16.msra.mxu0 0
        %2534 = vmatprep.subr.bf16.mxu0 0
        %2535 = vmatpush1.bf16.msra.mxu0 0
        %2536 = vmatprep.subr.bf16.mxu0 0
        %2537 = vmatpush1.bf16.msra.mxu0 0
        %2538 = vmatprep.subr.bf16.mxu0 0
        %2539 = vmatpush1.bf16.msra.mxu0 0
        %2540 = vmatprep.subr.bf16.mxu0 0
        %2541 = vmatpush1.bf16.msra.mxu0 0
        %2542 = vmatprep.subr.bf16.mxu0 0
        %2543 = vmatpush1.bf16.msra.mxu0 0
        %2544 = vmatprep.subr.bf16.mxu0 0
        %2545 = vmatpush1.bf16.msra.mxu0 0
        %2546 = vmatprep.subr.bf16.mxu0 0
        %2547 = vmatpush1.bf16.msra.mxu0 0
        %2548 = vmatprep.subr.bf16.mxu0 0
        %2549 = vmatpush1.bf16.msra.mxu0 0
        %2550 = vmatprep.subr.bf16.mxu0 0
        %2551 = vmatpush1.bf16.msra.mxu0 0
        %2552 = vmatprep.mubr.bf16.mxu0 0
        %2553 = vmatmul.mubr.bf16.gmra.mrb[0].mxu0 %v2518
        %v2554 = vpop.f32.mrb[0].mxu0
        %v2555 = vadd.f32 %v2490, %v2554
        %v2556 = vpop.f32.mrb[0].mxu0
        %v2557 = vpop.f32.mrb[0].mxu0
        %v2558 = vpop.f32.mrb[0].mxu0
        %2559 = vdwg.mxu0
        %v2561 = vcombine.high %v2555, %v2555
        %v2563 = vadd.f32 %v2350, %v2555
        %v2564 = vadd.f32 %v2351, %v2561
        %2565 = vst.msk [vmem:[#allocation2] sm:$0xf] %vm1567, %v2563
        %2566 = vst.msk [vmem:[#allocation2 + $0x4] sm:$0xf] %vm1567, %v2564
        %p2567 = scmp.eq.s32.totalorder %s35, 1
        // Predicated region
        $region185: #{_forward_impl.3} parent=99 // pred_check
          %p2568 = pneg %p2567
        $region186: #{_forward_impl.3} parent=99 // pred_check_branch
          %2570 = sbr.rel (%p2568) target = $region188
        $region187: #{_forward_impl.3} parent=99 // pred_region
          %v2571 = vld [vmem:[#allocation2] sm:$0xf]
          %v2572 = vld [vmem:[#allocation2 + $0x4] sm:$0xf]
          %2573 = vst.msk [vmem:[#allocation27] sm:$0xf] %vm1567, %v2571
          %2574 = vst.msk [vmem:[#allocation27 + $0x4] sm:$0xf] %vm1567, %v2572
        $region188: #{_forward_impl.3} parent=99 // pred_fallthru
          _
        // Predicated region
        $region189: #{_forward_impl.3} parent=99 // pred_check
          %p2575 = pneg %p548
        $region190: #{_forward_impl.3} parent=99 // pred_check_branch
          %2577 = sbr.rel (%p2575) target = $region192
        $region191: #{_forward_impl.3} parent=99 // pred_region
          %s2579 = ssub.s32 128, 128
          %2580 = vsyncadd [#allocation5], %s2579
          %s2581 = sshll.u32 [#allocation27], 4
          %s2582 = int_to_ptr.vmem [resolvable:$true] %s2581
          %2587 = dma.vmem_to_hbm [thread:$0]  %s2582, 128, %s20, [#allocation5], 64, 64, 4
        $region192: #{_forward_impl.3} parent=99 // pred_fallthru
          _
        // Predicated region
        $region193: #{_forward_impl.3} parent=99 // pred_check
          %p2588 = pneg %p548
        $region194: #{_forward_impl.3} parent=99 // pred_check_branch
          %2590 = sbr.rel (%p2588) target = $region196
        $region195: #{_forward_impl.3} parent=99 // pred_region
          %2591 = dma.done [#allocation5], 128
        $region196: #{_forward_impl.3} parent=99 // pred_fallthru
          _
      $region100: #{_forward_impl.3} parent=5 // pred_fallthru
        _
      %p2592 = scmp.le.s32.totalorder 2, %s30
      // Predicated region
      $region197: #{_forward_impl.3} parent=5 // pred_check
        %p2593 = pneg %p2592
      $region198: #{_forward_impl.3} parent=5 // pred_check_branch
        %2595 = sbr.rel (%p2593) target = $region200
      $region199: #{_forward_impl.3} parent=5 // pred_region
        %s2596 = ssub.s32 %s30, 2
      $region200: #{_forward_impl.3} parent=5 // pred_fallthru
        _
    $region6: #{_forward_impl.3} parent=1 // loop_footer
      %s34 = sadd.s32 1, %s30
    $region7: #{_forward_impl.3} parent=1 // loop_footer_branch
      %29 = sbr.rel target = $region3
    $region8: #{_forward_impl.3} parent=1 // loop_exit
      _
    %2597 = vsyncpa [#allocation4], 1
    %s2598 = scalar_lea.sflag [#allocation4], 1
    %2599 = vsyncpa %s2598, 1
    %2600 = vsyncpa [#allocation7], 1
    %2601 = vsyncpa [#allocation10], 1
    %2602 = vsyncpa [#allocation5], 1
    %s2603 = scalar_lea.sflag [#allocation5], 1
    %2604 = vsyncpa %s2603, 1

// kernel: _forward_impl.5
$region0: #{_forward_impl.5}
  #allocation0 [shape = 'u32[]', space=smem, size = 0x4, offset = 0x4, fixed_abs, tag = 'smem constant byte address 0x4 - core index']
  #allocation1 [shape = 'u32[144,128]{1,0:T(1,128)}', space=vmem, size = 0x12000, scoped, tag = 'internal scratch']
  %s0 = inlined_call_operand.hbm [shape: f32[2,4,16], index: 0, kind: input, shape index: {}]
  %s1 = inlined_call_operand.hbm [shape: f32[1,16], index: 1, kind: input, shape index: {}]
  %s2 = inlined_call_operand.hbm [shape: f32[1,16], index: 2, kind: input, shape index: {}]
  %s3 = inlined_call_operand.hbm [shape: bf16[16,512], index: 3, kind: input, shape index: {}]
  %s4 = inlined_call_operand.hbm [shape: f32[1,512], index: 4, kind: input, shape index: {}]
  %s5 = inlined_call_operand.hbm [shape: f32[2,4,512], index: 5, kind: input, shape index: {}]
  %s6 = inlined_call_operand.hbm [shape: f32[2,4,1], index: 6, kind: input, shape index: {}]
  %s7 = inlined_call_operand.hbm [shape: f32[2,4,512], index: 7, kind: output, shape index: {0}]
  %s8 = inlined_call_operand.hbm [shape: f32[1,1], index: 8, kind: output, shape index: {1}]
  %9 = xla_tuple %s7, %s8
  %s10 = sld [smem:[#allocation0]]
  $region74: #{_forward_impl.5} parent=0
    _
  %s12 = ssub.s32 1, %s10
  %s13 = scalar_select 0, %s12, %s10
  $region1: #{_forward_impl.5} parent=0
    #allocation2 [shape = 'u8[4096]{0}', space=vmem, size = 0x1000, scoped, tag = 'input window, operand 0, single buffered']
    #allocation3 [shape = 's32[1]{0}', space=sflag, size = 0x4, scoped, tag = 'scoped memory for _forward_impl.5']
    #allocation4 [shape = 's32[1]{0}', space=sflag, size = 0x4, scoped, tag = 'scoped memory for _forward_impl.5']
    #allocation5 [shape = 'u8[512]{0}', space=vmem, size = 0x400, scoped, tag = 'input window, operand 1, single buffered']
    #allocation6 [shape = 's32[1]{0}', space=sflag, size = 0x4, scoped, tag = 'scoped memory for _forward_impl.5']
    #allocation7 [shape = 'u8[512]{0}', space=vmem, size = 0x400, scoped, tag = 'input window, operand 2, single buffered']
    #allocation8 [shape = 'u8[16384]{0}', space=vmem, size = 0x4000, scoped, tag = 'input window, operand 3, single buffered']
    #allocation9 [shape = 's32[1]{0}', space=sflag, size = 0x4, scoped, tag = 'scoped memory for _forward_impl.5']
    #allocation10 [shape = 'u8[2048]{0}', space=vmem, size = 0x800, scoped, tag = 'input window, operand 4, single buffered']
    #allocation11 [shape = 'u8[16384]{0}', space=vmem, size = 0x4000, scoped, tag = 'input window, operand 5, single buffered']
    #allocation12 [shape = 's32[1]{0}', space=sflag, size = 0x4, scoped, tag = 'scoped memory for _forward_impl.5']
    #allocation13 [shape = 'u8[4096]{0}', space=vmem, size = 0x1000, scoped, tag = 'input window, operand 6, single buffered']
    #allocation14 [shape = 'u8[16384]{0}', space=vmem, size = 0x4000, scoped, tag = 'output window, operand 0, single buffered']
    #allocation15 [shape = 'u8[512]{0}', space=vmem, size = 0x400, scoped, tag = 'output window, operand 1, single buffered']
    #allocation16 [shape = 's32[1]{0}', space=sflag, size = 0x4, scoped, tag = 'scoped memory for _forward_impl.5']
    %14 = vsyncpa [#allocation3], 0
    %15 = vsyncpa [#allocation6], 0
    %16 = vsyncpa [#allocation9], 0
    %17 = vsyncpa [#allocation12], 0
    %18 = vsyncpa [#allocation4], 0
    %19 = vsyncpa [#allocation16], 0
    // Predicated region
    $region2: #{_forward_impl.5} parent=1 // pred_check
      _
    $region3: #{_forward_impl.5} parent=1 // pred_check_branch
      %21 = sbr.rel (0) target = $region5
    $region4: #{_forward_impl.5} parent=1 // pred_region
      %s23 = ssub.s32 128, 128
      %24 = vsyncadd [#allocation3], %s23
      %s25 = sshll.u32 [#allocation2], 4
      %s26 = int_to_ptr.vmem [resolvable:$true] %s25
      %31 = dma.hbm_to_vmem [thread:$0]  %s0, 128, %s26, [#allocation3], 64, 64, 4
    $region5: #{_forward_impl.5} parent=1 // pred_fallthru
      _
    // Predicated region
    $region6: #{_forward_impl.5} parent=1 // pred_check
      _
    $region7: #{_forward_impl.5} parent=1 // pred_check_branch
      %33 = sbr.rel (0) target = $region9
    $region8: #{_forward_impl.5} parent=1 // pred_region
      %s35 = ssub.s32 16, 16
      %36 = vsyncadd [#allocation6], %s35
      %s38 = sshll.u32 [#allocation5], 4
      %s39 = int_to_ptr.vmem [resolvable:$true] %s38
      %41 = dma.hbm_to_vmem [thread:$0]  %s1, 16, %s39, [#allocation6]
    $region9: #{_forward_impl.5} parent=1 // pred_fallthru
      _
    // Predicated region
    $region10: #{_forward_impl.5} parent=1 // pred_check
      _
    $region11: #{_forward_impl.5} parent=1 // pred_check_branch
      %43 = sbr.rel (0) target = $region13
    $region12: #{_forward_impl.5} parent=1 // pred_region
      %s45 = ssub.s32 16, 16
      %46 = vsyncadd [#allocation6], %s45
      %s48 = sshll.u32 [#allocation7], 4
      %s49 = int_to_ptr.vmem [resolvable:$true] %s48
      %51 = dma.hbm_to_vmem [thread:$0]  %s2, 16, %s49, [#allocation6]
    $region13: #{_forward_impl.5} parent=1 // pred_fallthru
      _
    // Predicated region
    $region14: #{_forward_impl.5} parent=1 // pred_check
      _
    $region15: #{_forward_impl.5} parent=1 // pred_check_branch
      %53 = sbr.rel (0) target = $region17
    $region16: #{_forward_impl.5} parent=1 // pred_region
      %s55 = ssub.s32 512, 512
      %56 = vsyncadd [#allocation9], %s55
      %s57 = sshll.u32 [#allocation8], 4
      %s58 = int_to_ptr.vmem [resolvable:$true] %s57
      %63 = dma.hbm_to_vmem [thread:$0]  %s3, 512, %s58, [#allocation9], 256, 256, 16
    $region17: #{_forward_impl.5} parent=1 // pred_fallthru
      _
    // Predicated region
    $region18: #{_forward_impl.5} parent=1 // pred_check
      _
    $region19: #{_forward_impl.5} parent=1 // pred_check_branch
      %65 = sbr.rel (0) target = $region21
    $region20: #{_forward_impl.5} parent=1 // pred_region
      %s67 = ssub.s32 64, 64
      %68 = vsyncadd [#allocation9], %s67
      %s70 = sshll.u32 [#allocation10], 4
      %s71 = int_to_ptr.vmem [resolvable:$true] %s70
      %73 = dma.hbm_to_vmem [thread:$0]  %s4, 64, %s71, [#allocation9]
    $region21: #{_forward_impl.5} parent=1 // pred_fallthru
      _
    // Predicated region
    $region22: #{_forward_impl.5} parent=1 // pred_check
      _
    $region23: #{_forward_impl.5} parent=1 // pred_check_branch
      %75 = sbr.rel (0) target = $region25
    $region24: #{_forward_impl.5} parent=1 // pred_region
      %s77 = ssub.s32 512, 512
      %78 = vsyncadd [#allocation12], %s77
      %s79 = sshll.u32 [#allocation11], 4
      %s80 = int_to_ptr.vmem [resolvable:$true] %s79
      %85 = dma.hbm_to_vmem [thread:$0]  %s5, 512, %s80, [#allocation12], 256, 256, 16
    $region25: #{_forward_impl.5} parent=1 // pred_fallthru
      _
    // Predicated region
    $region26: #{_forward_impl.5} parent=1 // pred_check
      _
    $region27: #{_forward_impl.5} parent=1 // pred_check_branch
      %87 = sbr.rel (0) target = $region29
    $region28: #{_forward_impl.5} parent=1 // pred_region
      %s89 = ssub.s32 128, 128
      %90 = vsyncadd [#allocation12], %s89
      %s91 = sshll.u32 [#allocation13], 4
      %s92 = int_to_ptr.vmem [resolvable:$true] %s91
      %97 = dma.hbm_to_vmem [thread:$0]  %s6, 128, %s92, [#allocation12], 64, 64, 4
    $region29: #{_forward_impl.5} parent=1 // pred_fallthru
      _
    // Predicated region
    $region30: #{_forward_impl.5} parent=1 // pred_check
      _
    $region31: #{_forward_impl.5} parent=1 // pred_check_branch
      %99 = sbr.rel (0) target = $region33
    $region32: #{_forward_impl.5} parent=1 // pred_region
      %100 = dma.done [#allocation3], 128
    $region33: #{_forward_impl.5} parent=1 // pred_fallthru
      _
    // Predicated region
    $region34: #{_forward_impl.5} parent=1 // pred_check
      _
    $region35: #{_forward_impl.5} parent=1 // pred_check_branch
      %102 = sbr.rel (0) target = $region37
    $region36: #{_forward_impl.5} parent=1 // pred_region
      %103 = dma.done [#allocation6], 16
    $region37: #{_forward_impl.5} parent=1 // pred_fallthru
      _
    // Predicated region
    $region38: #{_forward_impl.5} parent=1 // pred_check
      _
    $region39: #{_forward_impl.5} parent=1 // pred_check_branch
      %105 = sbr.rel (0) target = $region41
    $region40: #{_forward_impl.5} parent=1 // pred_region
      %106 = dma.done [#allocation6], 16
    $region41: #{_forward_impl.5} parent=1 // pred_fallthru
      _
    // Predicated region
    $region42: #{_forward_impl.5} parent=1 // pred_check
      _
    $region43: #{_forward_impl.5} parent=1 // pred_check_branch
      %108 = sbr.rel (0) target = $region45
    $region44: #{_forward_impl.5} parent=1 // pred_region
      %109 = dma.done [#allocation9], 512
    $region45: #{_forward_impl.5} parent=1 // pred_fallthru
      _
    // Predicated region
    $region46: #{_forward_impl.5} parent=1 // pred_check
      _
    $region47: #{_forward_impl.5} parent=1 // pred_check_branch
      %111 = sbr.rel (0) target = $region49
    $region48: #{_forward_impl.5} parent=1 // pred_region
      %112 = dma.done [#allocation9], 64
    $region49: #{_forward_impl.5} parent=1 // pred_fallthru
      _
    // Predicated region
    $region50: #{_forward_impl.5} parent=1 // pred_check
      _
    $region51: #{_forward_impl.5} parent=1 // pred_check_branch
      %114 = sbr.rel (0) target = $region53
    $region52: #{_forward_impl.5} parent=1 // pred_region
      %115 = dma.done [#allocation12], 512
    $region53: #{_forward_impl.5} parent=1 // pred_fallthru
      _
    // Predicated region
    $region54: #{_forward_impl.5} parent=1 // pred_check
      _
    $region55: #{_forward_impl.5} parent=1 // pred_check_branch
      %117 = sbr.rel (0) target = $region57
    $region56: #{_forward_impl.5} parent=1 // pred_region
      %118 = dma.done [#allocation12], 128
    $region57: #{_forward_impl.5} parent=1 // pred_fallthru
      _
    %v120 = vld [vmem:[#allocation2] sm:$0xf]
    %v121 = vld [vmem:[#allocation2 + $0x4] sm:$0xf]
    %v122 = vld [vmem:[#allocation5] sm:$0x1]
    %v123 = vld [vmem:[#allocation7] sm:$0x1]
    %vm124 = vcmask 125952
    %v125 = vsel %vm124, %v120, 0.0
    %126 = vadd.xlane.f32.xlu0 %v125
    %v127 = vpop.xlane.xlu0 %126
    %v128 = vsel %vm124, %v121, 0.0
    %129 = vadd.xlane.f32.xlu0 %v128
    %v130 = vpop.xlane.xlu0 %129
    %v131 = vrcp.pop 16.0
    %v132 = vmul.f32 %v127, %v131
    %v133 = vmul.f32 %v130, %v131
    %v134 = vsub.f32 %v120, %v132
    %v135 = vsub.f32 %v121, %v133
    %v136 = vmul.f32 %v134, %v134
    %v137 = vmul.f32 %v135, %v135
    %v138 = vsel %vm124, %v136, 0.0
    %139 = vadd.xlane.f32.xlu0 %v138
    %v140 = vpop.xlane.xlu0 %139
    %v141 = vsel %vm124, %v137, 0.0
    %142 = vadd.xlane.f32.xlu0 %v141
    %v143 = vpop.xlane.xlu0 %142
    %v144 = vmul.f32 %v140, %v131
    %v145 = vmul.f32 %v143, %v131
    %v146 = vadd.f32 %v144, 1e-12
    %v147 = vadd.f32 %v145, 1e-12
    %v148 = vrsqrt.pop %v146
    %v149 = vrsqrt.pop %v147
    %v150 = vmul.f32 %v134, %v148
    %v151 = vmul.f32 %v135, %v149
    %v153 = vlaneseq
    %v154 = vshrl.u32 %v153, 7
    %v155 = vsub.s32 0, %v154
    %v156 = vrot.slane %v122, %v155
    %v158 = vmul.f32 %v150, %v156
    %v159 = vmul.f32 %v151, %v156
    %v161 = vlaneseq
    %v162 = vshrl.u32 %v161, 7
    %v163 = vsub.s32 0, %v162
    %v164 = vrot.slane %v123, %v163
    %v166 = vadd.f32 %v158, %v164
    %v167 = vadd.f32 %v159, %v164
    %v170 = vcombine.low %v166, %v167
    %v172 = vpack.c.bf16 %v170, %v170
    %v173 = vld [vmem:[#allocation8] sm:$0xff]
    %v174 = vld [vmem:[#allocation8 + $0x8] sm:$0xff]
    %v175 = vld [vmem:[#allocation8 + $0x10] sm:$0xff]
    %v176 = vld [vmem:[#allocation8 + $0x18] sm:$0xff]
    %v177 = vld [vmem:[#allocation10] sm:$0xf]
    %v179 = vlaneseq
    %v180 = vshrl.u32 %v179, 7
    %v181 = vsub.s32 0, %v180
    %v182 = vrot.slane %v177, %v181
    %v183 = vlaneseq
    %v184 = vshrl.u32 %v183, 7
    %v185 = vsub.s32 1, %v184
    %v186 = vrot.slane %v177, %v185
    %v187 = vlaneseq
    %v188 = vshrl.u32 %v187, 7
    %v189 = vsub.s32 2, %v188
    %v190 = vrot.slane %v177, %v189
    %v191 = vlaneseq
    %v192 = vshrl.u32 %v191, 7
    %v193 = vsub.s32 3, %v192
    %v194 = vrot.slane %v177, %v193
    %v203 = vunpack.c.l.b16 %v173
    %v204 = vunpack.c.h.b16 %v173
    %v205 = vunpack.c.l.b16 %v174
    %v206 = vunpack.c.h.b16 %v174
    %v207 = vunpack.c.l.b16 %v175
    %v208 = vunpack.c.h.b16 %v175
    %v209 = vunpack.c.l.b16 %v176
    %v210 = vunpack.c.h.b16 %v176
    %v211 = vpack.c.b16 %v207, %v203
    %v212 = vpack.c.b16 %v208, %v204
    %v213 = vpack.c.b16 %v209, %v205
    %v214 = vpack.c.b16 %v210, %v206
    %vm219 = vcmask 130048
    %v221 = vsel %vm219, %v172, 0
    %223 = vmatprep.subr.bf16.mxu0 %v212
    %224 = vmatpush1.bf16.msra.mxu0 %v211
    %225 = vmatprep.subr.bf16.mxu0 0
    %226 = vmatpush1.bf16.msra.mxu0 0
    %227 = vmatprep.subr.bf16.mxu0 0
    %228 = vmatpush1.bf16.msra.mxu0 0
    %229 = vmatprep.subr.bf16.mxu0 0
    %230 = vmatpush1.bf16.msra.mxu0 0
    %231 = vmatprep.subr.bf16.mxu0 0
    %232 = vmatpush1.bf16.msra.mxu0 0
    %233 = vmatprep.subr.bf16.mxu0 0
    %234 = vmatpush1.bf16.msra.mxu0 0
    %235 = vmatprep.subr.bf16.mxu0 0
    %236 = vmatpush1.bf16.msra.mxu0 0
    %237 = vmatprep.subr.bf16.mxu0 0
    %238 = vmatpush1.bf16.msra.mxu0 0
    %239 = vmatprep.subr.bf16.mxu0 0
    %240 = vmatpush1.bf16.msra.mxu0 0
    %241 = vmatprep.subr.bf16.mxu0 0
    %242 = vmatpush1.bf16.msra.mxu0 0
    %243 = vmatprep.subr.bf16.mxu0 0
    %244 = vmatpush1.bf16.msra.mxu0 0
    %245 = vmatprep.subr.bf16.mxu0 0
    %246 = vmatpush1.bf16.msra.mxu0 0
    %247 = vmatprep.subr.bf16.mxu0 0
    %248 = vmatpush1.bf16.msra.mxu0 0
    %249 = vmatprep.subr.bf16.mxu0 0
    %250 = vmatpush1.bf16.msra.mxu0 0
    %251 = vmatprep.subr.bf16.mxu0 0
    %252 = vmatpush1.bf16.msra.mxu0 0
    %253 = vmatprep.subr.bf16.mxu0 0
    %254 = vmatpush1.bf16.msra.mxu0 0
    %255 = vmatprep.mubr.bf16.mxu0 0
    %256 = vmatmul.mubr.bf16.gmra.mrb[0].mxu0 %v221
    %v257 = vpop.f32.mrb[0].mxu0
    %v258 = vadd.f32 %v182, %v257
    %v259 = vpop.f32.mrb[0].mxu0
    %v260 = vadd.f32 %v186, %v259
    %v261 = vpop.f32.mrb[0].mxu0
    %v262 = vpop.f32.mrb[0].mxu0
    %263 = vdwg.mxu0
    %264 = vmatprep.subr.bf16.mxu0 %v214
    %265 = vmatpush1.bf16.msra.mxu0 %v213
    %266 = vmatprep.subr.bf16.mxu0 0
    %267 = vmatpush1.bf16.msra.mxu0 0
    %268 = vmatprep.subr.bf16.mxu0 0
    %269 = vmatpush1.bf16.msra.mxu0 0
    %270 = vmatprep.subr.bf16.mxu0 0
    %271 = vmatpush1.bf16.msra.mxu0 0
    %272 = vmatprep.subr.bf16.mxu0 0
    %273 = vmatpush1.bf16.msra.mxu0 0
    %274 = vmatprep.subr.bf16.mxu0 0
    %275 = vmatpush1.bf16.msra.mxu0 0
    %276 = vmatprep.subr.bf16.mxu0 0
    %277 = vmatpush1.bf16.msra.mxu0 0
    %278 = vmatprep.subr.bf16.mxu0 0
    %279 = vmatpush1.bf16.msra.mxu0 0
    %280 = vmatprep.subr.bf16.mxu0 0
    %281 = vmatpush1.bf16.msra.mxu0 0
    %282 = vmatprep.subr.bf16.mxu0 0
    %283 = vmatpush1.bf16.msra.mxu0 0
    %284 = vmatprep.subr.bf16.mxu0 0
    %285 = vmatpush1.bf16.msra.mxu0 0
    %286 = vmatprep.subr.bf16.mxu0 0
    %287 = vmatpush1.bf16.msra.mxu0 0
    %288 = vmatprep.subr.bf16.mxu0 0
    %289 = vmatpush1.bf16.msra.mxu0 0
    %290 = vmatprep.subr.bf16.mxu0 0
    %291 = vmatpush1.bf16.msra.mxu0 0
    %292 = vmatprep.subr.bf16.mxu0 0
    %293 = vmatpush1.bf16.msra.mxu0 0
    %294 = vmatprep.subr.bf16.mxu0 0
    %295 = vmatpush1.bf16.msra.mxu0 0
    %296 = vmatprep.mubr.bf16.mxu0 0
    %297 = vmatmul.mubr.bf16.gmra.mrb[0].mxu0 %v221
    %v298 = vpop.f32.mrb[0].mxu0
    %v299 = vadd.f32 %v190, %v298
    %v300 = vpop.f32.mrb[0].mxu0
    %v301 = vadd.f32 %v194, %v300
    %v302 = vpop.f32.mrb[0].mxu0
    %v303 = vpop.f32.mrb[0].mxu0
    %304 = vdwg.mxu0
    %v309 = vcombine.low %v258, %v260
    %v310 = vcombine.high %v258, %v260
    %v311 = vcombine.low %v299, %v301
    %v312 = vcombine.high %v299, %v301
    %317 = vst [vmem:[#allocation14] sm:$0xff] %v309
    %318 = vst [vmem:[#allocation14 + $0x8] sm:$0xff] %v311
    %319 = vst [vmem:[#allocation14 + $0x10] sm:$0xff] %v310
    %320 = vst [vmem:[#allocation14 + $0x18] sm:$0xff] %v312
    %v321 = vld [vmem:[#allocation11] sm:$0xff]
    %v322 = vld [vmem:[#allocation11 + $0x8] sm:$0xff]
    %v323 = vld [vmem:[#allocation11 + $0x10] sm:$0xff]
    %v324 = vld [vmem:[#allocation11 + $0x18] sm:$0xff]
    %v325 = vsub.f32 %v309, %v321
    %v326 = vsub.f32 %v311, %v322
    %v327 = vsub.f32 %v310, %v323
    %v328 = vsub.f32 %v312, %v324
    %v329 = vld [vmem:[#allocation13] sm:$0xf]
    %v330 = vld [vmem:[#allocation13 + $0x4] sm:$0xf]
    %v331 = vmul.f32 %v325, %v325
    %v332 = vmul.f32 %v326, %v326
    %v333 = vmul.f32 %v327, %v327
    %v334 = vmul.f32 %v328, %v328
    %336 = vset.pattern.permute.xlu0 0
    %337 = vperm.xlu0 %336, %v329
    %v338 = vpop.permute.xlu0 %337
    %340 = vset.pattern.permute.xlu0 0
    %341 = vperm.xlu0 %340, %v330
    %v342 = vpop.permute.xlu0 %341
    %v344 = vunpack.c.l.s4 839922192
    %v345 = vunpack.c.0.s8 %v344
    %v346 = vlaneseq
    %v347 = vshrl.u32 %v346, 7
    %v348 = vsub.s32 %v345, %v347
    %v349 = vrot.slane %v338, %v348
    %v351 = vunpack.c.l.s4 839922192
    %v352 = vunpack.c.0.s8 %v351
    %v353 = vlaneseq
    %v354 = vshrl.u32 %v353, 7
    %v355 = vsub.s32 %v352, %v354
    %v356 = vrot.slane %v342, %v355
    %v359 = vmul.f32 %v331, %v349
    %v360 = vmul.f32 %v332, %v349
    %v361 = vmul.f32 %v333, %v356
    %v362 = vmul.f32 %v334, %v356
    %v367 = vcombine.low %v359, %v361
    %v368 = vcombine.high %v359, %v361
    %v369 = vcombine.low %v360, %v362
    %v370 = vcombine.high %v360, %v362
    %v375 = vadd.f32 %v367, %v368
    %v376 = vadd.f32 %v375, %v369
    %v377 = vadd.f32 %v376, %v370
    %378 = vadd.xlane.f32.xlu0 %v377
    %v379 = vpop.xlane.xlu0 %378
    %v380 = vrot.slane %v379, 4
    %v381 = vadd.f32 %v379, %v380
    %v382 = vrot.slane %v381, 2
    %v383 = vadd.f32 %v381, %v382
    %v384 = vrot.slane %v383, 1
    %v385 = vadd.f32 %v383, %v384
    %s386 = vtos %v385
    %v387 = vstv %s386
    %v388 = vcombine.low %v329, %v330
    %vm390 = vcmask 7168
    %v391 = vsel %vm390, %v388, 0.0
    %392 = vadd.xlane.f32.xlu0 %v391
    %v393 = vpop.xlane.xlu0 %392
    %v394 = vrot.slane %v393, 4
    %v395 = vadd.f32 %v393, %v394
    %v396 = vrot.slane %v395, 2
    %v397 = vadd.f32 %v395, %v396
    %v398 = vrot.slane %v397, 1
    %v399 = vadd.f32 %v397, %v398
    %s400 = vtos %v399
    %v401 = vstv %s400
    %v402 = vmul.f32 %v401, 512.0
    %v403 = vmax.f32 %v402, 1.0
    %v404 = vrcp.pop %v403
    %v405 = vmul.f32 %v387, %v404
    %vm406 = vcmask 0
    %407 = vst.msk [vmem:[#allocation15] sm:$0x1] %vm406, %v405
    // Predicated region
    $region58: #{_forward_impl.5} parent=1 // pred_check
      _
    $region59: #{_forward_impl.5} parent=1 // pred_check_branch
      %409 = sbr.rel (0) target = $region61
    $region60: #{_forward_impl.5} parent=1 // pred_region
      %s411 = ssub.s32 512, 512
      %412 = vsyncadd [#allocation4], %s411
      %s413 = sshll.u32 [#allocation14], 4
      %s414 = int_to_ptr.vmem [resolvable:$true] %s413
      %419 = dma.vmem_to_hbm [thread:$0]  %s414, 512, %s7, [#allocation4], 256, 256, 16
    $region61: #{_forward_impl.5} parent=1 // pred_fallthru
      _
    // Predicated region
    $region62: #{_forward_impl.5} parent=1 // pred_check
      _
    $region63: #{_forward_impl.5} parent=1 // pred_check_branch
      %421 = sbr.rel (0) target = $region65
    $region64: #{_forward_impl.5} parent=1 // pred_region
      %s423 = ssub.s32 16, 16
      %424 = vsyncadd [#allocation16], %s423
      %s426 = sshll.u32 [#allocation15], 4
      %s427 = int_to_ptr.vmem [resolvable:$true] %s426
      %429 = dma.vmem_to_hbm [thread:$0]  %s427, 16, %s8, [#allocation16]
    $region65: #{_forward_impl.5} parent=1 // pred_fallthru
      _
    // Predicated region
    $region66: #{_forward_impl.5} parent=1 // pred_check
      _
    $region67: #{_forward_impl.5} parent=1 // pred_check_branch
      %431 = sbr.rel (0) target = $region69
    $region68: #{_forward_impl.5} parent=1 // pred_region
      %432 = dma.done [#allocation4], 512
    $region69: #{_forward_impl.5} parent=1 // pred_fallthru
      _
    // Predicated region
    $region70: #{_forward_impl.5} parent=1 // pred_check
      _
    $region71: #{_forward_impl.5} parent=1 // pred_check_branch
      %434 = sbr.rel (0) target = $region73
    $region72: #{_forward_impl.5} parent=1 // pred_region
      %435 = dma.done [#allocation16], 16
    $region73: #{_forward_impl.5} parent=1 // pred_fallthru
      _
    %436 = vsyncpa [#allocation3], 1
    %437 = vsyncpa [#allocation6], 1
    %438 = vsyncpa [#allocation9], 1
    %439 = vsyncpa [#allocation12], 1
    %440 = vsyncpa [#allocation4], 1
    %441 = vsyncpa [#allocation16], 1

</llo_original>
